<compile_context>
chip_gen: v7x
topology: tpu7x:2x2x1
jax: 0.10.0
libtpu: 0.0.40
codegen_flags: <defaults>
</compile_context>

<pallas_src>
import numpy as np
import jax
import jax.numpy as jnp
from jax.experimental import pallas as pl
from jax.experimental.pallas import tpu as pltpu

_EPS_BN = 1e-5
_EPS_LN = 1e-5


# ------------------------------ in-kernel math helpers ------------------------------

def _erf(x):
    # Abramowitz & Stegun 7.1.26 (|err| < 2e-7); exact divide (review: keep the
    # approx reciprocal out of the erf rational term).
    a1, a2, a3, a4, a5 = 0.254829592, -0.284496736, 1.421413741, -1.453152027, 1.061405429
    p = 0.3275911
    s = jnp.where(x >= 0.0, 1.0, -1.0)
    z = x * s
    t = 1.0 / (1.0 + p * z)
    poly = ((((a5 * t + a4) * t + a3) * t + a2) * t + a1) * t
    return s * (1.0 - poly * jnp.exp(-z * z))


def _gelu(x):
    # exact (erf-based) GELU, matching torch.nn.GELU() default
    return 0.5 * x * (1.0 + _erf(x * 0.7071067811865475))


# ------------------------------ fused kernel ------------------------------

def _make_kernel(B, C, H, W):
    N = H * W
    H2, W2 = 2 * H, 2 * W
    N2 = H2 * W2
    BC = B * C
    f32 = jnp.float32

    def _rows(a):
        # tile a per-channel (C, k) parameter over the batch rows -> (B*C, k)
        return jnp.concatenate([a] * B, axis=0) if B > 1 else a

    def _cmix(x, w, b):
        # per-batch channel mix on channels-first rows: y_b = (C,C) @ (C,L) + (C,1)
        outs = []
        for bi in range(B):
            xb = x[bi * C:(bi + 1) * C, :]
            outs.append(jnp.dot(w, xb, preferred_element_type=f32) + b)
        return jnp.concatenate(outs, axis=0) if B > 1 else outs[0]

    def _bn(z, gamma, beta, count):
        # BatchNorm2d forward, training mode: biased per-channel stats over batch+spatial
        # (lane-axis reduction per (b,c) row, then combine rows of the same channel).
        s1 = jnp.sum(z, axis=1, keepdims=True)          # (B*C, 1)
        s2 = jnp.sum(z * z, axis=1, keepdims=True)
        cs1 = s1[0:C, :]
        cs2 = s2[0:C, :]
        for bi in range(1, B):
            cs1 = cs1 + s1[bi * C:(bi + 1) * C, :]
            cs2 = cs2 + s2[bi * C:(bi + 1) * C, :]
        inv = 1.0 / float(count)
        mean = cs1 * inv
        var = jnp.maximum(cs2 * inv - mean * mean, 0.0)
        scale = gamma * jax.lax.rsqrt(var + _EPS_BN)    # (C, 1)
        shift = beta - mean * scale
        return z * _rows(scale) + _rows(shift)

    def kernel(x_ref, pool_ref, wl_ref, bl_ref,
               whd_ref, bhd_ref, whp_ref, bhp_ref, ghn_ref, bhn_ref,
               wvd_ref, bvd_ref, wvp_ref, bvp_ref, gvn_ref, bvn_ref,
               wch_ref, bch_ref,
               wq_ref, bq_ref, wk_ref, bk_ref, wv_ref, bv_ref,
               lng_ref, lnb_ref, qmat_ref, upm_ref, maska_ref,
               w3d_ref, b3d_ref, w3p_ref, b3p_ref, g3n_ref, b3n_ref, maskb_ref,
               o_ref, pada_ref, padb_ref):
        # ---- AvgPool2d(2,2): constant spatial matmul shared over all (b,c) rows ----
        xp = jnp.dot(x_ref[...], pool_ref[...], preferred_element_type=f32)   # (BC, N)

        # ---- lpg: GAP(x)*x then liner_l (per-batch channel mix) ----
        gap = jnp.mean(xp, axis=1, keepdims=True)                             # (BC, 1)
        prompt_l = _cmix(xp * gap, wl_ref[...], bl_ref[...])                  # (BC, N)

        # ---- hpg: depthwise (5,1)/(1,5) convs via one zero-padded VMEM scratch ----
        pada_ref[...] = jnp.zeros_like(pada_ref)        # zeroed once (no grid loop)
        pada_ref[:, 2 * W:2 * W + N] = xp
        whd = _rows(whd_ref[...])                                             # (BC, 5)
        wvd = _rows(wvd_ref[...])
        maska = maska_ref[...]                                                # (5, N)
        acc_h = jnp.zeros((BC, N), f32)
        acc_v = jnp.zeros((BC, N), f32)
        for k in range(5):
            d = k - 2
            # (5,1) conv: shift by whole rows -> zero row-padding already correct
            acc_h = acc_h + whd[:, k:k + 1] * pada_ref[:, k * W:k * W + N]
            # (1,5) conv: shift within rows -> mask lanes that cross a row boundary
            tap = pada_ref[:, 2 * W + d:2 * W + d + N]
            if d != 0:
                tap = tap * maska[k:k + 1, :]
            acc_v = acc_v + wvd[:, k:k + 1] * tap
        th = _gelu(acc_h + _rows(bhd_ref[...]))
        tv = _gelu(acc_v + _rows(bvd_ref[...]))
        xh = _bn(_cmix(th, whp_ref[...], bhp_ref[...]), ghn_ref[...], bhn_ref[...], B * N)
        xv = _bn(_cmix(tv, wvp_ref[...], bvp_ref[...]), gvn_ref[...], bvn_ref[...], B * N)
        prompt_h = _cmix(xh + xv, wch_ref[...], bch_ref[...])                 # (BC, N)

        # ---- pgc: shared-weight DynamicAttention applied in both directions ----
        wq, bq = wq_ref[...], bq_ref[...]
        wk, bk = wk_ref[...], bk_ref[...]
        wv, bv = wv_ref[...], bv_ref[...]

        q_list, k_list, v_list = [], [], []
        for bi in range(B):
            ph = prompt_h[bi * C:(bi + 1) * C, :]
            plo = prompt_l[bi * C:(bi + 1) * C, :]
            pin = jnp.concatenate([ph, plo], axis=1)                          # (C, 2N)
            q_list.append(jnp.dot(wq, pin, preferred_element_type=f32) + bq)
            k_list.append(jnp.dot(wk, pin, preferred_element_type=f32) + bk)
            v_list.append(jnp.dot(wv, pin, preferred_element_type=f32) + bv)
        q_cat = jnp.concatenate(q_list, axis=0) if B > 1 else q_list[0]       # (BC, 2N)
        q_t = jnp.transpose(q_cat)                                            # (2N, BC)

        def _attend(q_tok, k_cf, v_cf):
            s = jnp.dot(q_tok, k_cf, preferred_element_type=f32)              # (N, N)
            s = s - jnp.max(s, axis=-1, keepdims=True)
            e = jnp.exp(s)
            # approx reciprocal only for the softmax denominator (EUP, documented)
            w_attn = e * pl.reciprocal(jnp.sum(e, axis=-1, keepdims=True), approx=True)
            return jax.lax.dot_general(v_cf, w_attn, (((1,), (1,)), ((), ())),
                                       preferred_element_type=f32)            # (C, N)

        finals = []
        for bi in range(B):
            qh_t = q_t[0:N, bi * C:(bi + 1) * C]          # Q(prompt_h), token layout
            ql_t = q_t[N:2 * N, bi * C:(bi + 1) * C]      # Q(prompt_l)
            kb, vb = k_list[bi], v_list[bi]
            a1 = _attend(qh_t, kb[:, N:2 * N], vb[:, N:2 * N])   # q=h, k/v=l
            a2 = _attend(ql_t, kb[:, 0:N], vb[:, 0:N])           # q=l, k/v=h
            finals.append(a1 + a2)
        final = jnp.concatenate(finals, axis=0) if B > 1 else finals[0]       # (BC, N)

        # ---- LayerNorm over the raw-memory view(B, -1, C) of the NCHW tensor ----
        qm = qmat_ref[...]
        mu = jnp.dot(final, qm, preferred_element_type=f32)
        ex2 = jnp.dot(final * final, qm, preferred_element_type=f32)
        var = jnp.maximum(ex2 - mu * mu, 0.0)
        p_norm = (final - mu) * jax.lax.rsqrt(var + _EPS_LN) * lng_ref[...] + lnb_ref[...]

        # ---- bilinear x2 upsample (align_corners=True): constant spatial matmul ----
        pup = jnp.dot(p_norm, upm_ref[...], preferred_element_type=f32)       # (BC, N2)

        # ---- dsc: depthwise 3x3 + GELU + 1x1 + BN, then residual ----
        padb_ref[...] = jnp.zeros_like(padb_ref)
        padb_ref[:, W2 + 1:W2 + 1 + N2] = pup
        w3 = _rows(w3d_ref[...])                                              # (BC, 9)
        maskb = maskb_ref[...]                                                # (3, N2)
        acc = jnp.zeros((BC, N2), f32)
        for kh in range(3):
            for kw in range(3):
                tap = padb_ref[:, kh * W2 + kw:kh * W2 + kw + N2]
                if kw != 1:
                    tap = tap * maskb[kw:kw + 1, :]
                acc = acc + w3[:, kh * 3 + kw:kh * 3 + kw + 1] * tap
        t3 = _gelu(acc + _rows(b3d_ref[...]))
        z = _bn(_cmix(t3, w3p_ref[...], b3p_ref[...]), g3n_ref[...], b3n_ref[...], B * N2)
        o_ref[...] = z + pup                               # residual never leaves VMEM

    return kernel


# ------------------------------ constant spatial operators ------------------------------

def _pool_matrix(H0, W0):
    # AvgPool2d(2, 2) as a (H0*W0, H*W) matrix acting on flattened row-major maps
    H, W = H0 // 2, W0 // 2
    P = np.zeros((H0 * W0, H * W), np.float32)
    for h0 in range(H0):
        for w0 in range(W0):
            P[h0 * W0 + w0, (h0 // 2) * W + (w0 // 2)] = 0.25
    return P


def _bilinear_1d(n_in, n_out):
    # nn.Upsample(scale_factor=2, mode='bilinear', align_corners=True) separable weights
    U = np.zeros((n_out, n_in), np.float32)
    if n_in == 1 or n_out == 1:
        U[:, 0] = 1.0
        return U
    scale = (n_in - 1) / (n_out - 1)
    for i in range(n_out):
        src = i * scale
        i0 = min(int(np.floor(src)), n_in - 1)
        i1 = min(i0 + 1, n_in - 1)
        f = src - i0
        U[i, i0] += 1.0 - f
        U[i, i1] += f
    return U


def _upsample_matrix(H, W):
    U2 = np.kron(_bilinear_1d(H, 2 * H), _bilinear_1d(W, 2 * W))   # (N2, N)
    return np.ascontiguousarray(U2.T)                               # (N, N2)


def _ln_group_matrix(N, C):
    # block-diagonal averaging over groups of C consecutive spatial positions
    Q = np.zeros((N, N), np.float32)
    for g in range(N // C):
        Q[g * C:(g + 1) * C, g * C:(g + 1) * C] = 1.0 / C
    return Q


def _w_masks(W, offsets, N):
    # mask[k, n] = 1 iff shifting position n by offsets[k] stays inside its row
    wi = np.arange(N) % W
    m = np.zeros((len(offsets), N), np.float32)
    for k, d in enumerate(offsets):
        m[k] = ((wi + d >= 0) & (wi + d < W)).astype(np.float32)
    return m


# ------------------------------ parameters & wrapper ------------------------------

def init_params(key, C):
    ks = jax.random.split(key, 24)

    def w(k, shape, scale=0.1):
        return (scale * jax.random.normal(k, shape)).astype(jnp.float32)

    p = {}
    # liner_l : nn.Linear(C, C) — (out, in) used directly in channels-first layout
    p['liner_l_w'] = w(ks[0], (C, C))
    p['liner_l_b'] = w(ks[1], (C, 1))
    # sc_h : depthwise Conv2d (C,1,5,1) -> GELU -> Conv2d 1x1 -> BN
    sch_dw = w(ks[2], (C, 1, 5, 1))
    p['sch_dw_w'] = sch_dw[:, 0, :, 0]                    # (C, 5)
    p['sch_dw_b'] = w(ks[3], (C, 1))
    p['sch_pw_w'] = w(ks[4], (C, C))
    p['sch_pw_b'] = w(ks[5], (C, 1))
    p['sch_bn_g'] = jnp.ones((C, 1), jnp.float32)
    p['sch_bn_b'] = jnp.zeros((C, 1), jnp.float32)
    # sc_v : depthwise Conv2d (C,1,1,5) -> GELU -> Conv2d 1x1 -> BN
    scv_dw = w(ks[6], (C, 1, 1, 5))
    p['scv_dw_w'] = scv_dw[:, 0, 0, :]                    # (C, 5)
    p['scv_dw_b'] = w(ks[7], (C, 1))
    p['scv_pw_w'] = w(ks[8], (C, C))
    p['scv_pw_b'] = w(ks[9], (C, 1))
    p['scv_bn_g'] = jnp.ones((C, 1), jnp.float32)
    p['scv_bn_b'] = jnp.zeros((C, 1), jnp.float32)
    # conv_h : Conv2d 1x1
    p['convh_w'] = w(ks[10], (C, C))
    p['convh_b'] = w(ks[11], (C, 1))
    # dynamic_attention (shared for both calls)
    p['wq'] = w(ks[12], (C, C)); p['bq'] = w(ks[13], (C, 1))
    p['wk'] = w(ks[14], (C, C)); p['bk'] = w(ks[15], (C, 1))
    p['wv'] = w(ks[16], (C, C)); p['bv'] = w(ks[17], (C, 1))
    # norm : nn.LayerNorm(C) (PyTorch default init)
    p['ln_g'] = jnp.ones((C,), jnp.float32)
    p['ln_b'] = jnp.zeros((C,), jnp.float32)
    # dsc : depthwise Conv2d 3x3 -> GELU -> Conv2d 1x1 -> BN
    dsc_dw = w(ks[18], (C, 1, 3, 3))
    p['dsc_dw_w'] = dsc_dw[:, 0, :, :].reshape(C, 9)      # (C, 9) row-major (kh, kw)
    p['dsc_dw_b'] = w(ks[19], (C, 1))
    p['dsc_pw_w'] = w(ks[20], (C, C))
    p['dsc_pw_b'] = w(ks[21], (C, 1))
    p['dsc_bn_g'] = jnp.ones((C, 1), jnp.float32)
    p['dsc_bn_b'] = jnp.zeros((C, 1), jnp.float32)
    return p


def een_forward(x_nchw, p):
    B, C, H0, W0 = x_nchw.shape
    assert H0 % 2 == 0 and W0 % 2 == 0
    H, W = H0 // 2, W0 // 2
    N = H * W
    H2, W2 = 2 * H, 2 * W
    N2 = H2 * W2
    BC = B * C
    # TODO(synk): the raw-memory LayerNorm grouping assumes (H*W) % C == 0.
    assert N % C == 0, "fused LayerNorm requires (H*W) % C == 0"

    # compile-time constant spatial operators
    pool_mat = jnp.asarray(_pool_matrix(H0, W0))          # (H0*W0, N)
    up_mat = jnp.asarray(_upsample_matrix(H, W))          # (N, N2)
    qmat = jnp.asarray(_ln_group_matrix(N, C))            # (N, N)
    maska = jnp.asarray(_w_masks(W, (-2, -1, 0, 1, 2), N))
    maskb = jnp.asarray(_w_masks(W2, (-1, 0, 1), N2))

    # LayerNorm gamma/beta laid out per lane (position within each group of C)
    lng_row = jnp.tile(p['ln_g'], N // C).reshape(1, N)
    lnb_row = jnp.tile(p['ln_b'], N // C).reshape(1, N)

    # NCHW raw memory is exactly the channels-first (B*C, H0*W0) matrix — free view
    x2d = x_nchw.reshape(BC, H0 * W0)

    vmem = pl.BlockSpec(memory_space=pltpu.MemorySpace.VMEM)
    out2d = pl.pallas_call(
        _make_kernel(B, C, H, W),
        out_shape=jax.ShapeDtypeStruct((BC, N2), jnp.float32),
        in_specs=[vmem] * 36,
        out_specs=vmem,
        scratch_shapes=[
            pltpu.VMEM((BC, (H + 4) * W), jnp.float32),          # (5,1)/(1,5) conv pad
            pltpu.VMEM((BC, (H2 + 2) * W2 + 2), jnp.float32),    # 3x3 conv pad (+corner guards)
        ],
    )(x2d, pool_mat,
      p['liner_l_w'], p['liner_l_b'],
      p['sch_dw_w'], p['sch_dw_b'], p['sch_pw_w'], p['sch_pw_b'], p['sch_bn_g'], p['sch_bn_b'],
      p['scv_dw_w'], p['scv_dw_b'], p['scv_pw_w'], p['scv_pw_b'], p['scv_bn_g'], p['scv_bn_b'],
      p['convh_w'], p['convh_b'],
      p['wq'], p['bq'], p['wk'], p['bk'], p['wv'], p['bv'],
      lng_row, lnb_row, qmat, up_mat, maska,
      p['dsc_dw_w'], p['dsc_dw_b'], p['dsc_pw_w'], p['dsc_pw_b'], p['dsc_bn_g'], p['dsc_bn_b'],
      maskb)

    return out2d.reshape(B, C, H2, W2)                    # NCHW, (B, C, H0, W0)


if __name__ == "__main__":
    key = jax.random.PRNGKey(0)
    kx, kp = jax.random.split(key)
    B, C, H0, W0 = 2, 4, 16, 16
    x = jax.random.normal(kx, (B, C, H0, W0), dtype=jnp.float32)
    params = init_params(kp, C)

    fwd = jax.jit(een_forward)
    out = jax.block_until_ready(fwd(x, params))
    assert out.shape == (B, C, H0, W0), out.shape
    assert bool(jnp.all(jnp.isfinite(out)))
    print("KERNEL_OK")
</pallas_src>

<mosaic_0001>
module attributes {stable_mosaic.version = 11 : i64} {
  func.func @kernel(%arg0: memref<8x256xf32, #tpu.memory_space<vmem>>, %arg1: memref<256x64xf32, #tpu.memory_space<vmem>>, %arg2: memref<4x4xf32, #tpu.memory_space<vmem>>, %arg3: memref<4x1xf32, #tpu.memory_space<vmem>>, %arg4: memref<4x5xf32, #tpu.memory_space<vmem>>, %arg5: memref<4x1xf32, #tpu.memory_space<vmem>>, %arg6: memref<4x4xf32, #tpu.memory_space<vmem>>, %arg7: memref<4x1xf32, #tpu.memory_space<vmem>>, %arg8: memref<4x1xf32, #tpu.memory_space<vmem>>, %arg9: memref<4x1xf32, #tpu.memory_space<vmem>>, %arg10: memref<4x5xf32, #tpu.memory_space<vmem>>, %arg11: memref<4x1xf32, #tpu.memory_space<vmem>>, %arg12: memref<4x4xf32, #tpu.memory_space<vmem>>, %arg13: memref<4x1xf32, #tpu.memory_space<vmem>>, %arg14: memref<4x1xf32, #tpu.memory_space<vmem>>, %arg15: memref<4x1xf32, #tpu.memory_space<vmem>>, %arg16: memref<4x4xf32, #tpu.memory_space<vmem>>, %arg17: memref<4x1xf32, #tpu.memory_space<vmem>>, %arg18: memref<4x4xf32, #tpu.memory_space<vmem>>, %arg19: memref<4x1xf32, #tpu.memory_space<vmem>>, %arg20: memref<4x4xf32, #tpu.memory_space<vmem>>, %arg21: memref<4x1xf32, #tpu.memory_space<vmem>>, %arg22: memref<4x4xf32, #tpu.memory_space<vmem>>, %arg23: memref<4x1xf32, #tpu.memory_space<vmem>>, %arg24: memref<1x64xf32, #tpu.memory_space<vmem>>, %arg25: memref<1x64xf32, #tpu.memory_space<vmem>>, %arg26: memref<64x64xf32, #tpu.memory_space<vmem>>, %arg27: memref<64x256xf32, #tpu.memory_space<vmem>>, %arg28: memref<5x64xf32, #tpu.memory_space<vmem>>, %arg29: memref<4x9xf32, #tpu.memory_space<vmem>>, %arg30: memref<4x1xf32, #tpu.memory_space<vmem>>, %arg31: memref<4x4xf32, #tpu.memory_space<vmem>>, %arg32: memref<4x1xf32, #tpu.memory_space<vmem>>, %arg33: memref<4x1xf32, #tpu.memory_space<vmem>>, %arg34: memref<4x1xf32, #tpu.memory_space<vmem>>, %arg35: memref<3x256xf32, #tpu.memory_space<vmem>>, %arg36: memref<8x256xf32, #tpu.memory_space<vmem>>, %arg37: memref<8x96xf32, #tpu.memory_space<vmem>>, %arg38: memref<8x290xf32, #tpu.memory_space<vmem>>) attributes {dimension_semantics = [], scalar_prefetch = 0 : i64, scratch_operands = 2 : i64, tpu.core_type = #tpu.core_type<tc>} {
    %c0 = arith.constant 0 : index
    %c0_0 = arith.constant 0 : index
    %0 = vector.load %arg0[%c0, %c0_0] : memref<8x256xf32, #tpu.memory_space<vmem>>, vector<8x256xf32>
    %c0_1 = arith.constant 0 : index
    %c0_2 = arith.constant 0 : index
    %1 = vector.load %arg1[%c0_1, %c0_2] : memref<256x64xf32, #tpu.memory_space<vmem>>, vector<256x64xf32>
    %cst = arith.constant dense<0.000000e+00> : vector<8x64xf32>
    %2 = tpu.matmul %0, %1, %cst {dimension_numbers = #tpu.dot_dimension_numbers<[1], [0], [0], [1], [0, 0, 1, 1], [], []>} : vector<8x256xf32>, vector<256x64xf32>, vector<8x64xf32> -> vector<8x64xf32>
    %cst_3 = arith.constant dense<0.000000e+00> : vector<8xf32>
    %3 = vector.multi_reduction <add>, %2, %cst_3 [1] : vector<8x64xf32> to vector<8xf32>
    %4 = vector.shape_cast %3 : vector<8xf32> to vector<8x1xf32>
    %cst_4 = arith.constant 6.400000e+01 : f32
    %5 = vector.broadcast %cst_4 : f32 to vector<8x1xf32>
    %6 = arith.divf %4, %5 : vector<8x1xf32>
    %7 = vector.broadcast %6 : vector<8x1xf32> to vector<8x64xf32>
    %8 = arith.mulf %2, %7 : vector<8x64xf32>
    %c0_5 = arith.constant 0 : index
    %c0_6 = arith.constant 0 : index
    %9 = vector.load %arg2[%c0_5, %c0_6] : memref<4x4xf32, #tpu.memory_space<vmem>>, vector<4x4xf32>
    %c0_7 = arith.constant 0 : index
    %c0_8 = arith.constant 0 : index
    %10 = vector.load %arg3[%c0_7, %c0_8] : memref<4x1xf32, #tpu.memory_space<vmem>>, vector<4x1xf32>
    %11 = vector.extract_strided_slice %8 {offsets = [0, 0], sizes = [4, 64], strides = [1, 1]} : vector<8x64xf32> to vector<4x64xf32>
    %cst_9 = arith.constant dense<0.000000e+00> : vector<4x64xf32>
    %12 = tpu.matmul %9, %11, %cst_9 {dimension_numbers = #tpu.dot_dimension_numbers<[1], [0], [0], [1], [0, 0, 1, 1], [], []>} : vector<4x4xf32>, vector<4x64xf32>, vector<4x64xf32> -> vector<4x64xf32>
    %13 = vector.broadcast %10 : vector<4x1xf32> to vector<4x64xf32>
    %14 = arith.addf %12, %13 : vector<4x64xf32>
    %15 = vector.extract_strided_slice %8 {offsets = [4, 0], sizes = [4, 64], strides = [1, 1]} : vector<8x64xf32> to vector<4x64xf32>
    %cst_10 = arith.constant dense<0.000000e+00> : vector<4x64xf32>
    %16 = tpu.matmul %9, %15, %cst_10 {dimension_numbers = #tpu.dot_dimension_numbers<[1], [0], [0], [1], [0, 0, 1, 1], [], []>} : vector<4x4xf32>, vector<4x64xf32>, vector<4x64xf32> -> vector<4x64xf32>
    %17 = vector.broadcast %10 : vector<4x1xf32> to vector<4x64xf32>
    %18 = arith.addf %16, %17 : vector<4x64xf32>
    %19 = tpu.concatenate %14, %18 in 0 : vector<4x64xf32>, vector<4x64xf32> -> vector<8x64xf32>
    %cst_11 = arith.constant 0.000000e+00 : f32
    %20 = vector.broadcast %cst_11 : f32 to vector<8x96xf32>
    %c0_12 = arith.constant 0 : index
    %c0_13 = arith.constant 0 : index
    %21 = vector.load %arg37[%c0_12, %c0_13] : memref<8x96xf32, #tpu.memory_space<vmem>>, vector<8x96xf32>
    tpu.vector_store %arg37[%c0_12, %c0_13], %20 {strides = array<i32>} : memref<8x96xf32, #tpu.memory_space<vmem>>, vector<8x96xf32>,
    %c0_14 = arith.constant 0 : index
    %c16 = arith.constant 16 : index
    %22 = vector.load %arg37[%c0_14, %c16] : memref<8x96xf32, #tpu.memory_space<vmem>>, vector<8x64xf32>
    tpu.vector_store %arg37[%c0_14, %c16], %2 {strides = array<i32>} : memref<8x96xf32, #tpu.memory_space<vmem>>, vector<8x64xf32>,
    %c0_15 = arith.constant 0 : index
    %c0_16 = arith.constant 0 : index
    %23 = vector.load %arg4[%c0_15, %c0_16] : memref<4x5xf32, #tpu.memory_space<vmem>>, vector<4x5xf32>
    %24 = tpu.concatenate %23, %23 in 0 : vector<4x5xf32>, vector<4x5xf32> -> vector<8x5xf32>
    %c0_17 = arith.constant 0 : index
    %c0_18 = arith.constant 0 : index
    %25 = vector.load %arg10[%c0_17, %c0_18] : memref<4x5xf32, #tpu.memory_space<vmem>>, vector<4x5xf32>
    %26 = tpu.concatenate %25, %25 in 0 : vector<4x5xf32>, vector<4x5xf32> -> vector<8x5xf32>
    %c0_19 = arith.constant 0 : index
    %c0_20 = arith.constant 0 : index
    %27 = vector.load %arg28[%c0_19, %c0_20] : memref<5x64xf32, #tpu.memory_space<vmem>>, vector<5x64xf32>
    %cst_21 = arith.constant 0.000000e+00 : f32
    %28 = vector.broadcast %cst_21 : f32 to vector<8x64xf32>
    %cst_22 = arith.constant 0.000000e+00 : f32
    %29 = vector.broadcast %cst_22 : f32 to vector<8x64xf32>
    %30 = vector.extract_strided_slice %24 {offsets = [0, 0], sizes = [8, 1], strides = [1, 1]} : vector<8x5xf32> to vector<8x1xf32>
    %c0_23 = arith.constant 0 : index
    %c0_24 = arith.constant 0 : index
    %31 = vector.load %arg37[%c0_23, %c0_24] : memref<8x96xf32, #tpu.memory_space<vmem>>, vector<8x64xf32>
    %32 = vector.broadcast %30 : vector<8x1xf32> to vector<8x64xf32>
    %33 = arith.mulf %32, %31 : vector<8x64xf32>
    %34 = arith.addf %28, %33 : vector<8x64xf32>
    %c0_25 = arith.constant 0 : index
    %c14 = arith.constant 14 : index
    %35 = vector.load %arg37[%c0_25, %c14] : memref<8x96xf32, #tpu.memory_space<vmem>>, vector<8x64xf32>
    %36 = vector.extract_strided_slice %27 {offsets = [0, 0], sizes = [1, 64], strides = [1, 1]} : vector<5x64xf32> to vector<1x64xf32>
    %37 = vector.broadcast %36 : vector<1x64xf32> to vector<8x64xf32>
    %38 = arith.mulf %35, %37 : vector<8x64xf32>
    %39 = vector.extract_strided_slice %26 {offsets = [0, 0], sizes = [8, 1], strides = [1, 1]} : vector<8x5xf32> to vector<8x1xf32>
    %40 = vector.broadcast %39 : vector<8x1xf32> to vector<8x64xf32>
    %41 = arith.mulf %40, %38 : vector<8x64xf32>
    %42 = arith.addf %29, %41 : vector<8x64xf32>
    %43 = vector.extract_strided_slice %24 {offsets = [0, 1], sizes = [8, 1], strides = [1, 1]} : vector<8x5xf32> to vector<8x1xf32>
    %c0_26 = arith.constant 0 : index
    %c8 = arith.constant 8 : index
    %44 = vector.load %arg37[%c0_26, %c8] : memref<8x96xf32, #tpu.memory_space<vmem>>, vector<8x64xf32>
    %45 = vector.broadcast %43 : vector<8x1xf32> to vector<8x64xf32>
    %46 = arith.mulf %45, %44 : vector<8x64xf32>
    %47 = arith.addf %34, %46 : vector<8x64xf32>
    %c0_27 = arith.constant 0 : index
    %c15 = arith.constant 15 : index
    %48 = vector.load %arg37[%c0_27, %c15] : memref<8x96xf32, #tpu.memory_space<vmem>>, vector<8x64xf32>
    %49 = vector.extract_strided_slice %27 {offsets = [1, 0], sizes = [1, 64], strides = [1, 1]} : vector<5x64xf32> to vector<1x64xf32>
    %50 = vector.broadcast %49 : vector<1x64xf32> to vector<8x64xf32>
    %51 = arith.mulf %48, %50 : vector<8x64xf32>
    %52 = vector.extract_strided_slice %26 {offsets = [0, 1], sizes = [8, 1], strides = [1, 1]} : vector<8x5xf32> to vector<8x1xf32>
    %53 = vector.broadcast %52 : vector<8x1xf32> to vector<8x64xf32>
    %54 = arith.mulf %53, %51 : vector<8x64xf32>
    %55 = arith.addf %42, %54 : vector<8x64xf32>
    %56 = vector.extract_strided_slice %24 {offsets = [0, 2], sizes = [8, 1], strides = [1, 1]} : vector<8x5xf32> to vector<8x1xf32>
    %c0_28 = arith.constant 0 : index
    %c16_29 = arith.constant 16 : index
    %57 = vector.load %arg37[%c0_28, %c16_29] : memref<8x96xf32, #tpu.memory_space<vmem>>, vector<8x64xf32>
    %58 = vector.broadcast %56 : vector<8x1xf32> to vector<8x64xf32>
    %59 = arith.mulf %58, %57 : vector<8x64xf32>
    %60 = arith.addf %47, %59 : vector<8x64xf32>
    %c0_30 = arith.constant 0 : index
    %c16_31 = arith.constant 16 : index
    %61 = vector.load %arg37[%c0_30, %c16_31] : memref<8x96xf32, #tpu.memory_space<vmem>>, vector<8x64xf32>
    %62 = vector.extract_strided_slice %26 {offsets = [0, 2], sizes = [8, 1], strides = [1, 1]} : vector<8x5xf32> to vector<8x1xf32>
    %63 = vector.broadcast %62 : vector<8x1xf32> to vector<8x64xf32>
    %64 = arith.mulf %63, %61 : vector<8x64xf32>
    %65 = arith.addf %55, %64 : vector<8x64xf32>
    %66 = vector.extract_strided_slice %24 {offsets = [0, 3], sizes = [8, 1], strides = [1, 1]} : vector<8x5xf32> to vector<8x1xf32>
    %c0_32 = arith.constant 0 : index
    %c24 = arith.constant 24 : index
    %67 = vector.load %arg37[%c0_32, %c24] : memref<8x96xf32, #tpu.memory_space<vmem>>, vector<8x64xf32>
    %68 = vector.broadcast %66 : vector<8x1xf32> to vector<8x64xf32>
    %69 = arith.mulf %68, %67 : vector<8x64xf32>
    %70 = arith.addf %60, %69 : vector<8x64xf32>
    %c0_33 = arith.constant 0 : index
    %c17 = arith.constant 17 : index
    %71 = vector.load %arg37[%c0_33, %c17] : memref<8x96xf32, #tpu.memory_space<vmem>>, vector<8x64xf32>
    %72 = vector.extract_strided_slice %27 {offsets = [3, 0], sizes = [1, 64], strides = [1, 1]} : vector<5x64xf32> to vector<1x64xf32>
    %73 = vector.broadcast %72 : vector<1x64xf32> to vector<8x64xf32>
    %74 = arith.mulf %71, %73 : vector<8x64xf32>
    %75 = vector.extract_strided_slice %26 {offsets = [0, 3], sizes = [8, 1], strides = [1, 1]} : vector<8x5xf32> to vector<8x1xf32>
    %76 = vector.broadcast %75 : vector<8x1xf32> to vector<8x64xf32>
    %77 = arith.mulf %76, %74 : vector<8x64xf32>
    %78 = arith.addf %65, %77 : vector<8x64xf32>
    %79 = vector.extract_strided_slice %24 {offsets = [0, 4], sizes = [8, 1], strides = [1, 1]} : vector<8x5xf32> to vector<8x1xf32>
    %c0_34 = arith.constant 0 : index
    %c32 = arith.constant 32 : index
    %80 = vector.load %arg37[%c0_34, %c32] : memref<8x96xf32, #tpu.memory_space<vmem>>, vector<8x64xf32>
    %81 = vector.broadcast %79 : vector<8x1xf32> to vector<8x64xf32>
    %82 = arith.mulf %81, %80 : vector<8x64xf32>
    %83 = arith.addf %70, %82 : vector<8x64xf32>
    %c0_35 = arith.constant 0 : index
    %c18 = arith.constant 18 : index
    %84 = vector.load %arg37[%c0_35, %c18] : memref<8x96xf32, #tpu.memory_space<vmem>>, vector<8x64xf32>
    %85 = vector.extract_strided_slice %27 {offsets = [4, 0], sizes = [1, 64], strides = [1, 1]} : vector<5x64xf32> to vector<1x64xf32>
    %86 = vector.broadcast %85 : vector<1x64xf32> to vector<8x64xf32>
    %87 = arith.mulf %84, %86 : vector<8x64xf32>
    %88 = vector.extract_strided_slice %26 {offsets = [0, 4], sizes = [8, 1], strides = [1, 1]} : vector<8x5xf32> to vector<8x1xf32>
    %89 = vector.broadcast %88 : vector<8x1xf32> to vector<8x64xf32>
    %90 = arith.mulf %89, %87 : vector<8x64xf32>
    %91 = arith.addf %78, %90 : vector<8x64xf32>
    %c0_36 = arith.constant 0 : index
    %c0_37 = arith.constant 0 : index
    %92 = vector.load %arg5[%c0_36, %c0_37] : memref<4x1xf32, #tpu.memory_space<vmem>>, vector<4x1xf32>
    %93 = tpu.concatenate %92, %92 in 0 : vector<4x1xf32>, vector<4x1xf32> -> vector<8x1xf32>
    %94 = vector.broadcast %93 : vector<8x1xf32> to vector<8x64xf32>
    %95 = arith.addf %83, %94 : vector<8x64xf32>
    %cst_38 = arith.constant 5.000000e-01 : f32
    %96 = vector.broadcast %cst_38 : f32 to vector<8x64xf32>
    %97 = arith.mulf %96, %95 : vector<8x64xf32>
    %cst_39 = arith.constant 0.707106769 : f32
    %98 = vector.broadcast %cst_39 : f32 to vector<8x64xf32>
    %99 = arith.mulf %95, %98 : vector<8x64xf32>
    %cst_40 = arith.constant 0.000000e+00 : f32
    %100 = vector.broadcast %cst_40 : f32 to vector<8x64xf32>
    %101 = arith.cmpf oge, %99, %100 : vector<8x64xf32>
    %cst_41 = arith.constant 1.000000e+00 : f32
    %cst_42 = arith.constant -1.000000e+00 : f32
    %102 = vector.broadcast %cst_41 : f32 to vector<8x64xf32>
    %103 = vector.broadcast %cst_42 : f32 to vector<8x64xf32>
    %104 = arith.select %101, %102, %103 : vector<8x64xi1>, vector<8x64xf32>
    %105 = arith.mulf %99, %104 : vector<8x64xf32>
    %cst_43 = arith.constant 0.327591091 : f32
    %106 = vector.broadcast %cst_43 : f32 to vector<8x64xf32>
    %107 = arith.mulf %106, %105 : vector<8x64xf32>
    %cst_44 = arith.constant 1.000000e+00 : f32
    %108 = vector.broadcast %cst_44 : f32 to vector<8x64xf32>
    %109 = arith.addf %108, %107 : vector<8x64xf32>
    %cst_45 = arith.constant 1.000000e+00 : f32
    %110 = vector.broadcast %cst_45 : f32 to vector<8x64xf32>
    %111 = arith.divf %110, %109 : vector<8x64xf32>
    %cst_46 = arith.constant 1.06140542 : f32
    %112 = vector.broadcast %cst_46 : f32 to vector<8x64xf32>
    %113 = arith.mulf %112, %111 : vector<8x64xf32>
    %cst_47 = arith.constant -1.45315206 : f32
    %114 = vector.broadcast %cst_47 : f32 to vector<8x64xf32>
    %115 = arith.addf %113, %114 : vector<8x64xf32>
    %116 = arith.mulf %115, %111 : vector<8x64xf32>
    %cst_48 = arith.constant 1.42141378 : f32
    %117 = vector.broadcast %cst_48 : f32 to vector<8x64xf32>
    %118 = arith.addf %116, %117 : vector<8x64xf32>
    %119 = arith.mulf %118, %111 : vector<8x64xf32>
    %cst_49 = arith.constant -0.284496725 : f32
    %120 = vector.broadcast %cst_49 : f32 to vector<8x64xf32>
    %121 = arith.addf %119, %120 : vector<8x64xf32>
    %122 = arith.mulf %121, %111 : vector<8x64xf32>
    %cst_50 = arith.constant 0.254829586 : f32
    %123 = vector.broadcast %cst_50 : f32 to vector<8x64xf32>
    %124 = arith.addf %122, %123 : vector<8x64xf32>
    %125 = arith.mulf %124, %111 : vector<8x64xf32>
    %cst_51 = arith.constant 0.000000e+00 : f32
    %126 = vector.broadcast %cst_51 : f32 to vector<8x64xf32>
    %127 = arith.subf %126, %105 : vector<8x64xf32>
    %128 = arith.mulf %127, %105 : vector<8x64xf32>
    %129 = math.exp %128 : vector<8x64xf32>
    %130 = arith.mulf %125, %129 : vector<8x64xf32>
    %cst_52 = arith.constant 1.000000e+00 : f32
    %131 = vector.broadcast %cst_52 : f32 to vector<8x64xf32>
    %132 = arith.subf %131, %130 : vector<8x64xf32>
    %133 = arith.mulf %104, %132 : vector<8x64xf32>
    %cst_53 = arith.constant 1.000000e+00 : f32
    %134 = vector.broadcast %cst_53 : f32 to vector<8x64xf32>
    %135 = arith.addf %134, %133 : vector<8x64xf32>
    %136 = arith.mulf %97, %135 : vector<8x64xf32>
    %c0_54 = arith.constant 0 : index
    %c0_55 = arith.constant 0 : index
    %137 = vector.load %arg11[%c0_54, %c0_55] : memref<4x1xf32, #tpu.memory_space<vmem>>, vector<4x1xf32>
    %138 = tpu.concatenate %137, %137 in 0 : vector<4x1xf32>, vector<4x1xf32> -> vector<8x1xf32>
    %139 = vector.broadcast %138 : vector<8x1xf32> to vector<8x64xf32>
    %140 = arith.addf %91, %139 : vector<8x64xf32>
    %cst_56 = arith.constant 5.000000e-01 : f32
    %141 = vector.broadcast %cst_56 : f32 to vector<8x64xf32>
    %142 = arith.mulf %141, %140 : vector<8x64xf32>
    %cst_57 = arith.constant 0.707106769 : f32
    %143 = vector.broadcast %cst_57 : f32 to vector<8x64xf32>
    %144 = arith.mulf %140, %143 : vector<8x64xf32>
    %cst_58 = arith.constant 0.000000e+00 : f32
    %145 = vector.broadcast %cst_58 : f32 to vector<8x64xf32>
    %146 = arith.cmpf oge, %144, %145 : vector<8x64xf32>
    %cst_59 = arith.constant 1.000000e+00 : f32
    %cst_60 = arith.constant -1.000000e+00 : f32
    %147 = vector.broadcast %cst_59 : f32 to vector<8x64xf32>
    %148 = vector.broadcast %cst_60 : f32 to vector<8x64xf32>
    %149 = arith.select %146, %147, %148 : vector<8x64xi1>, vector<8x64xf32>
    %150 = arith.mulf %144, %149 : vector<8x64xf32>
    %cst_61 = arith.constant 0.327591091 : f32
    %151 = vector.broadcast %cst_61 : f32 to vector<8x64xf32>
    %152 = arith.mulf %151, %150 : vector<8x64xf32>
    %cst_62 = arith.constant 1.000000e+00 : f32
    %153 = vector.broadcast %cst_62 : f32 to vector<8x64xf32>
    %154 = arith.addf %153, %152 : vector<8x64xf32>
    %cst_63 = arith.constant 1.000000e+00 : f32
    %155 = vector.broadcast %cst_63 : f32 to vector<8x64xf32>
    %156 = arith.divf %155, %154 : vector<8x64xf32>
    %cst_64 = arith.constant 1.06140542 : f32
    %157 = vector.broadcast %cst_64 : f32 to vector<8x64xf32>
    %158 = arith.mulf %157, %156 : vector<8x64xf32>
    %cst_65 = arith.constant -1.45315206 : f32
    %159 = vector.broadcast %cst_65 : f32 to vector<8x64xf32>
    %160 = arith.addf %158, %159 : vector<8x64xf32>
    %161 = arith.mulf %160, %156 : vector<8x64xf32>
    %cst_66 = arith.constant 1.42141378 : f32
    %162 = vector.broadcast %cst_66 : f32 to vector<8x64xf32>
    %163 = arith.addf %161, %162 : vector<8x64xf32>
    %164 = arith.mulf %163, %156 : vector<8x64xf32>
    %cst_67 = arith.constant -0.284496725 : f32
    %165 = vector.broadcast %cst_67 : f32 to vector<8x64xf32>
    %166 = arith.addf %164, %165 : vector<8x64xf32>
    %167 = arith.mulf %166, %156 : vector<8x64xf32>
    %cst_68 = arith.constant 0.254829586 : f32
    %168 = vector.broadcast %cst_68 : f32 to vector<8x64xf32>
    %169 = arith.addf %167, %168 : vector<8x64xf32>
    %170 = arith.mulf %169, %156 : vector<8x64xf32>
    %cst_69 = arith.constant 0.000000e+00 : f32
    %171 = vector.broadcast %cst_69 : f32 to vector<8x64xf32>
    %172 = arith.subf %171, %150 : vector<8x64xf32>
    %173 = arith.mulf %172, %150 : vector<8x64xf32>
    %174 = math.exp %173 : vector<8x64xf32>
    %175 = arith.mulf %170, %174 : vector<8x64xf32>
    %cst_70 = arith.constant 1.000000e+00 : f32
    %176 = vector.broadcast %cst_70 : f32 to vector<8x64xf32>
    %177 = arith.subf %176, %175 : vector<8x64xf32>
    %178 = arith.mulf %149, %177 : vector<8x64xf32>
    %cst_71 = arith.constant 1.000000e+00 : f32
    %179 = vector.broadcast %cst_71 : f32 to vector<8x64xf32>
    %180 = arith.addf %179, %178 : vector<8x64xf32>
    %181 = arith.mulf %142, %180 : vector<8x64xf32>
    %c0_72 = arith.constant 0 : index
    %c0_73 = arith.constant 0 : index
    %182 = vector.load %arg6[%c0_72, %c0_73] : memref<4x4xf32, #tpu.memory_space<vmem>>, vector<4x4xf32>
    %c0_74 = arith.constant 0 : index
    %c0_75 = arith.constant 0 : index
    %183 = vector.load %arg7[%c0_74, %c0_75] : memref<4x1xf32, #tpu.memory_space<vmem>>, vector<4x1xf32>
    %184 = vector.extract_strided_slice %136 {offsets = [0, 0], sizes = [4, 64], strides = [1, 1]} : vector<8x64xf32> to vector<4x64xf32>
    %cst_76 = arith.constant dense<0.000000e+00> : vector<4x64xf32>
    %185 = tpu.matmul %182, %184, %cst_76 {dimension_numbers = #tpu.dot_dimension_numbers<[1], [0], [0], [1], [0, 0, 1, 1], [], []>} : vector<4x4xf32>, vector<4x64xf32>, vector<4x64xf32> -> vector<4x64xf32>
    %186 = vector.broadcast %183 : vector<4x1xf32> to vector<4x64xf32>
    %187 = arith.addf %185, %186 : vector<4x64xf32>
    %188 = vector.extract_strided_slice %136 {offsets = [4, 0], sizes = [4, 64], strides = [1, 1]} : vector<8x64xf32> to vector<4x64xf32>
    %cst_77 = arith.constant dense<0.000000e+00> : vector<4x64xf32>
    %189 = tpu.matmul %182, %188, %cst_77 {dimension_numbers = #tpu.dot_dimension_numbers<[1], [0], [0], [1], [0, 0, 1, 1], [], []>} : vector<4x4xf32>, vector<4x64xf32>, vector<4x64xf32> -> vector<4x64xf32>
    %190 = vector.broadcast %183 : vector<4x1xf32> to vector<4x64xf32>
    %191 = arith.addf %189, %190 : vector<4x64xf32>
    %192 = tpu.concatenate %187, %191 in 0 : vector<4x64xf32>, vector<4x64xf32> -> vector<8x64xf32>
    %c0_78 = arith.constant 0 : index
    %c0_79 = arith.constant 0 : index
    %193 = vector.load %arg8[%c0_78, %c0_79] : memref<4x1xf32, #tpu.memory_space<vmem>>, vector<4x1xf32>
    %c0_80 = arith.constant 0 : index
    %c0_81 = arith.constant 0 : index
    %194 = vector.load %arg9[%c0_80, %c0_81] : memref<4x1xf32, #tpu.memory_space<vmem>>, vector<4x1xf32>
    %cst_82 = arith.constant dense<0.000000e+00> : vector<8xf32>
    %195 = vector.multi_reduction <add>, %192, %cst_82 [1] : vector<8x64xf32> to vector<8xf32>
    %196 = vector.shape_cast %195 : vector<8xf32> to vector<8x1xf32>
    %197 = arith.mulf %192, %192 : vector<8x64xf32>
    %cst_83 = arith.constant dense<0.000000e+00> : vector<8xf32>
    %198 = vector.multi_reduction <add>, %197, %cst_83 [1] : vector<8x64xf32> to vector<8xf32>
    %199 = vector.shape_cast %198 : vector<8xf32> to vector<8x1xf32>
    %200 = vector.extract_strided_slice %196 {offsets = [0, 0], sizes = [4, 1], strides = [1, 1]} : vector<8x1xf32> to vector<4x1xf32>
    %201 = vector.extract_strided_slice %199 {offsets = [0, 0], sizes = [4, 1], strides = [1, 1]} : vector<8x1xf32> to vector<4x1xf32>
    %202 = vector.extract_strided_slice %196 {offsets = [4, 0], sizes = [4, 1], strides = [1, 1]} : vector<8x1xf32> to vector<4x1xf32>
    %203 = arith.addf %200, %202 : vector<4x1xf32>
    %204 = vector.extract_strided_slice %199 {offsets = [4, 0], sizes = [4, 1], strides = [1, 1]} : vector<8x1xf32> to vector<4x1xf32>
    %205 = arith.addf %201, %204 : vector<4x1xf32>
    %cst_84 = arith.constant 7.812500e-03 : f32
    %206 = vector.broadcast %cst_84 : f32 to vector<4x1xf32>
    %207 = arith.mulf %203, %206 : vector<4x1xf32>
    %cst_85 = arith.constant 7.812500e-03 : f32
    %208 = vector.broadcast %cst_85 : f32 to vector<4x1xf32>
    %209 = arith.mulf %205, %208 : vector<4x1xf32>
    %210 = arith.mulf %207, %207 : vector<4x1xf32>
    %211 = arith.subf %209, %210 : vector<4x1xf32>
    %cst_86 = arith.constant 0.000000e+00 : f32
    %212 = vector.broadcast %cst_86 : f32 to vector<4x1xf32>
    %213 = arith.maximumf %211, %212 : vector<4x1xf32>
    %cst_87 = arith.constant 9.99999974E-6 : f32
    %214 = vector.broadcast %cst_87 : f32 to vector<4x1xf32>
    %215 = arith.addf %213, %214 : vector<4x1xf32>
    %216 = math.rsqrt %215 : vector<4x1xf32>
    %217 = arith.mulf %193, %216 : vector<4x1xf32>
    %218 = arith.mulf %207, %217 : vector<4x1xf32>
    %219 = arith.subf %194, %218 : vector<4x1xf32>
    %220 = tpu.concatenate %217, %217 in 0 : vector<4x1xf32>, vector<4x1xf32> -> vector<8x1xf32>
    %221 = vector.broadcast %220 : vector<8x1xf32> to vector<8x64xf32>
    %222 = arith.mulf %192, %221 : vector<8x64xf32>
    %223 = tpu.concatenate %219, %219 in 0 : vector<4x1xf32>, vector<4x1xf32> -> vector<8x1xf32>
    %224 = vector.broadcast %223 : vector<8x1xf32> to vector<8x64xf32>
    %225 = arith.addf %222, %224 : vector<8x64xf32>
    %c0_88 = arith.constant 0 : index
    %c0_89 = arith.constant 0 : index
    %226 = vector.load %arg12[%c0_88, %c0_89] : memref<4x4xf32, #tpu.memory_space<vmem>>, vector<4x4xf32>
    %c0_90 = arith.constant 0 : index
    %c0_91 = arith.constant 0 : index
    %227 = vector.load %arg13[%c0_90, %c0_91] : memref<4x1xf32, #tpu.memory_space<vmem>>, vector<4x1xf32>
    %228 = vector.extract_strided_slice %181 {offsets = [0, 0], sizes = [4, 64], strides = [1, 1]} : vector<8x64xf32> to vector<4x64xf32>
    %cst_92 = arith.constant dense<0.000000e+00> : vector<4x64xf32>
    %229 = tpu.matmul %226, %228, %cst_92 {dimension_numbers = #tpu.dot_dimension_numbers<[1], [0], [0], [1], [0, 0, 1, 1], [], []>} : vector<4x4xf32>, vector<4x64xf32>, vector<4x64xf32> -> vector<4x64xf32>
    %230 = vector.broadcast %227 : vector<4x1xf32> to vector<4x64xf32>
    %231 = arith.addf %229, %230 : vector<4x64xf32>
    %232 = vector.extract_strided_slice %181 {offsets = [4, 0], sizes = [4, 64], strides = [1, 1]} : vector<8x64xf32> to vector<4x64xf32>
    %cst_93 = arith.constant dense<0.000000e+00> : vector<4x64xf32>
    %233 = tpu.matmul %226, %232, %cst_93 {dimension_numbers = #tpu.dot_dimension_numbers<[1], [0], [0], [1], [0, 0, 1, 1], [], []>} : vector<4x4xf32>, vector<4x64xf32>, vector<4x64xf32> -> vector<4x64xf32>
    %234 = vector.broadcast %227 : vector<4x1xf32> to vector<4x64xf32>
    %235 = arith.addf %233, %234 : vector<4x64xf32>
    %236 = tpu.concatenate %231, %235 in 0 : vector<4x64xf32>, vector<4x64xf32> -> vector<8x64xf32>
    %c0_94 = arith.constant 0 : index
    %c0_95 = arith.constant 0 : index
    %237 = vector.load %arg14[%c0_94, %c0_95] : memref<4x1xf32, #tpu.memory_space<vmem>>, vector<4x1xf32>
    %c0_96 = arith.constant 0 : index
    %c0_97 = arith.constant 0 : index
    %238 = vector.load %arg15[%c0_96, %c0_97] : memref<4x1xf32, #tpu.memory_space<vmem>>, vector<4x1xf32>
    %cst_98 = arith.constant dense<0.000000e+00> : vector<8xf32>
    %239 = vector.multi_reduction <add>, %236, %cst_98 [1] : vector<8x64xf32> to vector<8xf32>
    %240 = vector.shape_cast %239 : vector<8xf32> to vector<8x1xf32>
    %241 = arith.mulf %236, %236 : vector<8x64xf32>
    %cst_99 = arith.constant dense<0.000000e+00> : vector<8xf32>
    %242 = vector.multi_reduction <add>, %241, %cst_99 [1] : vector<8x64xf32> to vector<8xf32>
    %243 = vector.shape_cast %242 : vector<8xf32> to vector<8x1xf32>
    %244 = vector.extract_strided_slice %240 {offsets = [0, 0], sizes = [4, 1], strides = [1, 1]} : vector<8x1xf32> to vector<4x1xf32>
    %245 = vector.extract_strided_slice %243 {offsets = [0, 0], sizes = [4, 1], strides = [1, 1]} : vector<8x1xf32> to vector<4x1xf32>
    %246 = vector.extract_strided_slice %240 {offsets = [4, 0], sizes = [4, 1], strides = [1, 1]} : vector<8x1xf32> to vector<4x1xf32>
    %247 = arith.addf %244, %246 : vector<4x1xf32>
    %248 = vector.extract_strided_slice %243 {offsets = [4, 0], sizes = [4, 1], strides = [1, 1]} : vector<8x1xf32> to vector<4x1xf32>
    %249 = arith.addf %245, %248 : vector<4x1xf32>
    %cst_100 = arith.constant 7.812500e-03 : f32
    %250 = vector.broadcast %cst_100 : f32 to vector<4x1xf32>
    %251 = arith.mulf %247, %250 : vector<4x1xf32>
    %cst_101 = arith.constant 7.812500e-03 : f32
    %252 = vector.broadcast %cst_101 : f32 to vector<4x1xf32>
    %253 = arith.mulf %249, %252 : vector<4x1xf32>
    %254 = arith.mulf %251, %251 : vector<4x1xf32>
    %255 = arith.subf %253, %254 : vector<4x1xf32>
    %cst_102 = arith.constant 0.000000e+00 : f32
    %256 = vector.broadcast %cst_102 : f32 to vector<4x1xf32>
    %257 = arith.maximumf %255, %256 : vector<4x1xf32>
    %cst_103 = arith.constant 9.99999974E-6 : f32
    %258 = vector.broadcast %cst_103 : f32 to vector<4x1xf32>
    %259 = arith.addf %257, %258 : vector<4x1xf32>
    %260 = math.rsqrt %259 : vector<4x1xf32>
    %261 = arith.mulf %237, %260 : vector<4x1xf32>
    %262 = arith.mulf %251, %261 : vector<4x1xf32>
    %263 = arith.subf %238, %262 : vector<4x1xf32>
    %264 = tpu.concatenate %261, %261 in 0 : vector<4x1xf32>, vector<4x1xf32> -> vector<8x1xf32>
    %265 = vector.broadcast %264 : vector<8x1xf32> to vector<8x64xf32>
    %266 = arith.mulf %236, %265 : vector<8x64xf32>
    %267 = tpu.concatenate %263, %263 in 0 : vector<4x1xf32>, vector<4x1xf32> -> vector<8x1xf32>
    %268 = vector.broadcast %267 : vector<8x1xf32> to vector<8x64xf32>
    %269 = arith.addf %266, %268 : vector<8x64xf32>
    %270 = arith.addf %225, %269 : vector<8x64xf32>
    %c0_104 = arith.constant 0 : index
    %c0_105 = arith.constant 0 : index
    %271 = vector.load %arg16[%c0_104, %c0_105] : memref<4x4xf32, #tpu.memory_space<vmem>>, vector<4x4xf32>
    %c0_106 = arith.constant 0 : index
    %c0_107 = arith.constant 0 : index
    %272 = vector.load %arg17[%c0_106, %c0_107] : memref<4x1xf32, #tpu.memory_space<vmem>>, vector<4x1xf32>
    %273 = vector.extract_strided_slice %270 {offsets = [0, 0], sizes = [4, 64], strides = [1, 1]} : vector<8x64xf32> to vector<4x64xf32>
    %cst_108 = arith.constant dense<0.000000e+00> : vector<4x64xf32>
    %274 = tpu.matmul %271, %273, %cst_108 {dimension_numbers = #tpu.dot_dimension_numbers<[1], [0], [0], [1], [0, 0, 1, 1], [], []>} : vector<4x4xf32>, vector<4x64xf32>, vector<4x64xf32> -> vector<4x64xf32>
    %275 = vector.broadcast %272 : vector<4x1xf32> to vector<4x64xf32>
    %276 = arith.addf %274, %275 : vector<4x64xf32>
    %277 = vector.extract_strided_slice %270 {offsets = [4, 0], sizes = [4, 64], strides = [1, 1]} : vector<8x64xf32> to vector<4x64xf32>
    %cst_109 = arith.constant dense<0.000000e+00> : vector<4x64xf32>
    %278 = tpu.matmul %271, %277, %cst_109 {dimension_numbers = #tpu.dot_dimension_numbers<[1], [0], [0], [1], [0, 0, 1, 1], [], []>} : vector<4x4xf32>, vector<4x64xf32>, vector<4x64xf32> -> vector<4x64xf32>
    %279 = vector.broadcast %272 : vector<4x1xf32> to vector<4x64xf32>
    %280 = arith.addf %278, %279 : vector<4x64xf32>
    %281 = tpu.concatenate %276, %280 in 0 : vector<4x64xf32>, vector<4x64xf32> -> vector<8x64xf32>
    %c0_110 = arith.constant 0 : index
    %c0_111 = arith.constant 0 : index
    %282 = vector.load %arg18[%c0_110, %c0_111] : memref<4x4xf32, #tpu.memory_space<vmem>>, vector<4x4xf32>
    %c0_112 = arith.constant 0 : index
    %c0_113 = arith.constant 0 : index
    %283 = vector.load %arg19[%c0_112, %c0_113] : memref<4x1xf32, #tpu.memory_space<vmem>>, vector<4x1xf32>
    %c0_114 = arith.constant 0 : index
    %c0_115 = arith.constant 0 : index
    %284 = vector.load %arg20[%c0_114, %c0_115] : memref<4x4xf32, #tpu.memory_space<vmem>>, vector<4x4xf32>
    %c0_116 = arith.constant 0 : index
    %c0_117 = arith.constant 0 : index
    %285 = vector.load %arg21[%c0_116, %c0_117] : memref<4x1xf32, #tpu.memory_space<vmem>>, vector<4x1xf32>
    %c0_118 = arith.constant 0 : index
    %c0_119 = arith.constant 0 : index
    %286 = vector.load %arg22[%c0_118, %c0_119] : memref<4x4xf32, #tpu.memory_space<vmem>>, vector<4x4xf32>
    %c0_120 = arith.constant 0 : index
    %c0_121 = arith.constant 0 : index
    %287 = vector.load %arg23[%c0_120, %c0_121] : memref<4x1xf32, #tpu.memory_space<vmem>>, vector<4x1xf32>
    %288 = vector.extract_strided_slice %281 {offsets = [0, 0], sizes = [4, 64], strides = [1, 1]} : vector<8x64xf32> to vector<4x64xf32>
    %289 = vector.extract_strided_slice %19 {offsets = [0, 0], sizes = [4, 64], strides = [1, 1]} : vector<8x64xf32> to vector<4x64xf32>
    %290 = tpu.concatenate %288, %289 in 1 : vector<4x64xf32>, vector<4x64xf32> -> vector<4x128xf32>
    %cst_122 = arith.constant dense<0.000000e+00> : vector<4x128xf32>
    %291 = tpu.matmul %282, %290, %cst_122 {dimension_numbers = #tpu.dot_dimension_numbers<[1], [0], [0], [1], [0, 0, 1, 1], [], []>} : vector<4x4xf32>, vector<4x128xf32>, vector<4x128xf32> -> vector<4x128xf32>
    %292 = vector.broadcast %283 : vector<4x1xf32> to vector<4x128xf32>
    %293 = arith.addf %291, %292 : vector<4x128xf32>
    %cst_123 = arith.constant dense<0.000000e+00> : vector<4x128xf32>
    %294 = tpu.matmul %284, %290, %cst_123 {dimension_numbers = #tpu.dot_dimension_numbers<[1], [0], [0], [1], [0, 0, 1, 1], [], []>} : vector<4x4xf32>, vector<4x128xf32>, vector<4x128xf32> -> vector<4x128xf32>
    %295 = vector.broadcast %285 : vector<4x1xf32> to vector<4x128xf32>
    %296 = arith.addf %294, %295 : vector<4x128xf32>
    %cst_124 = arith.constant dense<0.000000e+00> : vector<4x128xf32>
    %297 = tpu.matmul %286, %290, %cst_124 {dimension_numbers = #tpu.dot_dimension_numbers<[1], [0], [0], [1], [0, 0, 1, 1], [], []>} : vector<4x4xf32>, vector<4x128xf32>, vector<4x128xf32> -> vector<4x128xf32>
    %298 = vector.broadcast %287 : vector<4x1xf32> to vector<4x128xf32>
    %299 = arith.addf %297, %298 : vector<4x128xf32>
    %300 = vector.extract_strided_slice %281 {offsets = [4, 0], sizes = [4, 64], strides = [1, 1]} : vector<8x64xf32> to vector<4x64xf32>
    %301 = vector.extract_strided_slice %19 {offsets = [4, 0], sizes = [4, 64], strides = [1, 1]} : vector<8x64xf32> to vector<4x64xf32>
    %302 = tpu.concatenate %300, %301 in 1 : vector<4x64xf32>, vector<4x64xf32> -> vector<4x128xf32>
    %cst_125 = arith.constant dense<0.000000e+00> : vector<4x128xf32>
    %303 = tpu.matmul %282, %302, %cst_125 {dimension_numbers = #tpu.dot_dimension_numbers<[1], [0], [0], [1], [0, 0, 1, 1], [], []>} : vector<4x4xf32>, vector<4x128xf32>, vector<4x128xf32> -> vector<4x128xf32>
    %304 = vector.broadcast %283 : vector<4x1xf32> to vector<4x128xf32>
    %305 = arith.addf %303, %304 : vector<4x128xf32>
    %cst_126 = arith.constant dense<0.000000e+00> : vector<4x128xf32>
    %306 = tpu.matmul %284, %302, %cst_126 {dimension_numbers = #tpu.dot_dimension_numbers<[1], [0], [0], [1], [0, 0, 1, 1], [], []>} : vector<4x4xf32>, vector<4x128xf32>, vector<4x128xf32> -> vector<4x128xf32>
    %307 = vector.broadcast %285 : vector<4x1xf32> to vector<4x128xf32>
    %308 = arith.addf %306, %307 : vector<4x128xf32>
    %cst_127 = arith.constant dense<0.000000e+00> : vector<4x128xf32>
    %309 = tpu.matmul %286, %302, %cst_127 {dimension_numbers = #tpu.dot_dimension_numbers<[1], [0], [0], [1], [0, 0, 1, 1], [], []>} : vector<4x4xf32>, vector<4x128xf32>, vector<4x128xf32> -> vector<4x128xf32>
    %310 = vector.broadcast %287 : vector<4x1xf32> to vector<4x128xf32>
    %311 = arith.addf %309, %310 : vector<4x128xf32>
    %312 = tpu.concatenate %293, %305 in 0 : vector<4x128xf32>, vector<4x128xf32> -> vector<8x128xf32>
    %313 = tpu.transpose %312, [1, 0] : vector<8x128xf32> -> vector<128x8xf32>
    %314 = vector.extract_strided_slice %313 {offsets = [0, 0], sizes = [64, 4], strides = [1, 1]} : vector<128x8xf32> to vector<64x4xf32>
    %315 = vector.extract_strided_slice %313 {offsets = [64, 0], sizes = [64, 4], strides = [1, 1]} : vector<128x8xf32> to vector<64x4xf32>
    %316 = vector.extract_strided_slice %296 {offsets = [0, 64], sizes = [4, 64], strides = [1, 1]} : vector<4x128xf32> to vector<4x64xf32>
    %317 = vector.extract_strided_slice %299 {offsets = [0, 64], sizes = [4, 64], strides = [1, 1]} : vector<4x128xf32> to vector<4x64xf32>
    %cst_128 = arith.constant dense<0.000000e+00> : vector<64x64xf32>
    %318 = tpu.matmul %314, %316, %cst_128 {dimension_numbers = #tpu.dot_dimension_numbers<[1], [0], [0], [1], [0, 0, 1, 1], [], []>} : vector<64x4xf32>, vector<4x64xf32>, vector<64x64xf32> -> vector<64x64xf32>
    %cst_129 = arith.constant dense<0xFF800000> : vector<64xf32>
    %319 = vector.multi_reduction <maximumf>, %318, %cst_129 [1] : vector<64x64xf32> to vector<64xf32>
    %320 = vector.shape_cast %319 : vector<64xf32> to vector<64x1xf32>
    %321 = vector.broadcast %320 : vector<64x1xf32> to vector<64x64xf32>
    %322 = arith.subf %318, %321 : vector<64x64xf32>
    %323 = math.exp %322 : vector<64x64xf32>
    %cst_130 = arith.constant dense<0.000000e+00> : vector<64xf32>
    %324 = vector.multi_reduction <add>, %323, %cst_130 [1] : vector<64x64xf32> to vector<64xf32>
    %325 = vector.shape_cast %324 : vector<64xf32> to vector<64x1xf32>
    %326 = tpu.reciprocal %325 {approx = true} : vector<64x1xf32> -> vector<64x1xf32>
    %327 = vector.broadcast %326 : vector<64x1xf32> to vector<64x64xf32>
    %328 = arith.mulf %323, %327 : vector<64x64xf32>
    %cst_131 = arith.constant dense<0.000000e+00> : vector<4x64xf32>
    %329 = tpu.matmul %317, %328, %cst_131 {dimension_numbers = #tpu.dot_dimension_numbers<[1], [1], [0], [0], [0, 0, 1, 0], [], []>} : vector<4x64xf32>, vector<64x64xf32>, vector<4x64xf32> -> vector<4x64xf32>
    %330 = vector.extract_strided_slice %296 {offsets = [0, 0], sizes = [4, 64], strides = [1, 1]} : vector<4x128xf32> to vector<4x64xf32>
    %331 = vector.extract_strided_slice %299 {offsets = [0, 0], sizes = [4, 64], strides = [1, 1]} : vector<4x128xf32> to vector<4x64xf32>
    %cst_132 = arith.constant dense<0.000000e+00> : vector<64x64xf32>
    %332 = tpu.matmul %315, %330, %cst_132 {dimension_numbers = #tpu.dot_dimension_numbers<[1], [0], [0], [1], [0, 0, 1, 1], [], []>} : vector<64x4xf32>, vector<4x64xf32>, vector<64x64xf32> -> vector<64x64xf32>
    %cst_133 = arith.constant dense<0xFF800000> : vector<64xf32>
    %333 = vector.multi_reduction <maximumf>, %332, %cst_133 [1] : vector<64x64xf32> to vector<64xf32>
    %334 = vector.shape_cast %333 : vector<64xf32> to vector<64x1xf32>
    %335 = vector.broadcast %334 : vector<64x1xf32> to vector<64x64xf32>
    %336 = arith.subf %332, %335 : vector<64x64xf32>
    %337 = math.exp %336 : vector<64x64xf32>
    %cst_134 = arith.constant dense<0.000000e+00> : vector<64xf32>
    %338 = vector.multi_reduction <add>, %337, %cst_134 [1] : vector<64x64xf32> to vector<64xf32>
    %339 = vector.shape_cast %338 : vector<64xf32> to vector<64x1xf32>
    %340 = tpu.reciprocal %339 {approx = true} : vector<64x1xf32> -> vector<64x1xf32>
    %341 = vector.broadcast %340 : vector<64x1xf32> to vector<64x64xf32>
    %342 = arith.mulf %337, %341 : vector<64x64xf32>
    %cst_135 = arith.constant dense<0.000000e+00> : vector<4x64xf32>
    %343 = tpu.matmul %331, %342, %cst_135 {dimension_numbers = #tpu.dot_dimension_numbers<[1], [1], [0], [0], [0, 0, 1, 0], [], []>} : vector<4x64xf32>, vector<64x64xf32>, vector<4x64xf32> -> vector<4x64xf32>
    %344 = arith.addf %329, %343 : vector<4x64xf32>
    %345 = vector.extract_strided_slice %313 {offsets = [0, 4], sizes = [64, 4], strides = [1, 1]} : vector<128x8xf32> to vector<64x4xf32>
    %346 = vector.extract_strided_slice %313 {offsets = [64, 4], sizes = [64, 4], strides = [1, 1]} : vector<128x8xf32> to vector<64x4xf32>
    %347 = vector.extract_strided_slice %308 {offsets = [0, 64], sizes = [4, 64], strides = [1, 1]} : vector<4x128xf32> to vector<4x64xf32>
    %348 = vector.extract_strided_slice %311 {offsets = [0, 64], sizes = [4, 64], strides = [1, 1]} : vector<4x128xf32> to vector<4x64xf32>
    %cst_136 = arith.constant dense<0.000000e+00> : vector<64x64xf32>
    %349 = tpu.matmul %345, %347, %cst_136 {dimension_numbers = #tpu.dot_dimension_numbers<[1], [0], [0], [1], [0, 0, 1, 1], [], []>} : vector<64x4xf32>, vector<4x64xf32>, vector<64x64xf32> -> vector<64x64xf32>
    %cst_137 = arith.constant dense<0xFF800000> : vector<64xf32>
    %350 = vector.multi_reduction <maximumf>, %349, %cst_137 [1] : vector<64x64xf32> to vector<64xf32>
    %351 = vector.shape_cast %350 : vector<64xf32> to vector<64x1xf32>
    %352 = vector.broadcast %351 : vector<64x1xf32> to vector<64x64xf32>
    %353 = arith.subf %349, %352 : vector<64x64xf32>
    %354 = math.exp %353 : vector<64x64xf32>
    %cst_138 = arith.constant dense<0.000000e+00> : vector<64xf32>
    %355 = vector.multi_reduction <add>, %354, %cst_138 [1] : vector<64x64xf32> to vector<64xf32>
    %356 = vector.shape_cast %355 : vector<64xf32> to vector<64x1xf32>
    %357 = tpu.reciprocal %356 {approx = true} : vector<64x1xf32> -> vector<64x1xf32>
    %358 = vector.broadcast %357 : vector<64x1xf32> to vector<64x64xf32>
    %359 = arith.mulf %354, %358 : vector<64x64xf32>
    %cst_139 = arith.constant dense<0.000000e+00> : vector<4x64xf32>
    %360 = tpu.matmul %348, %359, %cst_139 {dimension_numbers = #tpu.dot_dimension_numbers<[1], [1], [0], [0], [0, 0, 1, 0], [], []>} : vector<4x64xf32>, vector<64x64xf32>, vector<4x64xf32> -> vector<4x64xf32>
    %361 = vector.extract_strided_slice %308 {offsets = [0, 0], sizes = [4, 64], strides = [1, 1]} : vector<4x128xf32> to vector<4x64xf32>
    %362 = vector.extract_strided_slice %311 {offsets = [0, 0], sizes = [4, 64], strides = [1, 1]} : vector<4x128xf32> to vector<4x64xf32>
    %cst_140 = arith.constant dense<0.000000e+00> : vector<64x64xf32>
    %363 = tpu.matmul %346, %361, %cst_140 {dimension_numbers = #tpu.dot_dimension_numbers<[1], [0], [0], [1], [0, 0, 1, 1], [], []>} : vector<64x4xf32>, vector<4x64xf32>, vector<64x64xf32> -> vector<64x64xf32>
    %cst_141 = arith.constant dense<0xFF800000> : vector<64xf32>
    %364 = vector.multi_reduction <maximumf>, %363, %cst_141 [1] : vector<64x64xf32> to vector<64xf32>
    %365 = vector.shape_cast %364 : vector<64xf32> to vector<64x1xf32>
    %366 = vector.broadcast %365 : vector<64x1xf32> to vector<64x64xf32>
    %367 = arith.subf %363, %366 : vector<64x64xf32>
    %368 = math.exp %367 : vector<64x64xf32>
    %cst_142 = arith.constant dense<0.000000e+00> : vector<64xf32>
    %369 = vector.multi_reduction <add>, %368, %cst_142 [1] : vector<64x64xf32> to vector<64xf32>
    %370 = vector.shape_cast %369 : vector<64xf32> to vector<64x1xf32>
    %371 = tpu.reciprocal %370 {approx = true} : vector<64x1xf32> -> vector<64x1xf32>
    %372 = vector.broadcast %371 : vector<64x1xf32> to vector<64x64xf32>
    %373 = arith.mulf %368, %372 : vector<64x64xf32>
    %cst_143 = arith.constant dense<0.000000e+00> : vector<4x64xf32>
    %374 = tpu.matmul %362, %373, %cst_143 {dimension_numbers = #tpu.dot_dimension_numbers<[1], [1], [0], [0], [0, 0, 1, 0], [], []>} : vector<4x64xf32>, vector<64x64xf32>, vector<4x64xf32> -> vector<4x64xf32>
    %375 = arith.addf %360, %374 : vector<4x64xf32>
    %376 = tpu.concatenate %344, %375 in 0 : vector<4x64xf32>, vector<4x64xf32> -> vector<8x64xf32>
    %c0_144 = arith.constant 0 : index
    %c0_145 = arith.constant 0 : index
    %377 = vector.load %arg26[%c0_144, %c0_145] : memref<64x64xf32, #tpu.memory_space<vmem>>, vector<64x64xf32>
    %cst_146 = arith.constant dense<0.000000e+00> : vector<8x64xf32>
    %378 = tpu.matmul %376, %377, %cst_146 {dimension_numbers = #tpu.dot_dimension_numbers<[1], [0], [0], [1], [0, 0, 1, 1], [], []>} : vector<8x64xf32>, vector<64x64xf32>, vector<8x64xf32> -> vector<8x64xf32>
    %379 = arith.mulf %376, %376 : vector<8x64xf32>
    %cst_147 = arith.constant dense<0.000000e+00> : vector<8x64xf32>
    %380 = tpu.matmul %379, %377, %cst_147 {dimension_numbers = #tpu.dot_dimension_numbers<[1], [0], [0], [1], [0, 0, 1, 1], [], []>} : vector<8x64xf32>, vector<64x64xf32>, vector<8x64xf32> -> vector<8x64xf32>
    %381 = arith.mulf %378, %378 : vector<8x64xf32>
    %382 = arith.subf %380, %381 : vector<8x64xf32>
    %cst_148 = arith.constant 0.000000e+00 : f32
    %383 = vector.broadcast %cst_148 : f32 to vector<8x64xf32>
    %384 = arith.maximumf %382, %383 : vector<8x64xf32>
    %385 = arith.subf %376, %378 : vector<8x64xf32>
    %cst_149 = arith.constant 9.99999974E-6 : f32
    %386 = vector.broadcast %cst_149 : f32 to vector<8x64xf32>
    %387 = arith.addf %384, %386 : vector<8x64xf32>
    %388 = math.rsqrt %387 : vector<8x64xf32>
    %389 = arith.mulf %385, %388 : vector<8x64xf32>
    %c0_150 = arith.constant 0 : index
    %c0_151 = arith.constant 0 : index
    %390 = vector.load %arg24[%c0_150, %c0_151] : memref<1x64xf32, #tpu.memory_space<vmem>>, vector<1x64xf32>
    %391 = vector.broadcast %390 : vector<1x64xf32> to vector<8x64xf32>
    %392 = arith.mulf %389, %391 : vector<8x64xf32>
    %c0_152 = arith.constant 0 : index
    %c0_153 = arith.constant 0 : index
    %393 = vector.load %arg25[%c0_152, %c0_153] : memref<1x64xf32, #tpu.memory_space<vmem>>, vector<1x64xf32>
    %394 = vector.broadcast %393 : vector<1x64xf32> to vector<8x64xf32>
    %395 = arith.addf %392, %394 : vector<8x64xf32>
    %c0_154 = arith.constant 0 : index
    %c0_155 = arith.constant 0 : index
    %396 = vector.load %arg27[%c0_154, %c0_155] : memref<64x256xf32, #tpu.memory_space<vmem>>, vector<64x256xf32>
    %cst_156 = arith.constant dense<0.000000e+00> : vector<8x256xf32>
    %397 = tpu.matmul %395, %396, %cst_156 {dimension_numbers = #tpu.dot_dimension_numbers<[1], [0], [0], [1], [0, 0, 1, 1], [], []>} : vector<8x64xf32>, vector<64x256xf32>, vector<8x256xf32> -> vector<8x256xf32>
    %cst_157 = arith.constant 0.000000e+00 : f32
    %398 = vector.broadcast %cst_157 : f32 to vector<8x290xf32>
    %c0_158 = arith.constant 0 : index
    %c0_159 = arith.constant 0 : index
    %399 = vector.load %arg38[%c0_158, %c0_159] : memref<8x290xf32, #tpu.memory_space<vmem>>, vector<8x290xf32>
    tpu.vector_store %arg38[%c0_158, %c0_159], %398 {strides = array<i32>} : memref<8x290xf32, #tpu.memory_space<vmem>>, vector<8x290xf32>,
    %c0_160 = arith.constant 0 : index
    %c17_161 = arith.constant 17 : index
    %400 = vector.load %arg38[%c0_160, %c17_161] : memref<8x290xf32, #tpu.memory_space<vmem>>, vector<8x256xf32>
    tpu.vector_store %arg38[%c0_160, %c17_161], %397 {strides = array<i32>} : memref<8x290xf32, #tpu.memory_space<vmem>>, vector<8x256xf32>,
    %c0_162 = arith.constant 0 : index
    %c0_163 = arith.constant 0 : index
    %401 = vector.load %arg29[%c0_162, %c0_163] : memref<4x9xf32, #tpu.memory_space<vmem>>, vector<4x9xf32>
    %402 = tpu.concatenate %401, %401 in 0 : vector<4x9xf32>, vector<4x9xf32> -> vector<8x9xf32>
    %c0_164 = arith.constant 0 : index
    %c0_165 = arith.constant 0 : index
    %403 = vector.load %arg35[%c0_164, %c0_165] : memref<3x256xf32, #tpu.memory_space<vmem>>, vector<3x256xf32>
    %cst_166 = arith.constant 0.000000e+00 : f32
    %404 = vector.broadcast %cst_166 : f32 to vector<8x256xf32>
    %c0_167 = arith.constant 0 : index
    %c0_168 = arith.constant 0 : index
    %405 = vector.load %arg38[%c0_167, %c0_168] : memref<8x290xf32, #tpu.memory_space<vmem>>, vector<8x256xf32>
    %406 = vector.extract_strided_slice %403 {offsets = [0, 0], sizes = [1, 256], strides = [1, 1]} : vector<3x256xf32> to vector<1x256xf32>
    %407 = vector.broadcast %406 : vector<1x256xf32> to vector<8x256xf32>
    %408 = arith.mulf %405, %407 : vector<8x256xf32>
    %409 = vector.extract_strided_slice %402 {offsets = [0, 0], sizes = [8, 1], strides = [1, 1]} : vector<8x9xf32> to vector<8x1xf32>
    %410 = vector.broadcast %409 : vector<8x1xf32> to vector<8x256xf32>
    %411 = arith.mulf %410, %408 : vector<8x256xf32>
    %412 = arith.addf %404, %411 : vector<8x256xf32>
    %c0_169 = arith.constant 0 : index
    %c1 = arith.constant 1 : index
    %413 = vector.load %arg38[%c0_169, %c1] : memref<8x290xf32, #tpu.memory_space<vmem>>, vector<8x256xf32>
    %414 = vector.extract_strided_slice %402 {offsets = [0, 1], sizes = [8, 1], strides = [1, 1]} : vector<8x9xf32> to vector<8x1xf32>
    %415 = vector.broadcast %414 : vector<8x1xf32> to vector<8x256xf32>
    %416 = arith.mulf %415, %413 : vector<8x256xf32>
    %417 = arith.addf %412, %416 : vector<8x256xf32>
    %c0_170 = arith.constant 0 : index
    %c2 = arith.constant 2 : index
    %418 = vector.load %arg38[%c0_170, %c2] : memref<8x290xf32, #tpu.memory_space<vmem>>, vector<8x256xf32>
    %419 = vector.extract_strided_slice %403 {offsets = [2, 0], sizes = [1, 256], strides = [1, 1]} : vector<3x256xf32> to vector<1x256xf32>
    %420 = vector.broadcast %419 : vector<1x256xf32> to vector<8x256xf32>
    %421 = arith.mulf %418, %420 : vector<8x256xf32>
    %422 = vector.extract_strided_slice %402 {offsets = [0, 2], sizes = [8, 1], strides = [1, 1]} : vector<8x9xf32> to vector<8x1xf32>
    %423 = vector.broadcast %422 : vector<8x1xf32> to vector<8x256xf32>
    %424 = arith.mulf %423, %421 : vector<8x256xf32>
    %425 = arith.addf %417, %424 : vector<8x256xf32>
    %c0_171 = arith.constant 0 : index
    %c16_172 = arith.constant 16 : index
    %426 = vector.load %arg38[%c0_171, %c16_172] : memref<8x290xf32, #tpu.memory_space<vmem>>, vector<8x256xf32>
    %427 = vector.extract_strided_slice %403 {offsets = [0, 0], sizes = [1, 256], strides = [1, 1]} : vector<3x256xf32> to vector<1x256xf32>
    %428 = vector.broadcast %427 : vector<1x256xf32> to vector<8x256xf32>
    %429 = arith.mulf %426, %428 : vector<8x256xf32>
    %430 = vector.extract_strided_slice %402 {offsets = [0, 3], sizes = [8, 1], strides = [1, 1]} : vector<8x9xf32> to vector<8x1xf32>
    %431 = vector.broadcast %430 : vector<8x1xf32> to vector<8x256xf32>
    %432 = arith.mulf %431, %429 : vector<8x256xf32>
    %433 = arith.addf %425, %432 : vector<8x256xf32>
    %c0_173 = arith.constant 0 : index
    %c17_174 = arith.constant 17 : index
    %434 = vector.load %arg38[%c0_173, %c17_174] : memref<8x290xf32, #tpu.memory_space<vmem>>, vector<8x256xf32>
    %435 = vector.extract_strided_slice %402 {offsets = [0, 4], sizes = [8, 1], strides = [1, 1]} : vector<8x9xf32> to vector<8x1xf32>
    %436 = vector.broadcast %435 : vector<8x1xf32> to vector<8x256xf32>
    %437 = arith.mulf %436, %434 : vector<8x256xf32>
    %438 = arith.addf %433, %437 : vector<8x256xf32>
    %c0_175 = arith.constant 0 : index
    %c18_176 = arith.constant 18 : index
    %439 = vector.load %arg38[%c0_175, %c18_176] : memref<8x290xf32, #tpu.memory_space<vmem>>, vector<8x256xf32>
    %440 = vector.extract_strided_slice %403 {offsets = [2, 0], sizes = [1, 256], strides = [1, 1]} : vector<3x256xf32> to vector<1x256xf32>
    %441 = vector.broadcast %440 : vector<1x256xf32> to vector<8x256xf32>
    %442 = arith.mulf %439, %441 : vector<8x256xf32>
    %443 = vector.extract_strided_slice %402 {offsets = [0, 5], sizes = [8, 1], strides = [1, 1]} : vector<8x9xf32> to vector<8x1xf32>
    %444 = vector.broadcast %443 : vector<8x1xf32> to vector<8x256xf32>
    %445 = arith.mulf %444, %442 : vector<8x256xf32>
    %446 = arith.addf %438, %445 : vector<8x256xf32>
    %c0_177 = arith.constant 0 : index
    %c32_178 = arith.constant 32 : index
    %447 = vector.load %arg38[%c0_177, %c32_178] : memref<8x290xf32, #tpu.memory_space<vmem>>, vector<8x256xf32>
    %448 = vector.extract_strided_slice %403 {offsets = [0, 0], sizes = [1, 256], strides = [1, 1]} : vector<3x256xf32> to vector<1x256xf32>
    %449 = vector.broadcast %448 : vector<1x256xf32> to vector<8x256xf32>
    %450 = arith.mulf %447, %449 : vector<8x256xf32>
    %451 = vector.extract_strided_slice %402 {offsets = [0, 6], sizes = [8, 1], strides = [1, 1]} : vector<8x9xf32> to vector<8x1xf32>
    %452 = vector.broadcast %451 : vector<8x1xf32> to vector<8x256xf32>
    %453 = arith.mulf %452, %450 : vector<8x256xf32>
    %454 = arith.addf %446, %453 : vector<8x256xf32>
    %c0_179 = arith.constant 0 : index
    %c33 = arith.constant 33 : index
    %455 = vector.load %arg38[%c0_179, %c33] : memref<8x290xf32, #tpu.memory_space<vmem>>, vector<8x256xf32>
    %456 = vector.extract_strided_slice %402 {offsets = [0, 7], sizes = [8, 1], strides = [1, 1]} : vector<8x9xf32> to vector<8x1xf32>
    %457 = vector.broadcast %456 : vector<8x1xf32> to vector<8x256xf32>
    %458 = arith.mulf %457, %455 : vector<8x256xf32>
    %459 = arith.addf %454, %458 : vector<8x256xf32>
    %c0_180 = arith.constant 0 : index
    %c34 = arith.constant 34 : index
    %460 = vector.load %arg38[%c0_180, %c34] : memref<8x290xf32, #tpu.memory_space<vmem>>, vector<8x256xf32>
    %461 = vector.extract_strided_slice %403 {offsets = [2, 0], sizes = [1, 256], strides = [1, 1]} : vector<3x256xf32> to vector<1x256xf32>
    %462 = vector.broadcast %461 : vector<1x256xf32> to vector<8x256xf32>
    %463 = arith.mulf %460, %462 : vector<8x256xf32>
    %464 = vector.extract_strided_slice %402 {offsets = [0, 8], sizes = [8, 1], strides = [1, 1]} : vector<8x9xf32> to vector<8x1xf32>
    %465 = vector.broadcast %464 : vector<8x1xf32> to vector<8x256xf32>
    %466 = arith.mulf %465, %463 : vector<8x256xf32>
    %467 = arith.addf %459, %466 : vector<8x256xf32>
    %c0_181 = arith.constant 0 : index
    %c0_182 = arith.constant 0 : index
    %468 = vector.load %arg30[%c0_181, %c0_182] : memref<4x1xf32, #tpu.memory_space<vmem>>, vector<4x1xf32>
    %469 = tpu.concatenate %468, %468 in 0 : vector<4x1xf32>, vector<4x1xf32> -> vector<8x1xf32>
    %470 = vector.broadcast %469 : vector<8x1xf32> to vector<8x256xf32>
    %471 = arith.addf %467, %470 : vector<8x256xf32>
    %cst_183 = arith.constant 5.000000e-01 : f32
    %472 = vector.broadcast %cst_183 : f32 to vector<8x256xf32>
    %473 = arith.mulf %472, %471 : vector<8x256xf32>
    %cst_184 = arith.constant 0.707106769 : f32
    %474 = vector.broadcast %cst_184 : f32 to vector<8x256xf32>
    %475 = arith.mulf %471, %474 : vector<8x256xf32>
    %cst_185 = arith.constant 0.000000e+00 : f32
    %476 = vector.broadcast %cst_185 : f32 to vector<8x256xf32>
    %477 = arith.cmpf oge, %475, %476 : vector<8x256xf32>
    %cst_186 = arith.constant 1.000000e+00 : f32
    %cst_187 = arith.constant -1.000000e+00 : f32
    %478 = vector.broadcast %cst_186 : f32 to vector<8x256xf32>
    %479 = vector.broadcast %cst_187 : f32 to vector<8x256xf32>
    %480 = arith.select %477, %478, %479 : vector<8x256xi1>, vector<8x256xf32>
    %481 = arith.mulf %475, %480 : vector<8x256xf32>
    %cst_188 = arith.constant 0.327591091 : f32
    %482 = vector.broadcast %cst_188 : f32 to vector<8x256xf32>
    %483 = arith.mulf %482, %481 : vector<8x256xf32>
    %cst_189 = arith.constant 1.000000e+00 : f32
    %484 = vector.broadcast %cst_189 : f32 to vector<8x256xf32>
    %485 = arith.addf %484, %483 : vector<8x256xf32>
    %cst_190 = arith.constant 1.000000e+00 : f32
    %486 = vector.broadcast %cst_190 : f32 to vector<8x256xf32>
    %487 = arith.divf %486, %485 : vector<8x256xf32>
    %cst_191 = arith.constant 1.06140542 : f32
    %488 = vector.broadcast %cst_191 : f32 to vector<8x256xf32>
    %489 = arith.mulf %488, %487 : vector<8x256xf32>
    %cst_192 = arith.constant -1.45315206 : f32
    %490 = vector.broadcast %cst_192 : f32 to vector<8x256xf32>
    %491 = arith.addf %489, %490 : vector<8x256xf32>
    %492 = arith.mulf %491, %487 : vector<8x256xf32>
    %cst_193 = arith.constant 1.42141378 : f32
    %493 = vector.broadcast %cst_193 : f32 to vector<8x256xf32>
    %494 = arith.addf %492, %493 : vector<8x256xf32>
    %495 = arith.mulf %494, %487 : vector<8x256xf32>
    %cst_194 = arith.constant -0.284496725 : f32
    %496 = vector.broadcast %cst_194 : f32 to vector<8x256xf32>
    %497 = arith.addf %495, %496 : vector<8x256xf32>
    %498 = arith.mulf %497, %487 : vector<8x256xf32>
    %cst_195 = arith.constant 0.254829586 : f32
    %499 = vector.broadcast %cst_195 : f32 to vector<8x256xf32>
    %500 = arith.addf %498, %499 : vector<8x256xf32>
    %501 = arith.mulf %500, %487 : vector<8x256xf32>
    %cst_196 = arith.constant 0.000000e+00 : f32
    %502 = vector.broadcast %cst_196 : f32 to vector<8x256xf32>
    %503 = arith.subf %502, %481 : vector<8x256xf32>
    %504 = arith.mulf %503, %481 : vector<8x256xf32>
    %505 = math.exp %504 : vector<8x256xf32>
    %506 = arith.mulf %501, %505 : vector<8x256xf32>
    %cst_197 = arith.constant 1.000000e+00 : f32
    %507 = vector.broadcast %cst_197 : f32 to vector<8x256xf32>
    %508 = arith.subf %507, %506 : vector<8x256xf32>
    %509 = arith.mulf %480, %508 : vector<8x256xf32>
    %cst_198 = arith.constant 1.000000e+00 : f32
    %510 = vector.broadcast %cst_198 : f32 to vector<8x256xf32>
    %511 = arith.addf %510, %509 : vector<8x256xf32>
    %512 = arith.mulf %473, %511 : vector<8x256xf32>
    %c0_199 = arith.constant 0 : index
    %c0_200 = arith.constant 0 : index
    %513 = vector.load %arg31[%c0_199, %c0_200] : memref<4x4xf32, #tpu.memory_space<vmem>>, vector<4x4xf32>
    %c0_201 = arith.constant 0 : index
    %c0_202 = arith.constant 0 : index
    %514 = vector.load %arg32[%c0_201, %c0_202] : memref<4x1xf32, #tpu.memory_space<vmem>>, vector<4x1xf32>
    %515 = vector.extract_strided_slice %512 {offsets = [0, 0], sizes = [4, 256], strides = [1, 1]} : vector<8x256xf32> to vector<4x256xf32>
    %cst_203 = arith.constant dense<0.000000e+00> : vector<4x256xf32>
    %516 = tpu.matmul %513, %515, %cst_203 {dimension_numbers = #tpu.dot_dimension_numbers<[1], [0], [0], [1], [0, 0, 1, 1], [], []>} : vector<4x4xf32>, vector<4x256xf32>, vector<4x256xf32> -> vector<4x256xf32>
    %517 = vector.broadcast %514 : vector<4x1xf32> to vector<4x256xf32>
    %518 = arith.addf %516, %517 : vector<4x256xf32>
    %519 = vector.extract_strided_slice %512 {offsets = [4, 0], sizes = [4, 256], strides = [1, 1]} : vector<8x256xf32> to vector<4x256xf32>
    %cst_204 = arith.constant dense<0.000000e+00> : vector<4x256xf32>
    %520 = tpu.matmul %513, %519, %cst_204 {dimension_numbers = #tpu.dot_dimension_numbers<[1], [0], [0], [1], [0, 0, 1, 1], [], []>} : vector<4x4xf32>, vector<4x256xf32>, vector<4x256xf32> -> vector<4x256xf32>
    %521 = vector.broadcast %514 : vector<4x1xf32> to vector<4x256xf32>
    %522 = arith.addf %520, %521 : vector<4x256xf32>
    %523 = tpu.concatenate %518, %522 in 0 : vector<4x256xf32>, vector<4x256xf32> -> vector<8x256xf32>
    %c0_205 = arith.constant 0 : index
    %c0_206 = arith.constant 0 : index
    %524 = vector.load %arg33[%c0_205, %c0_206] : memref<4x1xf32, #tpu.memory_space<vmem>>, vector<4x1xf32>
    %c0_207 = arith.constant 0 : index
    %c0_208 = arith.constant 0 : index
    %525 = vector.load %arg34[%c0_207, %c0_208] : memref<4x1xf32, #tpu.memory_space<vmem>>, vector<4x1xf32>
    %cst_209 = arith.constant dense<0.000000e+00> : vector<8xf32>
    %526 = vector.multi_reduction <add>, %523, %cst_209 [1] : vector<8x256xf32> to vector<8xf32>
    %527 = vector.shape_cast %526 : vector<8xf32> to vector<8x1xf32>
    %528 = arith.mulf %523, %523 : vector<8x256xf32>
    %cst_210 = arith.constant dense<0.000000e+00> : vector<8xf32>
    %529 = vector.multi_reduction <add>, %528, %cst_210 [1] : vector<8x256xf32> to vector<8xf32>
    %530 = vector.shape_cast %529 : vector<8xf32> to vector<8x1xf32>
    %531 = vector.extract_strided_slice %527 {offsets = [0, 0], sizes = [4, 1], strides = [1, 1]} : vector<8x1xf32> to vector<4x1xf32>
    %532 = vector.extract_strided_slice %530 {offsets = [0, 0], sizes = [4, 1], strides = [1, 1]} : vector<8x1xf32> to vector<4x1xf32>
    %533 = vector.extract_strided_slice %527 {offsets = [4, 0], sizes = [4, 1], strides = [1, 1]} : vector<8x1xf32> to vector<4x1xf32>
    %534 = arith.addf %531, %533 : vector<4x1xf32>
    %535 = vector.extract_strided_slice %530 {offsets = [4, 0], sizes = [4, 1], strides = [1, 1]} : vector<8x1xf32> to vector<4x1xf32>
    %536 = arith.addf %532, %535 : vector<4x1xf32>
    %cst_211 = arith.constant 0.001953125 : f32
    %537 = vector.broadcast %cst_211 : f32 to vector<4x1xf32>
    %538 = arith.mulf %534, %537 : vector<4x1xf32>
    %cst_212 = arith.constant 0.001953125 : f32
    %539 = vector.broadcast %cst_212 : f32 to vector<4x1xf32>
    %540 = arith.mulf %536, %539 : vector<4x1xf32>
    %541 = arith.mulf %538, %538 : vector<4x1xf32>
    %542 = arith.subf %540, %541 : vector<4x1xf32>
    %cst_213 = arith.constant 0.000000e+00 : f32
    %543 = vector.broadcast %cst_213 : f32 to vector<4x1xf32>
    %544 = arith.maximumf %542, %543 : vector<4x1xf32>
    %cst_214 = arith.constant 9.99999974E-6 : f32
    %545 = vector.broadcast %cst_214 : f32 to vector<4x1xf32>
    %546 = arith.addf %544, %545 : vector<4x1xf32>
    %547 = math.rsqrt %546 : vector<4x1xf32>
    %548 = arith.mulf %524, %547 : vector<4x1xf32>
    %549 = arith.mulf %538, %548 : vector<4x1xf32>
    %550 = arith.subf %525, %549 : vector<4x1xf32>
    %551 = tpu.concatenate %548, %548 in 0 : vector<4x1xf32>, vector<4x1xf32> -> vector<8x1xf32>
    %552 = vector.broadcast %551 : vector<8x1xf32> to vector<8x256xf32>
    %553 = arith.mulf %523, %552 : vector<8x256xf32>
    %554 = tpu.concatenate %550, %550 in 0 : vector<4x1xf32>, vector<4x1xf32> -> vector<8x1xf32>
    %555 = vector.broadcast %554 : vector<8x1xf32> to vector<8x256xf32>
    %556 = arith.addf %553, %555 : vector<8x256xf32>
    %557 = arith.addf %556, %397 : vector<8x256xf32>
    %c0_215 = arith.constant 0 : index
    %c0_216 = arith.constant 0 : index
    %558 = vector.load %arg36[%c0_215, %c0_216] : memref<8x256xf32, #tpu.memory_space<vmem>>, vector<8x256xf32>
    tpu.vector_store %arg36[%c0_215, %c0_216], %557 {strides = array<i32>} : memref<8x256xf32, #tpu.memory_space<vmem>>, vector<8x256xf32>,
    return
  }
}

</mosaic_0001>

<llo_original>
// kernel: tile.18
$region0: #{tile.18}
  #allocation0 [shape = 's32[1]{0}', space=sflag, size = 0x4, scoped, tag = 'scoped memory for tile.18']
  %s0 = inlined_call_operand.vmem [shape: f32[4], index: 0, kind: input, shape index: {}]
  %s1 = inlined_call_operand.vmem [shape: f32[16,4], index: 1, kind: output, shape index: {}]
  // Predicated region
  $region2: #{tile.18} parent=0 // pred_check
    _
  $region3: #{tile.18} parent=0 // pred_check_branch
    %3 = sbr.rel (0) target = $region5
  $region4: #{tile.18} parent=0 // pred_region
    _
  $region5: #{tile.18} parent=0 // pred_fallthru
    _
  %v4 = vld [vmem:[%s0] ss:$0 sm:$0xff]
  %5 = vst [vmem:[%s1] sm:$0xff] %v4
  %s6 = scalar_lea.vmem %s1, 8
  %7 = vst [vmem:[%s6] sm:$0xff] %v4

// kernel: tile.19
$region0: #{tile.19}
  %s0 = inlined_call_operand.vmem [shape: f32[16,4], index: 0, kind: input, shape index: {}]
  %s1 = inlined_call_operand.vmem [shape: f32[1,64], index: 1, kind: output, shape index: {}]
  $region1: #{tile.19} parent=0
    #allocation0 [shape = 'u8[4096]{0}', space=vmem, size = 0x1000, scoped, tag = 'scoped mem for output reshape']
    %v2 = vld [vmem:[%s0] sm:$0x1]
    %vm3 = vcmask 31744
    %4 = vst.msk [vmem:[#allocation0] sm:$0x1] %vm3, %v2
    %s5 = scalar_lea.vmem %s0, 15
    %v6 = vld [vmem:[%s5] sm:$0x1]
    %7 = vrot.lane.b32.xlu0 %v6, 60
    %v8 = vpop.permute.xlu0 %7
    %vm9 = vcmask 523744
    %10 = vst.msk [vmem:[#allocation0] sm:$0x1] %vm9, %v8
    %s11 = scalar_lea.vmem %s0, 14
    %v12 = vld [vmem:[%s11] sm:$0x1]
    %13 = vrot.lane.b32.xlu0 %v12, 56
    %v14 = vpop.permute.xlu0 %13
    %vm15 = vcmask 490944
    %16 = vst.msk [vmem:[#allocation0] sm:$0x1] %vm15, %v14
    %s17 = scalar_lea.vmem %s0, 13
    %v18 = vld [vmem:[%s17] sm:$0x1]
    %19 = vrot.lane.b32.xlu0 %v18, 52
    %v20 = vpop.permute.xlu0 %19
    %vm21 = vcmask 458144
    %22 = vst.msk [vmem:[#allocation0] sm:$0x1] %vm21, %v20
    %s23 = scalar_lea.vmem %s0, 12
    %v24 = vld [vmem:[%s23] sm:$0x1]
    %25 = vrot.lane.b32.xlu0 %v24, 48
    %v26 = vpop.permute.xlu0 %25
    %vm27 = vcmask 425344
    %28 = vst.msk [vmem:[#allocation0] sm:$0x1] %vm27, %v26
    %s29 = scalar_lea.vmem %s0, 11
    %v30 = vld [vmem:[%s29] sm:$0x1]
    %31 = vrot.lane.b32.xlu0 %v30, 44
    %v32 = vpop.permute.xlu0 %31
    %vm33 = vcmask 392544
    %34 = vst.msk [vmem:[#allocation0] sm:$0x1] %vm33, %v32
    %s35 = scalar_lea.vmem %s0, 10
    %v36 = vld [vmem:[%s35] sm:$0x1]
    %37 = vrot.lane.b32.xlu0 %v36, 40
    %v38 = vpop.permute.xlu0 %37
    %vm39 = vcmask 359744
    %40 = vst.msk [vmem:[#allocation0] sm:$0x1] %vm39, %v38
    %s41 = scalar_lea.vmem %s0, 9
    %v42 = vld [vmem:[%s41] sm:$0x1]
    %43 = vrot.lane.b32.xlu0 %v42, 36
    %v44 = vpop.permute.xlu0 %43
    %vm45 = vcmask 326944
    %46 = vst.msk [vmem:[#allocation0] sm:$0x1] %vm45, %v44
    %s47 = scalar_lea.vmem %s0, 8
    %v48 = vld [vmem:[%s47] sm:$0x1]
    %49 = vrot.lane.b32.xlu0 %v48, 32
    %v50 = vpop.permute.xlu0 %49
    %vm51 = vcmask 294144
    %52 = vst.msk [vmem:[#allocation0] sm:$0x1] %vm51, %v50
    %s53 = scalar_lea.vmem %s0, 7
    %v54 = vld [vmem:[%s53] sm:$0x1]
    %55 = vrot.lane.b32.xlu0 %v54, 28
    %v56 = vpop.permute.xlu0 %55
    %vm57 = vcmask 261344
    %58 = vst.msk [vmem:[#allocation0] sm:$0x1] %vm57, %v56
    %s59 = scalar_lea.vmem %s0, 6
    %v60 = vld [vmem:[%s59] sm:$0x1]
    %61 = vrot.lane.b32.xlu0 %v60, 24
    %v62 = vpop.permute.xlu0 %61
    %vm63 = vcmask 228544
    %64 = vst.msk [vmem:[#allocation0] sm:$0x1] %vm63, %v62
    %s65 = scalar_lea.vmem %s0, 5
    %v66 = vld [vmem:[%s65] sm:$0x1]
    %67 = vrot.lane.b32.xlu0 %v66, 20
    %v68 = vpop.permute.xlu0 %67
    %vm69 = vcmask 195744
    %70 = vst.msk [vmem:[#allocation0] sm:$0x1] %vm69, %v68
    %s71 = scalar_lea.vmem %s0, 4
    %v72 = vld [vmem:[%s71] sm:$0x1]
    %73 = vrot.lane.b32.xlu0 %v72, 16
    %v74 = vpop.permute.xlu0 %73
    %vm75 = vcmask 162944
    %76 = vst.msk [vmem:[#allocation0] sm:$0x1] %vm75, %v74
    %s77 = scalar_lea.vmem %s0, 3
    %v78 = vld [vmem:[%s77] sm:$0x1]
    %79 = vrot.lane.b32.xlu0 %v78, 12
    %v80 = vpop.permute.xlu0 %79
    %vm81 = vcmask 130144
    %82 = vst.msk [vmem:[#allocation0] sm:$0x1] %vm81, %v80
    %s83 = scalar_lea.vmem %s0, 2
    %v84 = vld [vmem:[%s83] sm:$0x1]
    %85 = vrot.lane.b32.xlu0 %v84, 8
    %v86 = vpop.permute.xlu0 %85
    %vm87 = vcmask 97344
    %88 = vst.msk [vmem:[#allocation0] sm:$0x1] %vm87, %v86
    %s89 = scalar_lea.vmem %s0, 1
    %v90 = vld [vmem:[%s89] sm:$0x1]
    %91 = vrot.lane.b32.xlu0 %v90, 4
    %v92 = vpop.permute.xlu0 %91
    %vm93 = vcmask 64544
    %94 = vst.msk [vmem:[#allocation0] sm:$0x1] %vm93, %v92
    %s96 = sshllo.u32 0, 1
    %v98 = vld [vmem:[#allocation0] sm:%s96]
    %s99 = sshllo.u32 0, 1
    %100 = vst [vmem:[%s1] sm:%s99] %v98

// kernel: een_forward.1
$region0: #{een_forward.1}
  #allocation0 [shape = 'u32[]', space=smem, size = 0x4, offset = 0x4, fixed_abs, tag = 'smem constant byte address 0x4 - core index']
  #allocation1 [shape = 'u32[144,128]{1,0:T(1,128)}', space=vmem, size = 0x12000, scoped, tag = 'internal scratch']
  #allocation2 [shape = 'f32[8,96]{1,0:T(8,128)}', space=vmem, size = 0x1000, scoped, tag = 'scratch operand']
  #allocation3 [shape = 'f32[8,290]{1,0:T(8,128)}', space=vmem, size = 0x3000, scoped, tag = 'scratch operand']
  %s0 = inlined_call_operand.smem [shape: u32[37], index: -1, kind: input, shape index: {}]
  %s1 = sld [smem:[%s0]]
  %s2 = scalar_lea.smem %s0, 1
  %s3 = sld [smem:[%s2]]
  %s4 = scalar_lea.smem %s0, 2
  %s5 = sld [smem:[%s4]]
  %s6 = scalar_lea.smem %s0, 3
  %s7 = sld [smem:[%s6]]
  %s8 = scalar_lea.smem %s0, 4
  %s9 = sld [smem:[%s8]]
  %s10 = scalar_lea.smem %s0, 5
  %s11 = sld [smem:[%s10]]
  %s12 = scalar_lea.smem %s0, 6
  %s13 = sld [smem:[%s12]]
  %s14 = scalar_lea.smem %s0, 7
  %s15 = sld [smem:[%s14]]
  %s16 = scalar_lea.smem %s0, 8
  %s17 = sld [smem:[%s16]]
  %s18 = scalar_lea.smem %s0, 9
  %s19 = sld [smem:[%s18]]
  %s20 = scalar_lea.smem %s0, 10
  %s21 = sld [smem:[%s20]]
  %s22 = scalar_lea.smem %s0, 11
  %s23 = sld [smem:[%s22]]
  %s24 = scalar_lea.smem %s0, 12
  %s25 = sld [smem:[%s24]]
  %s26 = scalar_lea.smem %s0, 13
  %s27 = sld [smem:[%s26]]
  %s28 = scalar_lea.smem %s0, 14
  %s29 = sld [smem:[%s28]]
  %s30 = scalar_lea.smem %s0, 15
  %s31 = sld [smem:[%s30]]
  %s32 = scalar_lea.smem %s0, 16
  %s33 = sld [smem:[%s32]]
  %s34 = scalar_lea.smem %s0, 17
  %s35 = sld [smem:[%s34]]
  %s36 = scalar_lea.smem %s0, 18
  %s37 = sld [smem:[%s36]]
  %s38 = scalar_lea.smem %s0, 19
  %s39 = sld [smem:[%s38]]
  %s40 = scalar_lea.smem %s0, 20
  %s41 = sld [smem:[%s40]]
  %s42 = scalar_lea.smem %s0, 21
  %s43 = sld [smem:[%s42]]
  %s44 = scalar_lea.smem %s0, 22
  %s45 = sld [smem:[%s44]]
  %s46 = scalar_lea.smem %s0, 23
  %s47 = sld [smem:[%s46]]
  %s48 = scalar_lea.smem %s0, 24
  %s49 = sld [smem:[%s48]]
  %s50 = scalar_lea.smem %s0, 25
  %s51 = sld [smem:[%s50]]
  %s52 = scalar_lea.smem %s0, 26
  %s53 = sld [smem:[%s52]]
  %s54 = scalar_lea.smem %s0, 27
  %s55 = sld [smem:[%s54]]
  %s56 = scalar_lea.smem %s0, 28
  %s57 = sld [smem:[%s56]]
  %s58 = scalar_lea.smem %s0, 29
  %s59 = sld [smem:[%s58]]
  %s60 = scalar_lea.smem %s0, 30
  %s61 = sld [smem:[%s60]]
  %s62 = scalar_lea.smem %s0, 31
  %s63 = sld [smem:[%s62]]
  %s64 = scalar_lea.smem %s0, 32
  %s65 = sld [smem:[%s64]]
  %s66 = scalar_lea.smem %s0, 33
  %s67 = sld [smem:[%s66]]
  %s68 = scalar_lea.smem %s0, 34
  %s69 = sld [smem:[%s68]]
  %s70 = scalar_lea.smem %s0, 35
  %s71 = sld [smem:[%s70]]
  %s72 = scalar_lea.smem %s0, 36
  %s73 = sld [smem:[%s72]]
  %s74 = sld [smem:[#allocation0]]
  $region190: #{een_forward.1} parent=0
    _
  %s76 = ssub.s32 1, %s74
  %s77 = scalar_select 0, %s76, %s74
  $region1: #{een_forward.1} parent=0
    #allocation4 [shape = 'u8[2048]{0}', space=vmem, size = 0x800, scoped, tag = 'input window, operand 10, single buffered']
    #allocation5 [shape = 's32[1]{0}', space=sflag, size = 0x4, scoped, tag = 'scoped memory for een_forward.1']
    #allocation6 [shape = 'u8[2048]{0}', space=vmem, size = 0x800, scoped, tag = 'input window, operand 12, single buffered']
    #allocation7 [shape = 's32[1]{0}', space=sflag, size = 0x4, scoped, tag = 'scoped memory for een_forward.1']
    #allocation8 [shape = 'u8[2048]{0}', space=vmem, size = 0x800, scoped, tag = 'input window, operand 16, single buffered']
    #allocation9 [shape = 'u8[2048]{0}', space=vmem, size = 0x800, scoped, tag = 'input window, operand 18, single buffered']
    #allocation10 [shape = 's32[1]{0}', space=sflag, size = 0x4, scoped, tag = 'scoped memory for een_forward.1']
    #allocation11 [shape = 'u8[2048]{0}', space=vmem, size = 0x800, scoped, tag = 'input window, operand 20, single buffered']
    #allocation12 [shape = 'u8[2048]{0}', space=vmem, size = 0x800, scoped, tag = 'input window, operand 22, single buffered']
    #allocation13 [shape = 's32[1]{0}', space=sflag, size = 0x4, scoped, tag = 'scoped memory for een_forward.1']
    #allocation14 [shape = 'u8[32768]{0}', space=vmem, size = 0x8000, scoped, tag = 'input window, operand 26, single buffered']
    #allocation15 [shape = 'u8[2048]{0}', space=vmem, size = 0x800, scoped, tag = 'input window, operand 29, single buffered']
    #allocation16 [shape = 's32[1]{0}', space=sflag, size = 0x4, scoped, tag = 'scoped memory for een_forward.1']
    #allocation17 [shape = 'u8[2048]{0}', space=vmem, size = 0x800, scoped, tag = 'input window, operand 31, single buffered']
    %78 = vsyncpa [#allocation5], 0
    %79 = vsyncpa [#allocation7], 0
    %80 = vsyncpa [#allocation10], 0
    %81 = vsyncpa [#allocation13], 0
    %82 = vsyncpa [#allocation16], 0
    // Predicated region
    $region2: #{een_forward.1} parent=1 // pred_check
      _
    $region3: #{een_forward.1} parent=1 // pred_check_branch
      %84 = sbr.rel (0) target = $region5
    $region4: #{een_forward.1} parent=1 // pred_region
      _
    $region5: #{een_forward.1} parent=1 // pred_fallthru
      _
    // Predicated region
    $region6: #{een_forward.1} parent=1 // pred_check
      _
    $region7: #{een_forward.1} parent=1 // pred_check_branch
      %86 = sbr.rel (0) target = $region9
    $region8: #{een_forward.1} parent=1 // pred_region
      _
    $region9: #{een_forward.1} parent=1 // pred_fallthru
      _
    // Predicated region
    $region10: #{een_forward.1} parent=1 // pred_check
      _
    $region11: #{een_forward.1} parent=1 // pred_check_branch
      %88 = sbr.rel (0) target = $region13
    $region12: #{een_forward.1} parent=1 // pred_region
      _
    $region13: #{een_forward.1} parent=1 // pred_fallthru
      _
    // Predicated region
    $region14: #{een_forward.1} parent=1 // pred_check
      _
    $region15: #{een_forward.1} parent=1 // pred_check_branch
      %90 = sbr.rel (0) target = $region17
    $region16: #{een_forward.1} parent=1 // pred_region
      _
    $region17: #{een_forward.1} parent=1 // pred_fallthru
      _
    // Predicated region
    $region18: #{een_forward.1} parent=1 // pred_check
      _
    $region19: #{een_forward.1} parent=1 // pred_check_branch
      %92 = sbr.rel (0) target = $region21
    $region20: #{een_forward.1} parent=1 // pred_region
      _
    $region21: #{een_forward.1} parent=1 // pred_fallthru
      _
    // Predicated region
    $region22: #{een_forward.1} parent=1 // pred_check
      _
    $region23: #{een_forward.1} parent=1 // pred_check_branch
      %94 = sbr.rel (0) target = $region25
    $region24: #{een_forward.1} parent=1 // pred_region
      _
    $region25: #{een_forward.1} parent=1 // pred_fallthru
      _
    // Predicated region
    $region26: #{een_forward.1} parent=1 // pred_check
      _
    $region27: #{een_forward.1} parent=1 // pred_check_branch
      %96 = sbr.rel (0) target = $region29
    $region28: #{een_forward.1} parent=1 // pred_region
      _
    $region29: #{een_forward.1} parent=1 // pred_fallthru
      _
    // Predicated region
    $region30: #{een_forward.1} parent=1 // pred_check
      _
    $region31: #{een_forward.1} parent=1 // pred_check_branch
      %98 = sbr.rel (0) target = $region33
    $region32: #{een_forward.1} parent=1 // pred_region
      _
    $region33: #{een_forward.1} parent=1 // pred_fallthru
      _
    // Predicated region
    $region34: #{een_forward.1} parent=1 // pred_check
      _
    $region35: #{een_forward.1} parent=1 // pred_check_branch
      %100 = sbr.rel (0) target = $region37
    $region36: #{een_forward.1} parent=1 // pred_region
      _
    $region37: #{een_forward.1} parent=1 // pred_fallthru
      _
    // Predicated region
    $region38: #{een_forward.1} parent=1 // pred_check
      _
    $region39: #{een_forward.1} parent=1 // pred_check_branch
      %102 = sbr.rel (0) target = $region41
    $region40: #{een_forward.1} parent=1 // pred_region
      _
    $region41: #{een_forward.1} parent=1 // pred_fallthru
      _
    // Predicated region
    $region42: #{een_forward.1} parent=1 // pred_check
      _
    $region43: #{een_forward.1} parent=1 // pred_check_branch
      %104 = sbr.rel (0) target = $region45
    $region44: #{een_forward.1} parent=1 // pred_region
      %s106 = ssub.s32 64, 64
      %107 = vsyncadd [#allocation5], %s106
      %s109 = sshll.u32 [#allocation4], 4
      %s110 = int_to_ptr.vmem [resolvable:$true] %s109
      %112 = dma.hbm_to_vmem [thread:$0]  %s21, 64, %s110, [#allocation5]
    $region45: #{een_forward.1} parent=1 // pred_fallthru
      _
    // Predicated region
    $region46: #{een_forward.1} parent=1 // pred_check
      _
    $region47: #{een_forward.1} parent=1 // pred_check_branch
      %114 = sbr.rel (0) target = $region49
    $region48: #{een_forward.1} parent=1 // pred_region
      _
    $region49: #{een_forward.1} parent=1 // pred_fallthru
      _
    // Predicated region
    $region50: #{een_forward.1} parent=1 // pred_check
      _
    $region51: #{een_forward.1} parent=1 // pred_check_branch
      %116 = sbr.rel (0) target = $region53
    $region52: #{een_forward.1} parent=1 // pred_region
      %s118 = ssub.s32 64, 64
      %119 = vsyncadd [#allocation7], %s118
      %s121 = sshll.u32 [#allocation6], 4
      %s122 = int_to_ptr.vmem [resolvable:$true] %s121
      %124 = dma.hbm_to_vmem [thread:$0]  %s25, 64, %s122, [#allocation7]
    $region53: #{een_forward.1} parent=1 // pred_fallthru
      _
    // Predicated region
    $region54: #{een_forward.1} parent=1 // pred_check
      _
    $region55: #{een_forward.1} parent=1 // pred_check_branch
      %126 = sbr.rel (0) target = $region57
    $region56: #{een_forward.1} parent=1 // pred_region
      _
    $region57: #{een_forward.1} parent=1 // pred_fallthru
      _
    // Predicated region
    $region58: #{een_forward.1} parent=1 // pred_check
      _
    $region59: #{een_forward.1} parent=1 // pred_check_branch
      %128 = sbr.rel (0) target = $region61
    $region60: #{een_forward.1} parent=1 // pred_region
      _
    $region61: #{een_forward.1} parent=1 // pred_fallthru
      _
    // Predicated region
    $region62: #{een_forward.1} parent=1 // pred_check
      _
    $region63: #{een_forward.1} parent=1 // pred_check_branch
      %130 = sbr.rel (0) target = $region65
    $region64: #{een_forward.1} parent=1 // pred_region
      _
    $region65: #{een_forward.1} parent=1 // pred_fallthru
      _
    // Predicated region
    $region66: #{een_forward.1} parent=1 // pred_check
      _
    $region67: #{een_forward.1} parent=1 // pred_check_branch
      %132 = sbr.rel (0) target = $region69
    $region68: #{een_forward.1} parent=1 // pred_region
      %s134 = ssub.s32 64, 64
      %135 = vsyncadd [#allocation7], %s134
      %s137 = sshll.u32 [#allocation8], 4
      %s138 = int_to_ptr.vmem [resolvable:$true] %s137
      %140 = dma.hbm_to_vmem [thread:$0]  %s33, 64, %s138, [#allocation7]
    $region69: #{een_forward.1} parent=1 // pred_fallthru
      _
    // Predicated region
    $region70: #{een_forward.1} parent=1 // pred_check
      _
    $region71: #{een_forward.1} parent=1 // pred_check_branch
      %142 = sbr.rel (0) target = $region73
    $region72: #{een_forward.1} parent=1 // pred_region
      _
    $region73: #{een_forward.1} parent=1 // pred_fallthru
      _
    // Predicated region
    $region74: #{een_forward.1} parent=1 // pred_check
      _
    $region75: #{een_forward.1} parent=1 // pred_check_branch
      %144 = sbr.rel (0) target = $region77
    $region76: #{een_forward.1} parent=1 // pred_region
      %s146 = ssub.s32 64, 64
      %147 = vsyncadd [#allocation10], %s146
      %s149 = sshll.u32 [#allocation9], 4
      %s150 = int_to_ptr.vmem [resolvable:$true] %s149
      %152 = dma.hbm_to_vmem [thread:$0]  %s37, 64, %s150, [#allocation10]
    $region77: #{een_forward.1} parent=1 // pred_fallthru
      _
    // Predicated region
    $region78: #{een_forward.1} parent=1 // pred_check
      _
    $region79: #{een_forward.1} parent=1 // pred_check_branch
      %154 = sbr.rel (0) target = $region81
    $region80: #{een_forward.1} parent=1 // pred_region
      _
    $region81: #{een_forward.1} parent=1 // pred_fallthru
      _
    // Predicated region
    $region82: #{een_forward.1} parent=1 // pred_check
      _
    $region83: #{een_forward.1} parent=1 // pred_check_branch
      %156 = sbr.rel (0) target = $region85
    $region84: #{een_forward.1} parent=1 // pred_region
      %s158 = ssub.s32 64, 64
      %159 = vsyncadd [#allocation10], %s158
      %s161 = sshll.u32 [#allocation11], 4
      %s162 = int_to_ptr.vmem [resolvable:$true] %s161
      %164 = dma.hbm_to_vmem [thread:$0]  %s41, 64, %s162, [#allocation10]
    $region85: #{een_forward.1} parent=1 // pred_fallthru
      _
    // Predicated region
    $region86: #{een_forward.1} parent=1 // pred_check
      _
    $region87: #{een_forward.1} parent=1 // pred_check_branch
      %166 = sbr.rel (0) target = $region89
    $region88: #{een_forward.1} parent=1 // pred_region
      _
    $region89: #{een_forward.1} parent=1 // pred_fallthru
      _
    // Predicated region
    $region90: #{een_forward.1} parent=1 // pred_check
      _
    $region91: #{een_forward.1} parent=1 // pred_check_branch
      %168 = sbr.rel (0) target = $region93
    $region92: #{een_forward.1} parent=1 // pred_region
      %s170 = ssub.s32 64, 64
      %171 = vsyncadd [#allocation13], %s170
      %s173 = sshll.u32 [#allocation12], 4
      %s174 = int_to_ptr.vmem [resolvable:$true] %s173
      %176 = dma.hbm_to_vmem [thread:$0]  %s45, 64, %s174, [#allocation13]
    $region93: #{een_forward.1} parent=1 // pred_fallthru
      _
    // Predicated region
    $region94: #{een_forward.1} parent=1 // pred_check
      _
    $region95: #{een_forward.1} parent=1 // pred_check_branch
      %178 = sbr.rel (0) target = $region97
    $region96: #{een_forward.1} parent=1 // pred_region
      _
    $region97: #{een_forward.1} parent=1 // pred_fallthru
      _
    // Predicated region
    $region98: #{een_forward.1} parent=1 // pred_check
      _
    $region99: #{een_forward.1} parent=1 // pred_check_branch
      %180 = sbr.rel (0) target = $region101
    $region100: #{een_forward.1} parent=1 // pred_region
      _
    $region101: #{een_forward.1} parent=1 // pred_fallthru
      _
    // Predicated region
    $region102: #{een_forward.1} parent=1 // pred_check
      _
    $region103: #{een_forward.1} parent=1 // pred_check_branch
      %182 = sbr.rel (0) target = $region105
    $region104: #{een_forward.1} parent=1 // pred_region
      _
    $region105: #{een_forward.1} parent=1 // pred_fallthru
      _
    // Predicated region
    $region106: #{een_forward.1} parent=1 // pred_check
      _
    $region107: #{een_forward.1} parent=1 // pred_check_branch
      %184 = sbr.rel (0) target = $region109
    $region108: #{een_forward.1} parent=1 // pred_region
      %s186 = ssub.s32 1024, 1024
      %187 = vsyncadd [#allocation13], %s186
      %s188 = sshll.u32 [#allocation14], 4
      %s189 = int_to_ptr.vmem [resolvable:$true] %s188
      %194 = dma.hbm_to_vmem [thread:$0]  %s53, 1024, %s189, [#allocation13], 128, 128, 8
    $region109: #{een_forward.1} parent=1 // pred_fallthru
      _
    // Predicated region
    $region110: #{een_forward.1} parent=1 // pred_check
      _
    $region111: #{een_forward.1} parent=1 // pred_check_branch
      %196 = sbr.rel (0) target = $region113
    $region112: #{een_forward.1} parent=1 // pred_region
      _
    $region113: #{een_forward.1} parent=1 // pred_fallthru
      _
    // Predicated region
    $region114: #{een_forward.1} parent=1 // pred_check
      _
    $region115: #{een_forward.1} parent=1 // pred_check_branch
      %198 = sbr.rel (0) target = $region117
    $region116: #{een_forward.1} parent=1 // pred_region
      _
    $region117: #{een_forward.1} parent=1 // pred_fallthru
      _
    // Predicated region
    $region118: #{een_forward.1} parent=1 // pred_check
      _
    $region119: #{een_forward.1} parent=1 // pred_check_branch
      %200 = sbr.rel (0) target = $region121
    $region120: #{een_forward.1} parent=1 // pred_region
      %s202 = ssub.s32 64, 64
      %203 = vsyncadd [#allocation16], %s202
      %s205 = sshll.u32 [#allocation15], 4
      %s206 = int_to_ptr.vmem [resolvable:$true] %s205
      %208 = dma.hbm_to_vmem [thread:$0]  %s59, 64, %s206, [#allocation16]
    $region121: #{een_forward.1} parent=1 // pred_fallthru
      _
    // Predicated region
    $region122: #{een_forward.1} parent=1 // pred_check
      _
    $region123: #{een_forward.1} parent=1 // pred_check_branch
      %210 = sbr.rel (0) target = $region125
    $region124: #{een_forward.1} parent=1 // pred_region
      _
    $region125: #{een_forward.1} parent=1 // pred_fallthru
      _
    // Predicated region
    $region126: #{een_forward.1} parent=1 // pred_check
      _
    $region127: #{een_forward.1} parent=1 // pred_check_branch
      %212 = sbr.rel (0) target = $region129
    $region128: #{een_forward.1} parent=1 // pred_region
      %s214 = ssub.s32 64, 64
      %215 = vsyncadd [#allocation16], %s214
      %s217 = sshll.u32 [#allocation17], 4
      %s218 = int_to_ptr.vmem [resolvable:$true] %s217
      %220 = dma.hbm_to_vmem [thread:$0]  %s63, 64, %s218, [#allocation16]
    $region129: #{een_forward.1} parent=1 // pred_fallthru
      _
    // Predicated region
    $region130: #{een_forward.1} parent=1 // pred_check
      _
    $region131: #{een_forward.1} parent=1 // pred_check_branch
      %222 = sbr.rel (0) target = $region133
    $region132: #{een_forward.1} parent=1 // pred_region
      _
    $region133: #{een_forward.1} parent=1 // pred_fallthru
      _
    // Predicated region
    $region134: #{een_forward.1} parent=1 // pred_check
      _
    $region135: #{een_forward.1} parent=1 // pred_check_branch
      %224 = sbr.rel (0) target = $region137
    $region136: #{een_forward.1} parent=1 // pred_region
      _
    $region137: #{een_forward.1} parent=1 // pred_fallthru
      _
    // Predicated region
    $region138: #{een_forward.1} parent=1 // pred_check
      _
    $region139: #{een_forward.1} parent=1 // pred_check_branch
      %226 = sbr.rel (0) target = $region141
    $region140: #{een_forward.1} parent=1 // pred_region
      _
    $region141: #{een_forward.1} parent=1 // pred_fallthru
      _
    // Predicated region
    $region142: #{een_forward.1} parent=1 // pred_check
      _
    $region143: #{een_forward.1} parent=1 // pred_check_branch
      %228 = sbr.rel (0) target = $region145
    $region144: #{een_forward.1} parent=1 // pred_region
      _
    $region145: #{een_forward.1} parent=1 // pred_fallthru
      _
    // Predicated region
    $region146: #{een_forward.1} parent=1 // pred_check
      _
    $region147: #{een_forward.1} parent=1 // pred_check_branch
      %230 = sbr.rel (0) target = $region149
    $region148: #{een_forward.1} parent=1 // pred_region
      %231 = dma.done [#allocation5], 64
    $region149: #{een_forward.1} parent=1 // pred_fallthru
      _
    // Predicated region
    $region150: #{een_forward.1} parent=1 // pred_check
      _
    $region151: #{een_forward.1} parent=1 // pred_check_branch
      %233 = sbr.rel (0) target = $region153
    $region152: #{een_forward.1} parent=1 // pred_region
      %234 = dma.done [#allocation7], 64
    $region153: #{een_forward.1} parent=1 // pred_fallthru
      _
    // Predicated region
    $region154: #{een_forward.1} parent=1 // pred_check
      _
    $region155: #{een_forward.1} parent=1 // pred_check_branch
      %236 = sbr.rel (0) target = $region157
    $region156: #{een_forward.1} parent=1 // pred_region
      %237 = dma.done [#allocation7], 64
    $region157: #{een_forward.1} parent=1 // pred_fallthru
      _
    // Predicated region
    $region158: #{een_forward.1} parent=1 // pred_check
      _
    $region159: #{een_forward.1} parent=1 // pred_check_branch
      %239 = sbr.rel (0) target = $region161
    $region160: #{een_forward.1} parent=1 // pred_region
      %240 = dma.done [#allocation10], 64
    $region161: #{een_forward.1} parent=1 // pred_fallthru
      _
    // Predicated region
    $region162: #{een_forward.1} parent=1 // pred_check
      _
    $region163: #{een_forward.1} parent=1 // pred_check_branch
      %242 = sbr.rel (0) target = $region165
    $region164: #{een_forward.1} parent=1 // pred_region
      %243 = dma.done [#allocation10], 64
    $region165: #{een_forward.1} parent=1 // pred_fallthru
      _
    // Predicated region
    $region166: #{een_forward.1} parent=1 // pred_check
      _
    $region167: #{een_forward.1} parent=1 // pred_check_branch
      %245 = sbr.rel (0) target = $region169
    $region168: #{een_forward.1} parent=1 // pred_region
      %246 = dma.done [#allocation13], 64
    $region169: #{een_forward.1} parent=1 // pred_fallthru
      _
    // Predicated region
    $region170: #{een_forward.1} parent=1 // pred_check
      _
    $region171: #{een_forward.1} parent=1 // pred_check_branch
      %248 = sbr.rel (0) target = $region173
    $region172: #{een_forward.1} parent=1 // pred_region
      %249 = dma.done [#allocation13], 1024
    $region173: #{een_forward.1} parent=1 // pred_fallthru
      _
    // Predicated region
    $region174: #{een_forward.1} parent=1 // pred_check
      _
    $region175: #{een_forward.1} parent=1 // pred_check_branch
      %251 = sbr.rel (0) target = $region177
    $region176: #{een_forward.1} parent=1 // pred_region
      %252 = dma.done [#allocation16], 64
    $region177: #{een_forward.1} parent=1 // pred_fallthru
      _
    // Predicated region
    $region178: #{een_forward.1} parent=1 // pred_check
      _
    $region179: #{een_forward.1} parent=1 // pred_check_branch
      %254 = sbr.rel (0) target = $region181
    $region180: #{een_forward.1} parent=1 // pred_region
      %255 = dma.done [#allocation16], 64
    $region181: #{een_forward.1} parent=1 // pred_fallthru
      _
    %v256 = vld [vmem:[%s1] sm:$0xff]
    %v257 = vld [vmem:[%s1 + $0x8] sm:$0xff]
    %v258 = vld [vmem:[%s3] sm:$0xff]
    %v259 = vld [vmem:[%s3 + $0x8] sm:$0xff]
    %v260 = vld [vmem:[%s3 + $0x10] sm:$0xff]
    %v261 = vld [vmem:[%s3 + $0x18] sm:$0xff]
    %v262 = vld [vmem:[%s3 + $0x20] sm:$0xff]
    %v263 = vld [vmem:[%s3 + $0x28] sm:$0xff]
    %v264 = vld [vmem:[%s3 + $0x30] sm:$0xff]
    %v265 = vld [vmem:[%s3 + $0x38] sm:$0xff]
    %v266 = vld [vmem:[%s3 + $0x40] sm:$0xff]
    %v267 = vld [vmem:[%s3 + $0x48] sm:$0xff]
    %v268 = vld [vmem:[%s3 + $0x50] sm:$0xff]
    %v269 = vld [vmem:[%s3 + $0x58] sm:$0xff]
    %v270 = vld [vmem:[%s3 + $0x60] sm:$0xff]
    %v271 = vld [vmem:[%s3 + $0x68] sm:$0xff]
    %v272 = vld [vmem:[%s3 + $0x70] sm:$0xff]
    %v273 = vld [vmem:[%s3 + $0x78] sm:$0xff]
    %v274 = vld [vmem:[%s3 + $0x80] sm:$0xff]
    %v275 = vld [vmem:[%s3 + $0x88] sm:$0xff]
    %v276 = vld [vmem:[%s3 + $0x90] sm:$0xff]
    %v277 = vld [vmem:[%s3 + $0x98] sm:$0xff]
    %v278 = vld [vmem:[%s3 + $0xa0] sm:$0xff]
    %v279 = vld [vmem:[%s3 + $0xa8] sm:$0xff]
    %v280 = vld [vmem:[%s3 + $0xb0] sm:$0xff]
    %v281 = vld [vmem:[%s3 + $0xb8] sm:$0xff]
    %v282 = vld [vmem:[%s3 + $0xc0] sm:$0xff]
    %v283 = vld [vmem:[%s3 + $0xc8] sm:$0xff]
    %v284 = vld [vmem:[%s3 + $0xd0] sm:$0xff]
    %v285 = vld [vmem:[%s3 + $0xd8] sm:$0xff]
    %v286 = vld [vmem:[%s3 + $0xe0] sm:$0xff]
    %v287 = vld [vmem:[%s3 + $0xe8] sm:$0xff]
    %v288 = vld [vmem:[%s3 + $0xf0] sm:$0xff]
    %v289 = vld [vmem:[%s3 + $0xf8] sm:$0xff]
    %290 = vmatprep.subr.mxu0 0.0
    %291 = vmatpush1.msra.mxu0 %v258
    %292 = vmatprep.subr.mxu0 0.0
    %293 = vmatpush1.msra.mxu0 %v259
    %294 = vmatprep.subr.mxu0 0.0
    %295 = vmatpush1.msra.mxu0 %v260
    %296 = vmatprep.subr.mxu0 0.0
    %297 = vmatpush1.msra.mxu0 %v261
    %298 = vmatprep.subr.mxu0 0.0
    %299 = vmatpush1.msra.mxu0 %v262
    %300 = vmatprep.subr.mxu0 0.0
    %301 = vmatpush1.msra.mxu0 %v263
    %302 = vmatprep.subr.mxu0 0.0
    %303 = vmatpush1.msra.mxu0 %v264
    %304 = vmatprep.subr.mxu0 0.0
    %305 = vmatpush1.msra.mxu0 %v265
    %306 = vmatprep.subr.mxu0 0.0
    %307 = vmatpush1.msra.mxu0 %v266
    %308 = vmatprep.subr.mxu0 0.0
    %309 = vmatpush1.msra.mxu0 %v267
    %310 = vmatprep.subr.mxu0 0.0
    %311 = vmatpush1.msra.mxu0 %v268
    %312 = vmatprep.subr.mxu0 0.0
    %313 = vmatpush1.msra.mxu0 %v269
    %314 = vmatprep.subr.mxu0 0.0
    %315 = vmatpush1.msra.mxu0 %v270
    %316 = vmatprep.subr.mxu0 0.0
    %317 = vmatpush1.msra.mxu0 %v271
    %318 = vmatprep.subr.mxu0 0.0
    %319 = vmatpush1.msra.mxu0 %v272
    %320 = vmatprep.subr.mxu0 0.0
    %321 = vmatpush1.msra.mxu0 %v273
    %322 = vmatprep.subr.mxu0 0.0
    %323 = vmatpush1.msra.mxu0 %v274
    %324 = vmatprep.subr.mxu0 0.0
    %325 = vmatpush1.msra.mxu0 %v275
    %326 = vmatprep.subr.mxu0 0.0
    %327 = vmatpush1.msra.mxu0 %v276
    %328 = vmatprep.subr.mxu0 0.0
    %329 = vmatpush1.msra.mxu0 %v277
    %330 = vmatprep.subr.mxu0 0.0
    %331 = vmatpush1.msra.mxu0 %v278
    %332 = vmatprep.subr.mxu0 0.0
    %333 = vmatpush1.msra.mxu0 %v279
    %334 = vmatprep.subr.mxu0 0.0
    %335 = vmatpush1.msra.mxu0 %v280
    %336 = vmatprep.subr.mxu0 0.0
    %337 = vmatpush1.msra.mxu0 %v281
    %338 = vmatprep.subr.mxu0 0.0
    %339 = vmatpush1.msra.mxu0 %v282
    %340 = vmatprep.subr.mxu0 0.0
    %341 = vmatpush1.msra.mxu0 %v283
    %342 = vmatprep.subr.mxu0 0.0
    %343 = vmatpush1.msra.mxu0 %v284
    %344 = vmatprep.subr.mxu0 0.0
    %345 = vmatpush1.msra.mxu0 %v285
    %346 = vmatprep.subr.mxu0 0.0
    %347 = vmatpush1.msra.mxu0 %v286
    %348 = vmatprep.subr.mxu0 0.0
    %349 = vmatpush1.msra.mxu0 %v287
    %350 = vmatprep.subr.mxu0 0.0
    %351 = vmatpush1.msra.mxu0 %v288
    %352 = vmatprep.subr.mxu0 0.0
    %353 = vmatpush1.msra.mxu0 %v289
    %354 = vmatprep.mubr.f32.mxu0 %v257
    %355 = vmatmul.mubr.f32.gmra.mrb[0].mxu0 %v256
    %v356 = vpop.f32.mrb[0].mxu0
    %v357 = vadd.f32 0.0, %v356
    %v358 = vpop.f32.mrb[0].mxu0
    %359 = vdwg.mxu0
    %vm360 = vcmask 523264
    %v361 = vsel %vm360, %v357, 0.0
    %362 = vadd.xlane.f32.xlu0 %v361
    %v363 = vpop.xlane.xlu0 %362
    %v364 = vrcp.pop 64.0
    %v365 = vmul.f32 %v363, %v364
    %v366 = vmul.f32 %v357, %v365
    %v367 = vld [vmem:[%s5] sm:$0xf]
    %v368 = vld [vmem:[%s7] sm:$0xf]
    %370 = vset.pattern.permute.xlu0 0
    %371 = vperm.xlu0 %370, %v368
    %v372 = vpop.permute.xlu0 %371
    %vm374 = vcmask 31744
    %v376 = vsel %vm374, %v367, 0
    %vm378 = vcmask 1043456
    %v380 = vsel %vm378, %v366, 0
    %382 = vmatprep.subr.mxu0 0.0
    %383 = vmatpush1.msra.mxu0 %v380
    %384 = vmatprep.subr.mxu0 0.0
    %385 = vmatpush1.msra.mxu0 0.0
    %386 = vmatprep.subr.mxu0 0.0
    %387 = vmatpush1.msra.mxu0 0.0
    %388 = vmatprep.subr.mxu0 0.0
    %389 = vmatpush1.msra.mxu0 0.0
    %390 = vmatprep.subr.mxu0 0.0
    %391 = vmatpush1.msra.mxu0 0.0
    %392 = vmatprep.subr.mxu0 0.0
    %393 = vmatpush1.msra.mxu0 0.0
    %394 = vmatprep.subr.mxu0 0.0
    %395 = vmatpush1.msra.mxu0 0.0
    %396 = vmatprep.subr.mxu0 0.0
    %397 = vmatpush1.msra.mxu0 0.0
    %398 = vmatprep.subr.mxu0 0.0
    %399 = vmatpush1.msra.mxu0 0.0
    %400 = vmatprep.subr.mxu0 0.0
    %401 = vmatpush1.msra.mxu0 0.0
    %402 = vmatprep.subr.mxu0 0.0
    %403 = vmatpush1.msra.mxu0 0.0
    %404 = vmatprep.subr.mxu0 0.0
    %405 = vmatpush1.msra.mxu0 0.0
    %406 = vmatprep.subr.mxu0 0.0
    %407 = vmatpush1.msra.mxu0 0.0
    %408 = vmatprep.subr.mxu0 0.0
    %409 = vmatpush1.msra.mxu0 0.0
    %410 = vmatprep.subr.mxu0 0.0
    %411 = vmatpush1.msra.mxu0 0.0
    %412 = vmatprep.subr.mxu0 0.0
    %413 = vmatpush1.msra.mxu0 0.0
    %414 = vmatprep.subr.mxu0 0.0
    %415 = vmatpush1.msra.mxu0 0.0
    %416 = vmatprep.subr.mxu0 0.0
    %417 = vmatpush1.msra.mxu0 0.0
    %418 = vmatprep.subr.mxu0 0.0
    %419 = vmatpush1.msra.mxu0 0.0
    %420 = vmatprep.subr.mxu0 0.0
    %421 = vmatpush1.msra.mxu0 0.0
    %422 = vmatprep.subr.mxu0 0.0
    %423 = vmatpush1.msra.mxu0 0.0
    %424 = vmatprep.subr.mxu0 0.0
    %425 = vmatpush1.msra.mxu0 0.0
    %426 = vmatprep.subr.mxu0 0.0
    %427 = vmatpush1.msra.mxu0 0.0
    %428 = vmatprep.subr.mxu0 0.0
    %429 = vmatpush1.msra.mxu0 0.0
    %430 = vmatprep.subr.mxu0 0.0
    %431 = vmatpush1.msra.mxu0 0.0
    %432 = vmatprep.subr.mxu0 0.0
    %433 = vmatpush1.msra.mxu0 0.0
    %434 = vmatprep.subr.mxu0 0.0
    %435 = vmatpush1.msra.mxu0 0.0
    %436 = vmatprep.subr.mxu0 0.0
    %437 = vmatpush1.msra.mxu0 0.0
    %438 = vmatprep.subr.mxu0 0.0
    %439 = vmatpush1.msra.mxu0 0.0
    %440 = vmatprep.subr.mxu0 0.0
    %441 = vmatpush1.msra.mxu0 0.0
    %442 = vmatprep.subr.mxu0 0.0
    %443 = vmatpush1.msra.mxu0 0.0
    %444 = vmatprep.subr.mxu0 0.0
    %445 = vmatpush1.msra.mxu0 0.0
    %446 = vmatprep.mubr.f32.mxu0 0.0
    %447 = vmatmul.mubr.f32.gmra.mrb[0].mxu0 %v376
    %v448 = vpop.f32.mrb[0].mxu0
    %v449 = vadd.f32 %v372, %v448
    %v450 = vpop.f32.mrb[0].mxu0
    %451 = vdwg.mxu0
    %v452 = vrot.slane %v366, 4
    %v453 = vsel %vm378, %v452, 0
    %455 = vmatprep.subr.mxu0 0.0
    %456 = vmatpush1.msra.mxu0 %v453
    %457 = vmatprep.subr.mxu0 0.0
    %458 = vmatpush1.msra.mxu0 0.0
    %459 = vmatprep.subr.mxu0 0.0
    %460 = vmatpush1.msra.mxu0 0.0
    %461 = vmatprep.subr.mxu0 0.0
    %462 = vmatpush1.msra.mxu0 0.0
    %463 = vmatprep.subr.mxu0 0.0
    %464 = vmatpush1.msra.mxu0 0.0
    %465 = vmatprep.subr.mxu0 0.0
    %466 = vmatpush1.msra.mxu0 0.0
    %467 = vmatprep.subr.mxu0 0.0
    %468 = vmatpush1.msra.mxu0 0.0
    %469 = vmatprep.subr.mxu0 0.0
    %470 = vmatpush1.msra.mxu0 0.0
    %471 = vmatprep.subr.mxu0 0.0
    %472 = vmatpush1.msra.mxu0 0.0
    %473 = vmatprep.subr.mxu0 0.0
    %474 = vmatpush1.msra.mxu0 0.0
    %475 = vmatprep.subr.mxu0 0.0
    %476 = vmatpush1.msra.mxu0 0.0
    %477 = vmatprep.subr.mxu0 0.0
    %478 = vmatpush1.msra.mxu0 0.0
    %479 = vmatprep.subr.mxu0 0.0
    %480 = vmatpush1.msra.mxu0 0.0
    %481 = vmatprep.subr.mxu0 0.0
    %482 = vmatpush1.msra.mxu0 0.0
    %483 = vmatprep.subr.mxu0 0.0
    %484 = vmatpush1.msra.mxu0 0.0
    %485 = vmatprep.subr.mxu0 0.0
    %486 = vmatpush1.msra.mxu0 0.0
    %487 = vmatprep.subr.mxu0 0.0
    %488 = vmatpush1.msra.mxu0 0.0
    %489 = vmatprep.subr.mxu0 0.0
    %490 = vmatpush1.msra.mxu0 0.0
    %491 = vmatprep.subr.mxu0 0.0
    %492 = vmatpush1.msra.mxu0 0.0
    %493 = vmatprep.subr.mxu0 0.0
    %494 = vmatpush1.msra.mxu0 0.0
    %495 = vmatprep.subr.mxu0 0.0
    %496 = vmatpush1.msra.mxu0 0.0
    %497 = vmatprep.subr.mxu0 0.0
    %498 = vmatpush1.msra.mxu0 0.0
    %499 = vmatprep.subr.mxu0 0.0
    %500 = vmatpush1.msra.mxu0 0.0
    %501 = vmatprep.subr.mxu0 0.0
    %502 = vmatpush1.msra.mxu0 0.0
    %503 = vmatprep.subr.mxu0 0.0
    %504 = vmatpush1.msra.mxu0 0.0
    %505 = vmatprep.subr.mxu0 0.0
    %506 = vmatpush1.msra.mxu0 0.0
    %507 = vmatprep.subr.mxu0 0.0
    %508 = vmatpush1.msra.mxu0 0.0
    %509 = vmatprep.subr.mxu0 0.0
    %510 = vmatpush1.msra.mxu0 0.0
    %511 = vmatprep.subr.mxu0 0.0
    %512 = vmatpush1.msra.mxu0 0.0
    %513 = vmatprep.subr.mxu0 0.0
    %514 = vmatpush1.msra.mxu0 0.0
    %515 = vmatprep.subr.mxu0 0.0
    %516 = vmatpush1.msra.mxu0 0.0
    %517 = vmatprep.subr.mxu0 0.0
    %518 = vmatpush1.msra.mxu0 0.0
    %519 = vmatprep.mubr.f32.mxu0 0.0
    %520 = vmatmul.mubr.f32.gmra.mrb[0].mxu0 %v376
    %v521 = vpop.f32.mrb[0].mxu0
    %v522 = vadd.f32 %v372, %v521
    %v523 = vpop.f32.mrb[0].mxu0
    %524 = vdwg.mxu0
    %v526 = vrot.slane %v522, 4
    %v528 = vsel %vm378, %v449, %v526
    %vm529 = vcmask 785408
    %530 = vst.msk [vmem:[#allocation2] sm:$0xff] %vm529, 0.0
    %532 = vrot.lane.b32.xlu0 %v357, 16
    %v533 = vpop.permute.xlu0 %532
    %vm535 = vcmask 654464
    %536 = vst.msk [vmem:[#allocation2] sm:$0xff] %vm535, %v533
    %v537 = vld [vmem:[%s9] sm:$0xf]
    %v539 = vrot.slane %v537, 4
    %v541 = vsel %vm378, %v537, %v539
    %v542 = vld [vmem:[#allocation4] sm:$0xf]
    %v544 = vrot.slane %v542, 4
    %v546 = vsel %vm378, %v542, %v544
    %v547 = vld [vmem:[%s57] sm:$0x1f]
    %v548 = vld [vmem:[#allocation2] sm:$0xff]
    %550 = vset.pattern.permute.xlu0 0
    %551 = vperm.xlu0 %550, %v541
    %v552 = vpop.permute.xlu0 %551
    %v554 = vmul.f32 %v552, %v548
    %v555 = vadd.f32 %v554, 0.0
    %v556 = vlaneseq
    %v557 = vshrl.u32 %v556, 7
    %v558 = vsub.s32 0, %v557
    %v559 = vrot.slane %v547, %v558
    %561 = vrot.lane.b32.xlu0 %v559, 14
    %v562 = vpop.permute.xlu0 %561
    %v564 = vmul.f32 %v548, %v562
    %566 = vset.pattern.permute.xlu0 0
    %567 = vperm.xlu0 %566, %v546
    %v568 = vpop.permute.xlu0 %567
    %v570 = vmul.f32 %v568, %v564
    %v571 = vadd.f32 %v570, 0.0
    %572 = vset.pattern.permute.xlu0 1
    %573 = vperm.xlu0 %572, %v541
    %v574 = vpop.permute.xlu0 %573
    %v576 = vmul.f32 %v574, %v548
    %578 = vrot.lane.b32.xlu0 %v576, 120
    %v579 = vpop.permute.xlu0 %578
    %v581 = vadd.f32 %v555, %v579
    %v582 = vlaneseq
    %v583 = vshrl.u32 %v582, 7
    %v584 = vsub.s32 1, %v583
    %v585 = vrot.slane %v547, %v584
    %587 = vrot.lane.b32.xlu0 %v585, 15
    %v588 = vpop.permute.xlu0 %587
    %v590 = vmul.f32 %v548, %v588
    %591 = vset.pattern.permute.xlu0 1
    %592 = vperm.xlu0 %591, %v546
    %v593 = vpop.permute.xlu0 %592
    %v595 = vmul.f32 %v593, %v590
    %597 = vrot.lane.b32.xlu0 %v595, 127
    %v598 = vpop.permute.xlu0 %597
    %v600 = vadd.f32 %v571, %v598
    %601 = vset.pattern.permute.xlu0 2
    %602 = vperm.xlu0 %601, %v541
    %v603 = vpop.permute.xlu0 %602
    %v605 = vmul.f32 %v603, %v548
    %607 = vrot.lane.b32.xlu0 %v605, 112
    %v608 = vpop.permute.xlu0 %607
    %v610 = vadd.f32 %v581, %v608
    %611 = vset.pattern.permute.xlu0 2
    %612 = vperm.xlu0 %611, %v546
    %v613 = vpop.permute.xlu0 %612
    %v615 = vmul.f32 %v613, %v548
    %617 = vrot.lane.b32.xlu0 %v615, 126
    %v618 = vpop.permute.xlu0 %617
    %v620 = vadd.f32 %v600, %v618
    %621 = vset.pattern.permute.xlu0 3
    %622 = vperm.xlu0 %621, %v541
    %v623 = vpop.permute.xlu0 %622
    %v625 = vmul.f32 %v623, %v548
    %627 = vrot.lane.b32.xlu0 %v625, 104
    %v628 = vpop.permute.xlu0 %627
    %v630 = vadd.f32 %v610, %v628
    %v631 = vlaneseq
    %v632 = vshrl.u32 %v631, 7
    %v633 = vsub.s32 3, %v632
    %v634 = vrot.slane %v547, %v633
    %636 = vrot.lane.b32.xlu0 %v634, 17
    %v637 = vpop.permute.xlu0 %636
    %v639 = vmul.f32 %v548, %v637
    %640 = vset.pattern.permute.xlu0 3
    %641 = vperm.xlu0 %640, %v546
    %v642 = vpop.permute.xlu0 %641
    %v644 = vmul.f32 %v642, %v639
    %646 = vrot.lane.b32.xlu0 %v644, 125
    %v647 = vpop.permute.xlu0 %646
    %v649 = vadd.f32 %v620, %v647
    %650 = vset.pattern.permute.xlu0 4
    %651 = vperm.xlu0 %650, %v541
    %v652 = vpop.permute.xlu0 %651
    %v654 = vmul.f32 %v652, %v548
    %656 = vrot.lane.b32.xlu0 %v654, 96
    %v657 = vpop.permute.xlu0 %656
    %v659 = vadd.f32 %v630, %v657
    %v660 = vlaneseq
    %v661 = vshrl.u32 %v660, 7
    %v662 = vsub.s32 4, %v661
    %v663 = vrot.slane %v547, %v662
    %665 = vrot.lane.b32.xlu0 %v663, 18
    %v666 = vpop.permute.xlu0 %665
    %v668 = vmul.f32 %v548, %v666
    %669 = vset.pattern.permute.xlu0 4
    %670 = vperm.xlu0 %669, %v546
    %v671 = vpop.permute.xlu0 %670
    %v673 = vmul.f32 %v671, %v668
    %675 = vrot.lane.b32.xlu0 %v673, 124
    %v676 = vpop.permute.xlu0 %675
    %v678 = vadd.f32 %v649, %v676
    %v679 = vld [vmem:[%s11] sm:$0xf]
    %v681 = vrot.slane %v679, 4
    %v683 = vsel %vm378, %v679, %v681
    %685 = vset.pattern.permute.xlu0 0
    %686 = vperm.xlu0 %685, %v683
    %v687 = vpop.permute.xlu0 %686
    %v689 = vadd.f32 %v659, %v687
    %v690 = vmul.f32 %v689, 0.5
    %v691 = vmul.f32 %v689, 0.70710677
    %vm692 = vcmp.ge.f32.partialorder %v691, 0.0
    %v693 = vsel %vm692, 1.0, -1.0
    %v694 = vmul.f32 %v691, %v693
    %v695 = vmul.f32 %v694, 0.3275911
    %v696 = vadd.f32 %v695, 1.0
    %v697 = vrcp.pop %v696
    %v698 = vmul.f32 1.0, %v697
    %v699 = vmul.f32 %v698, 1.0614054
    %v700 = vadd.f32 %v699, -1.4531521
    %v701 = vmul.f32 %v700, %v698
    %v702 = vadd.f32 %v701, 1.4214138
    %v703 = vmul.f32 %v702, %v698
    %v704 = vadd.f32 %v703, -0.28449672
    %v705 = vmul.f32 %v704, %v698
    %v706 = vadd.f32 %v705, 0.2548296
    %v707 = vmul.f32 %v706, %v698
    %v708 = vsub.f32 0.0, %v694
    %v709 = vmul.f32 %v708, %v694
    %v710 = vmul.f32 %v709, 1.442695
    %v711 = vpow.pop %v710
    %v712 = vmul.f32 %v707, %v711
    %v713 = vsub.f32 1.0, %v712
    %v714 = vmul.f32 %v693, %v713
    %v715 = vadd.f32 %v714, 1.0
    %v716 = vmul.f32 %v690, %v715
    %v717 = vld [vmem:[%s23] sm:$0xf]
    %v719 = vrot.slane %v717, 4
    %v721 = vsel %vm378, %v717, %v719
    %723 = vset.pattern.permute.xlu0 0
    %724 = vperm.xlu0 %723, %v721
    %v725 = vpop.permute.xlu0 %724
    %v727 = vadd.f32 %v678, %v725
    %v728 = vmul.f32 %v727, 0.5
    %v729 = vmul.f32 %v727, 0.70710677
    %vm730 = vcmp.ge.f32.partialorder %v729, 0.0
    %v731 = vsel %vm730, 1.0, -1.0
    %v732 = vmul.f32 %v729, %v731
    %v733 = vmul.f32 %v732, 0.3275911
    %v734 = vadd.f32 %v733, 1.0
    %v735 = vrcp.pop %v734
    %v736 = vmul.f32 1.0, %v735
    %v737 = vmul.f32 %v736, 1.0614054
    %v738 = vadd.f32 %v737, -1.4531521
    %v739 = vmul.f32 %v738, %v736
    %v740 = vadd.f32 %v739, 1.4214138
    %v741 = vmul.f32 %v740, %v736
    %v742 = vadd.f32 %v741, -0.28449672
    %v743 = vmul.f32 %v742, %v736
    %v744 = vadd.f32 %v743, 0.2548296
    %v745 = vmul.f32 %v744, %v736
    %v746 = vsub.f32 0.0, %v732
    %v747 = vmul.f32 %v746, %v732
    %v748 = vmul.f32 %v747, 1.442695
    %v749 = vpow.pop %v748
    %v750 = vmul.f32 %v745, %v749
    %v751 = vsub.f32 1.0, %v750
    %v752 = vmul.f32 %v731, %v751
    %v753 = vadd.f32 %v752, 1.0
    %v754 = vmul.f32 %v728, %v753
    %v755 = vld [vmem:[%s13] sm:$0xf]
    %v756 = vld [vmem:[%s15] sm:$0xf]
    %758 = vset.pattern.permute.xlu0 0
    %759 = vperm.xlu0 %758, %v756
    %v760 = vpop.permute.xlu0 %759
    %v763 = vsel %vm374, %v755, 0
    %v766 = vsel %vm378, %v716, 0
    %768 = vmatprep.subr.mxu0 0.0
    %769 = vmatpush1.msra.mxu0 %v766
    %770 = vmatprep.subr.mxu0 0.0
    %771 = vmatpush1.msra.mxu0 0.0
    %772 = vmatprep.subr.mxu0 0.0
    %773 = vmatpush1.msra.mxu0 0.0
    %774 = vmatprep.subr.mxu0 0.0
    %775 = vmatpush1.msra.mxu0 0.0
    %776 = vmatprep.subr.mxu0 0.0
    %777 = vmatpush1.msra.mxu0 0.0
    %778 = vmatprep.subr.mxu0 0.0
    %779 = vmatpush1.msra.mxu0 0.0
    %780 = vmatprep.subr.mxu0 0.0
    %781 = vmatpush1.msra.mxu0 0.0
    %782 = vmatprep.subr.mxu0 0.0
    %783 = vmatpush1.msra.mxu0 0.0
    %784 = vmatprep.subr.mxu0 0.0
    %785 = vmatpush1.msra.mxu0 0.0
    %786 = vmatprep.subr.mxu0 0.0
    %787 = vmatpush1.msra.mxu0 0.0
    %788 = vmatprep.subr.mxu0 0.0
    %789 = vmatpush1.msra.mxu0 0.0
    %790 = vmatprep.subr.mxu0 0.0
    %791 = vmatpush1.msra.mxu0 0.0
    %792 = vmatprep.subr.mxu0 0.0
    %793 = vmatpush1.msra.mxu0 0.0
    %794 = vmatprep.subr.mxu0 0.0
    %795 = vmatpush1.msra.mxu0 0.0
    %796 = vmatprep.subr.mxu0 0.0
    %797 = vmatpush1.msra.mxu0 0.0
    %798 = vmatprep.subr.mxu0 0.0
    %799 = vmatpush1.msra.mxu0 0.0
    %800 = vmatprep.subr.mxu0 0.0
    %801 = vmatpush1.msra.mxu0 0.0
    %802 = vmatprep.subr.mxu0 0.0
    %803 = vmatpush1.msra.mxu0 0.0
    %804 = vmatprep.subr.mxu0 0.0
    %805 = vmatpush1.msra.mxu0 0.0
    %806 = vmatprep.subr.mxu0 0.0
    %807 = vmatpush1.msra.mxu0 0.0
    %808 = vmatprep.subr.mxu0 0.0
    %809 = vmatpush1.msra.mxu0 0.0
    %810 = vmatprep.subr.mxu0 0.0
    %811 = vmatpush1.msra.mxu0 0.0
    %812 = vmatprep.subr.mxu0 0.0
    %813 = vmatpush1.msra.mxu0 0.0
    %814 = vmatprep.subr.mxu0 0.0
    %815 = vmatpush1.msra.mxu0 0.0
    %816 = vmatprep.subr.mxu0 0.0
    %817 = vmatpush1.msra.mxu0 0.0
    %818 = vmatprep.subr.mxu0 0.0
    %819 = vmatpush1.msra.mxu0 0.0
    %820 = vmatprep.subr.mxu0 0.0
    %821 = vmatpush1.msra.mxu0 0.0
    %822 = vmatprep.subr.mxu0 0.0
    %823 = vmatpush1.msra.mxu0 0.0
    %824 = vmatprep.subr.mxu0 0.0
    %825 = vmatpush1.msra.mxu0 0.0
    %826 = vmatprep.subr.mxu0 0.0
    %827 = vmatpush1.msra.mxu0 0.0
    %828 = vmatprep.subr.mxu0 0.0
    %829 = vmatpush1.msra.mxu0 0.0
    %830 = vmatprep.subr.mxu0 0.0
    %831 = vmatpush1.msra.mxu0 0.0
    %832 = vmatprep.mubr.f32.mxu0 0.0
    %833 = vmatmul.mubr.f32.gmra.mrb[0].mxu0 %v763
    %v834 = vpop.f32.mrb[0].mxu0
    %v835 = vadd.f32 %v760, %v834
    %v836 = vpop.f32.mrb[0].mxu0
    %837 = vdwg.mxu0
    %v838 = vrot.slane %v716, 4
    %v839 = vsel %vm378, %v838, 0
    %841 = vmatprep.subr.mxu0 0.0
    %842 = vmatpush1.msra.mxu0 %v839
    %843 = vmatprep.subr.mxu0 0.0
    %844 = vmatpush1.msra.mxu0 0.0
    %845 = vmatprep.subr.mxu0 0.0
    %846 = vmatpush1.msra.mxu0 0.0
    %847 = vmatprep.subr.mxu0 0.0
    %848 = vmatpush1.msra.mxu0 0.0
    %849 = vmatprep.subr.mxu0 0.0
    %850 = vmatpush1.msra.mxu0 0.0
    %851 = vmatprep.subr.mxu0 0.0
    %852 = vmatpush1.msra.mxu0 0.0
    %853 = vmatprep.subr.mxu0 0.0
    %854 = vmatpush1.msra.mxu0 0.0
    %855 = vmatprep.subr.mxu0 0.0
    %856 = vmatpush1.msra.mxu0 0.0
    %857 = vmatprep.subr.mxu0 0.0
    %858 = vmatpush1.msra.mxu0 0.0
    %859 = vmatprep.subr.mxu0 0.0
    %860 = vmatpush1.msra.mxu0 0.0
    %861 = vmatprep.subr.mxu0 0.0
    %862 = vmatpush1.msra.mxu0 0.0
    %863 = vmatprep.subr.mxu0 0.0
    %864 = vmatpush1.msra.mxu0 0.0
    %865 = vmatprep.subr.mxu0 0.0
    %866 = vmatpush1.msra.mxu0 0.0
    %867 = vmatprep.subr.mxu0 0.0
    %868 = vmatpush1.msra.mxu0 0.0
    %869 = vmatprep.subr.mxu0 0.0
    %870 = vmatpush1.msra.mxu0 0.0
    %871 = vmatprep.subr.mxu0 0.0
    %872 = vmatpush1.msra.mxu0 0.0
    %873 = vmatprep.subr.mxu0 0.0
    %874 = vmatpush1.msra.mxu0 0.0
    %875 = vmatprep.subr.mxu0 0.0
    %876 = vmatpush1.msra.mxu0 0.0
    %877 = vmatprep.subr.mxu0 0.0
    %878 = vmatpush1.msra.mxu0 0.0
    %879 = vmatprep.subr.mxu0 0.0
    %880 = vmatpush1.msra.mxu0 0.0
    %881 = vmatprep.subr.mxu0 0.0
    %882 = vmatpush1.msra.mxu0 0.0
    %883 = vmatprep.subr.mxu0 0.0
    %884 = vmatpush1.msra.mxu0 0.0
    %885 = vmatprep.subr.mxu0 0.0
    %886 = vmatpush1.msra.mxu0 0.0
    %887 = vmatprep.subr.mxu0 0.0
    %888 = vmatpush1.msra.mxu0 0.0
    %889 = vmatprep.subr.mxu0 0.0
    %890 = vmatpush1.msra.mxu0 0.0
    %891 = vmatprep.subr.mxu0 0.0
    %892 = vmatpush1.msra.mxu0 0.0
    %893 = vmatprep.subr.mxu0 0.0
    %894 = vmatpush1.msra.mxu0 0.0
    %895 = vmatprep.subr.mxu0 0.0
    %896 = vmatpush1.msra.mxu0 0.0
    %897 = vmatprep.subr.mxu0 0.0
    %898 = vmatpush1.msra.mxu0 0.0
    %899 = vmatprep.subr.mxu0 0.0
    %900 = vmatpush1.msra.mxu0 0.0
    %901 = vmatprep.subr.mxu0 0.0
    %902 = vmatpush1.msra.mxu0 0.0
    %903 = vmatprep.subr.mxu0 0.0
    %904 = vmatpush1.msra.mxu0 0.0
    %905 = vmatprep.mubr.f32.mxu0 0.0
    %906 = vmatmul.mubr.f32.gmra.mrb[0].mxu0 %v763
    %v907 = vpop.f32.mrb[0].mxu0
    %v908 = vadd.f32 %v760, %v907
    %v909 = vpop.f32.mrb[0].mxu0
    %910 = vdwg.mxu0
    %v912 = vrot.slane %v908, 4
    %v914 = vsel %vm378, %v835, %v912
    %v915 = vld [vmem:[%s17] sm:$0xf]
    %v916 = vld [vmem:[%s19] sm:$0xf]
    %v917 = vsel %vm360, %v914, 0.0
    %918 = vadd.xlane.f32.xlu0 %v917
    %v919 = vpop.xlane.xlu0 %918
    %v920 = vmul.f32 %v914, %v914
    %v921 = vsel %vm360, %v920, 0.0
    %922 = vadd.xlane.f32.xlu0 %v921
    %v923 = vpop.xlane.xlu0 %922
    %v925 = vrot.slane %v919, 4
    %v927 = vadd.f32 %v919, %v925
    %v929 = vrot.slane %v923, 4
    %v931 = vadd.f32 %v923, %v929
    %v932 = vmul.f32 %v927, 0.0078125
    %v933 = vmul.f32 %v931, 0.0078125
    %v934 = vmul.f32 %v932, %v932
    %v935 = vsub.f32 %v933, %v934
    %v936 = vmax.f32 %v935, 0.0
    %v937 = vadd.f32 %v936, 1e-05
    %v938 = vrsqrt.pop %v937
    %v939 = vmul.f32 %v915, %v938
    %v940 = vmul.f32 %v932, %v939
    %v941 = vsub.f32 %v916, %v940
    %v943 = vrot.slane %v939, 4
    %v945 = vsel %vm378, %v939, %v943
    %947 = vset.pattern.permute.xlu0 0
    %948 = vperm.xlu0 %947, %v945
    %v949 = vpop.permute.xlu0 %948
    %v951 = vmul.f32 %v914, %v949
    %v953 = vrot.slane %v941, 4
    %v955 = vsel %vm378, %v941, %v953
    %957 = vset.pattern.permute.xlu0 0
    %958 = vperm.xlu0 %957, %v955
    %v959 = vpop.permute.xlu0 %958
    %v961 = vadd.f32 %v951, %v959
    %v962 = vld [vmem:[#allocation6] sm:$0xf]
    %v963 = vld [vmem:[%s27] sm:$0xf]
    %965 = vset.pattern.permute.xlu0 0
    %966 = vperm.xlu0 %965, %v963
    %v967 = vpop.permute.xlu0 %966
    %970 = vrot.lane.b32.xlu0 %v754, 114
    %v971 = vpop.permute.xlu0 %970
    %v973 = vsel %vm374, %v962, 0
    %v975 = vsel %vm378, %v971, 0
    %977 = vmatprep.subr.mxu0 0.0
    %978 = vmatpush1.msra.mxu0 %v975
    %979 = vmatprep.subr.mxu0 0.0
    %980 = vmatpush1.msra.mxu0 0.0
    %981 = vmatprep.subr.mxu0 0.0
    %982 = vmatpush1.msra.mxu0 0.0
    %983 = vmatprep.subr.mxu0 0.0
    %984 = vmatpush1.msra.mxu0 0.0
    %985 = vmatprep.subr.mxu0 0.0
    %986 = vmatpush1.msra.mxu0 0.0
    %987 = vmatprep.subr.mxu0 0.0
    %988 = vmatpush1.msra.mxu0 0.0
    %989 = vmatprep.subr.mxu0 0.0
    %990 = vmatpush1.msra.mxu0 0.0
    %991 = vmatprep.subr.mxu0 0.0
    %992 = vmatpush1.msra.mxu0 0.0
    %993 = vmatprep.subr.mxu0 0.0
    %994 = vmatpush1.msra.mxu0 0.0
    %995 = vmatprep.subr.mxu0 0.0
    %996 = vmatpush1.msra.mxu0 0.0
    %997 = vmatprep.subr.mxu0 0.0
    %998 = vmatpush1.msra.mxu0 0.0
    %999 = vmatprep.subr.mxu0 0.0
    %1000 = vmatpush1.msra.mxu0 0.0
    %1001 = vmatprep.subr.mxu0 0.0
    %1002 = vmatpush1.msra.mxu0 0.0
    %1003 = vmatprep.subr.mxu0 0.0
    %1004 = vmatpush1.msra.mxu0 0.0
    %1005 = vmatprep.subr.mxu0 0.0
    %1006 = vmatpush1.msra.mxu0 0.0
    %1007 = vmatprep.subr.mxu0 0.0
    %1008 = vmatpush1.msra.mxu0 0.0
    %1009 = vmatprep.subr.mxu0 0.0
    %1010 = vmatpush1.msra.mxu0 0.0
    %1011 = vmatprep.subr.mxu0 0.0
    %1012 = vmatpush1.msra.mxu0 0.0
    %1013 = vmatprep.subr.mxu0 0.0
    %1014 = vmatpush1.msra.mxu0 0.0
    %1015 = vmatprep.subr.mxu0 0.0
    %1016 = vmatpush1.msra.mxu0 0.0
    %1017 = vmatprep.subr.mxu0 0.0
    %1018 = vmatpush1.msra.mxu0 0.0
    %1019 = vmatprep.subr.mxu0 0.0
    %1020 = vmatpush1.msra.mxu0 0.0
    %1021 = vmatprep.subr.mxu0 0.0
    %1022 = vmatpush1.msra.mxu0 0.0
    %1023 = vmatprep.subr.mxu0 0.0
    %1024 = vmatpush1.msra.mxu0 0.0
    %1025 = vmatprep.subr.mxu0 0.0
    %1026 = vmatpush1.msra.mxu0 0.0
    %1027 = vmatprep.subr.mxu0 0.0
    %1028 = vmatpush1.msra.mxu0 0.0
    %1029 = vmatprep.subr.mxu0 0.0
    %1030 = vmatpush1.msra.mxu0 0.0
    %1031 = vmatprep.subr.mxu0 0.0
    %1032 = vmatpush1.msra.mxu0 0.0
    %1033 = vmatprep.subr.mxu0 0.0
    %1034 = vmatpush1.msra.mxu0 0.0
    %1035 = vmatprep.subr.mxu0 0.0
    %1036 = vmatpush1.msra.mxu0 0.0
    %1037 = vmatprep.subr.mxu0 0.0
    %1038 = vmatpush1.msra.mxu0 0.0
    %1039 = vmatprep.subr.mxu0 0.0
    %1040 = vmatpush1.msra.mxu0 0.0
    %1041 = vmatprep.mubr.f32.mxu0 0.0
    %1042 = vmatmul.mubr.f32.gmra.mrb[0].mxu0 %v973
    %v1043 = vpop.f32.mrb[0].mxu0
    %v1044 = vadd.f32 %v967, %v1043
    %v1045 = vpop.f32.mrb[0].mxu0
    %1046 = vdwg.mxu0
    %v1047 = vrot.slane %v754, 4
    %1048 = vrot.lane.b32.xlu0 %v1047, 114
    %v1049 = vpop.permute.xlu0 %1048
    %v1050 = vsel %vm378, %v1049, 0
    %1052 = vmatprep.subr.mxu0 0.0
    %1053 = vmatpush1.msra.mxu0 %v1050
    %1054 = vmatprep.subr.mxu0 0.0
    %1055 = vmatpush1.msra.mxu0 0.0
    %1056 = vmatprep.subr.mxu0 0.0
    %1057 = vmatpush1.msra.mxu0 0.0
    %1058 = vmatprep.subr.mxu0 0.0
    %1059 = vmatpush1.msra.mxu0 0.0
    %1060 = vmatprep.subr.mxu0 0.0
    %1061 = vmatpush1.msra.mxu0 0.0
    %1062 = vmatprep.subr.mxu0 0.0
    %1063 = vmatpush1.msra.mxu0 0.0
    %1064 = vmatprep.subr.mxu0 0.0
    %1065 = vmatpush1.msra.mxu0 0.0
    %1066 = vmatprep.subr.mxu0 0.0
    %1067 = vmatpush1.msra.mxu0 0.0
    %1068 = vmatprep.subr.mxu0 0.0
    %1069 = vmatpush1.msra.mxu0 0.0
    %1070 = vmatprep.subr.mxu0 0.0
    %1071 = vmatpush1.msra.mxu0 0.0
    %1072 = vmatprep.subr.mxu0 0.0
    %1073 = vmatpush1.msra.mxu0 0.0
    %1074 = vmatprep.subr.mxu0 0.0
    %1075 = vmatpush1.msra.mxu0 0.0
    %1076 = vmatprep.subr.mxu0 0.0
    %1077 = vmatpush1.msra.mxu0 0.0
    %1078 = vmatprep.subr.mxu0 0.0
    %1079 = vmatpush1.msra.mxu0 0.0
    %1080 = vmatprep.subr.mxu0 0.0
    %1081 = vmatpush1.msra.mxu0 0.0
    %1082 = vmatprep.subr.mxu0 0.0
    %1083 = vmatpush1.msra.mxu0 0.0
    %1084 = vmatprep.subr.mxu0 0.0
    %1085 = vmatpush1.msra.mxu0 0.0
    %1086 = vmatprep.subr.mxu0 0.0
    %1087 = vmatpush1.msra.mxu0 0.0
    %1088 = vmatprep.subr.mxu0 0.0
    %1089 = vmatpush1.msra.mxu0 0.0
    %1090 = vmatprep.subr.mxu0 0.0
    %1091 = vmatpush1.msra.mxu0 0.0
    %1092 = vmatprep.subr.mxu0 0.0
    %1093 = vmatpush1.msra.mxu0 0.0
    %1094 = vmatprep.subr.mxu0 0.0
    %1095 = vmatpush1.msra.mxu0 0.0
    %1096 = vmatprep.subr.mxu0 0.0
    %1097 = vmatpush1.msra.mxu0 0.0
    %1098 = vmatprep.subr.mxu0 0.0
    %1099 = vmatpush1.msra.mxu0 0.0
    %1100 = vmatprep.subr.mxu0 0.0
    %1101 = vmatpush1.msra.mxu0 0.0
    %1102 = vmatprep.subr.mxu0 0.0
    %1103 = vmatpush1.msra.mxu0 0.0
    %1104 = vmatprep.subr.mxu0 0.0
    %1105 = vmatpush1.msra.mxu0 0.0
    %1106 = vmatprep.subr.mxu0 0.0
    %1107 = vmatpush1.msra.mxu0 0.0
    %1108 = vmatprep.subr.mxu0 0.0
    %1109 = vmatpush1.msra.mxu0 0.0
    %1110 = vmatprep.subr.mxu0 0.0
    %1111 = vmatpush1.msra.mxu0 0.0
    %1112 = vmatprep.subr.mxu0 0.0
    %1113 = vmatpush1.msra.mxu0 0.0
    %1114 = vmatprep.subr.mxu0 0.0
    %1115 = vmatpush1.msra.mxu0 0.0
    %1116 = vmatprep.mubr.f32.mxu0 0.0
    %1117 = vmatmul.mubr.f32.gmra.mrb[0].mxu0 %v973
    %v1118 = vpop.f32.mrb[0].mxu0
    %v1119 = vadd.f32 %v967, %v1118
    %v1120 = vpop.f32.mrb[0].mxu0
    %1121 = vdwg.mxu0
    %v1123 = vrot.slane %v1119, 4
    %v1125 = vsel %vm378, %v1044, %v1123
    %v1126 = vld [vmem:[%s29] sm:$0xf]
    %v1127 = vld [vmem:[%s31] sm:$0xf]
    %v1128 = vsel %vm360, %v1125, 0.0
    %1129 = vadd.xlane.f32.xlu0 %v1128
    %v1130 = vpop.xlane.xlu0 %1129
    %v1131 = vmul.f32 %v1125, %v1125
    %v1132 = vsel %vm360, %v1131, 0.0
    %1133 = vadd.xlane.f32.xlu0 %v1132
    %v1134 = vpop.xlane.xlu0 %1133
    %v1136 = vrot.slane %v1130, 4
    %v1138 = vadd.f32 %v1130, %v1136
    %v1140 = vrot.slane %v1134, 4
    %v1142 = vadd.f32 %v1134, %v1140
    %v1143 = vmul.f32 %v1138, 0.0078125
    %v1144 = vmul.f32 %v1142, 0.0078125
    %v1145 = vmul.f32 %v1143, %v1143
    %v1146 = vsub.f32 %v1144, %v1145
    %v1147 = vmax.f32 %v1146, 0.0
    %v1148 = vadd.f32 %v1147, 1e-05
    %v1149 = vrsqrt.pop %v1148
    %v1150 = vmul.f32 %v1126, %v1149
    %v1151 = vmul.f32 %v1143, %v1150
    %v1152 = vsub.f32 %v1127, %v1151
    %v1154 = vrot.slane %v1150, 4
    %v1156 = vsel %vm378, %v1150, %v1154
    %1158 = vset.pattern.permute.xlu0 0
    %1159 = vperm.xlu0 %1158, %v1156
    %v1160 = vpop.permute.xlu0 %1159
    %v1162 = vmul.f32 %v1125, %v1160
    %v1164 = vrot.slane %v1152, 4
    %v1166 = vsel %vm378, %v1152, %v1164
    %1168 = vset.pattern.permute.xlu0 0
    %1169 = vperm.xlu0 %1168, %v1166
    %v1170 = vpop.permute.xlu0 %1169
    %v1172 = vadd.f32 %v1162, %v1170
    %v1173 = vadd.f32 %v961, %v1172
    %v1174 = vld [vmem:[#allocation8] sm:$0xf]
    %v1175 = vld [vmem:[%s35] sm:$0xf]
    %1177 = vset.pattern.permute.xlu0 0
    %1178 = vperm.xlu0 %1177, %v1175
    %v1179 = vpop.permute.xlu0 %1178
    %v1182 = vsel %vm374, %v1174, 0
    %v1185 = vsel %vm378, %v1173, 0
    %1187 = vmatprep.subr.mxu0 0.0
    %1188 = vmatpush1.msra.mxu0 %v1185
    %1189 = vmatprep.subr.mxu0 0.0
    %1190 = vmatpush1.msra.mxu0 0.0
    %1191 = vmatprep.subr.mxu0 0.0
    %1192 = vmatpush1.msra.mxu0 0.0
    %1193 = vmatprep.subr.mxu0 0.0
    %1194 = vmatpush1.msra.mxu0 0.0
    %1195 = vmatprep.subr.mxu0 0.0
    %1196 = vmatpush1.msra.mxu0 0.0
    %1197 = vmatprep.subr.mxu0 0.0
    %1198 = vmatpush1.msra.mxu0 0.0
    %1199 = vmatprep.subr.mxu0 0.0
    %1200 = vmatpush1.msra.mxu0 0.0
    %1201 = vmatprep.subr.mxu0 0.0
    %1202 = vmatpush1.msra.mxu0 0.0
    %1203 = vmatprep.subr.mxu0 0.0
    %1204 = vmatpush1.msra.mxu0 0.0
    %1205 = vmatprep.subr.mxu0 0.0
    %1206 = vmatpush1.msra.mxu0 0.0
    %1207 = vmatprep.subr.mxu0 0.0
    %1208 = vmatpush1.msra.mxu0 0.0
    %1209 = vmatprep.subr.mxu0 0.0
    %1210 = vmatpush1.msra.mxu0 0.0
    %1211 = vmatprep.subr.mxu0 0.0
    %1212 = vmatpush1.msra.mxu0 0.0
    %1213 = vmatprep.subr.mxu0 0.0
    %1214 = vmatpush1.msra.mxu0 0.0
    %1215 = vmatprep.subr.mxu0 0.0
    %1216 = vmatpush1.msra.mxu0 0.0
    %1217 = vmatprep.subr.mxu0 0.0
    %1218 = vmatpush1.msra.mxu0 0.0
    %1219 = vmatprep.subr.mxu0 0.0
    %1220 = vmatpush1.msra.mxu0 0.0
    %1221 = vmatprep.subr.mxu0 0.0
    %1222 = vmatpush1.msra.mxu0 0.0
    %1223 = vmatprep.subr.mxu0 0.0
    %1224 = vmatpush1.msra.mxu0 0.0
    %1225 = vmatprep.subr.mxu0 0.0
    %1226 = vmatpush1.msra.mxu0 0.0
    %1227 = vmatprep.subr.mxu0 0.0
    %1228 = vmatpush1.msra.mxu0 0.0
    %1229 = vmatprep.subr.mxu0 0.0
    %1230 = vmatpush1.msra.mxu0 0.0
    %1231 = vmatprep.subr.mxu0 0.0
    %1232 = vmatpush1.msra.mxu0 0.0
    %1233 = vmatprep.subr.mxu0 0.0
    %1234 = vmatpush1.msra.mxu0 0.0
    %1235 = vmatprep.subr.mxu0 0.0
    %1236 = vmatpush1.msra.mxu0 0.0
    %1237 = vmatprep.subr.mxu0 0.0
    %1238 = vmatpush1.msra.mxu0 0.0
    %1239 = vmatprep.subr.mxu0 0.0
    %1240 = vmatpush1.msra.mxu0 0.0
    %1241 = vmatprep.subr.mxu0 0.0
    %1242 = vmatpush1.msra.mxu0 0.0
    %1243 = vmatprep.subr.mxu0 0.0
    %1244 = vmatpush1.msra.mxu0 0.0
    %1245 = vmatprep.subr.mxu0 0.0
    %1246 = vmatpush1.msra.mxu0 0.0
    %1247 = vmatprep.subr.mxu0 0.0
    %1248 = vmatpush1.msra.mxu0 0.0
    %1249 = vmatprep.subr.mxu0 0.0
    %1250 = vmatpush1.msra.mxu0 0.0
    %1251 = vmatprep.mubr.f32.mxu0 0.0
    %1252 = vmatmul.mubr.f32.gmra.mrb[0].mxu0 %v1182
    %v1253 = vpop.f32.mrb[0].mxu0
    %v1254 = vadd.f32 %v1179, %v1253
    %v1255 = vpop.f32.mrb[0].mxu0
    %1256 = vdwg.mxu0
    %v1257 = vrot.slane %v1173, 4
    %v1258 = vsel %vm378, %v1257, 0
    %1260 = vmatprep.subr.mxu0 0.0
    %1261 = vmatpush1.msra.mxu0 %v1258
    %1262 = vmatprep.subr.mxu0 0.0
    %1263 = vmatpush1.msra.mxu0 0.0
    %1264 = vmatprep.subr.mxu0 0.0
    %1265 = vmatpush1.msra.mxu0 0.0
    %1266 = vmatprep.subr.mxu0 0.0
    %1267 = vmatpush1.msra.mxu0 0.0
    %1268 = vmatprep.subr.mxu0 0.0
    %1269 = vmatpush1.msra.mxu0 0.0
    %1270 = vmatprep.subr.mxu0 0.0
    %1271 = vmatpush1.msra.mxu0 0.0
    %1272 = vmatprep.subr.mxu0 0.0
    %1273 = vmatpush1.msra.mxu0 0.0
    %1274 = vmatprep.subr.mxu0 0.0
    %1275 = vmatpush1.msra.mxu0 0.0
    %1276 = vmatprep.subr.mxu0 0.0
    %1277 = vmatpush1.msra.mxu0 0.0
    %1278 = vmatprep.subr.mxu0 0.0
    %1279 = vmatpush1.msra.mxu0 0.0
    %1280 = vmatprep.subr.mxu0 0.0
    %1281 = vmatpush1.msra.mxu0 0.0
    %1282 = vmatprep.subr.mxu0 0.0
    %1283 = vmatpush1.msra.mxu0 0.0
    %1284 = vmatprep.subr.mxu0 0.0
    %1285 = vmatpush1.msra.mxu0 0.0
    %1286 = vmatprep.subr.mxu0 0.0
    %1287 = vmatpush1.msra.mxu0 0.0
    %1288 = vmatprep.subr.mxu0 0.0
    %1289 = vmatpush1.msra.mxu0 0.0
    %1290 = vmatprep.subr.mxu0 0.0
    %1291 = vmatpush1.msra.mxu0 0.0
    %1292 = vmatprep.subr.mxu0 0.0
    %1293 = vmatpush1.msra.mxu0 0.0
    %1294 = vmatprep.subr.mxu0 0.0
    %1295 = vmatpush1.msra.mxu0 0.0
    %1296 = vmatprep.subr.mxu0 0.0
    %1297 = vmatpush1.msra.mxu0 0.0
    %1298 = vmatprep.subr.mxu0 0.0
    %1299 = vmatpush1.msra.mxu0 0.0
    %1300 = vmatprep.subr.mxu0 0.0
    %1301 = vmatpush1.msra.mxu0 0.0
    %1302 = vmatprep.subr.mxu0 0.0
    %1303 = vmatpush1.msra.mxu0 0.0
    %1304 = vmatprep.subr.mxu0 0.0
    %1305 = vmatpush1.msra.mxu0 0.0
    %1306 = vmatprep.subr.mxu0 0.0
    %1307 = vmatpush1.msra.mxu0 0.0
    %1308 = vmatprep.subr.mxu0 0.0
    %1309 = vmatpush1.msra.mxu0 0.0
    %1310 = vmatprep.subr.mxu0 0.0
    %1311 = vmatpush1.msra.mxu0 0.0
    %1312 = vmatprep.subr.mxu0 0.0
    %1313 = vmatpush1.msra.mxu0 0.0
    %1314 = vmatprep.subr.mxu0 0.0
    %1315 = vmatpush1.msra.mxu0 0.0
    %1316 = vmatprep.subr.mxu0 0.0
    %1317 = vmatpush1.msra.mxu0 0.0
    %1318 = vmatprep.subr.mxu0 0.0
    %1319 = vmatpush1.msra.mxu0 0.0
    %1320 = vmatprep.subr.mxu0 0.0
    %1321 = vmatpush1.msra.mxu0 0.0
    %1322 = vmatprep.subr.mxu0 0.0
    %1323 = vmatpush1.msra.mxu0 0.0
    %1324 = vmatprep.mubr.f32.mxu0 0.0
    %1325 = vmatmul.mubr.f32.gmra.mrb[0].mxu0 %v1182
    %v1326 = vpop.f32.mrb[0].mxu0
    %v1327 = vadd.f32 %v1179, %v1326
    %v1328 = vpop.f32.mrb[0].mxu0
    %1329 = vdwg.mxu0
    %v1331 = vrot.slane %v1327, 4
    %v1333 = vsel %vm378, %v1254, %v1331
    %v1334 = vld [vmem:[#allocation9] sm:$0xf]
    %v1335 = vld [vmem:[%s39] sm:$0xf]
    %v1336 = vld [vmem:[#allocation11] sm:$0xf]
    %v1337 = vld [vmem:[%s43] sm:$0xf]
    %v1338 = vld [vmem:[#allocation12] sm:$0xf]
    %v1339 = vld [vmem:[%s47] sm:$0xf]
    %1341 = vrot.lane.b32.xlu0 %v528, 64
    %v1342 = vpop.permute.xlu0 %1341
    %v1344 = vsel %vm360, %v1333, %v1342
    %1346 = vset.pattern.permute.xlu0 0
    %1347 = vperm.xlu0 %1346, %v1335
    %v1348 = vpop.permute.xlu0 %1347
    %v1351 = vsel %vm374, %v1334, 0
    %v1354 = vsel %vm378, %v1344, 0
    %1356 = vmatprep.subr.mxu0 0.0
    %1357 = vmatpush1.msra.mxu0 %v1354
    %1358 = vmatprep.subr.mxu0 0.0
    %1359 = vmatpush1.msra.mxu0 0.0
    %1360 = vmatprep.subr.mxu0 0.0
    %1361 = vmatpush1.msra.mxu0 0.0
    %1362 = vmatprep.subr.mxu0 0.0
    %1363 = vmatpush1.msra.mxu0 0.0
    %1364 = vmatprep.subr.mxu0 0.0
    %1365 = vmatpush1.msra.mxu0 0.0
    %1366 = vmatprep.subr.mxu0 0.0
    %1367 = vmatpush1.msra.mxu0 0.0
    %1368 = vmatprep.subr.mxu0 0.0
    %1369 = vmatpush1.msra.mxu0 0.0
    %1370 = vmatprep.subr.mxu0 0.0
    %1371 = vmatpush1.msra.mxu0 0.0
    %1372 = vmatprep.subr.mxu0 0.0
    %1373 = vmatpush1.msra.mxu0 0.0
    %1374 = vmatprep.subr.mxu0 0.0
    %1375 = vmatpush1.msra.mxu0 0.0
    %1376 = vmatprep.subr.mxu0 0.0
    %1377 = vmatpush1.msra.mxu0 0.0
    %1378 = vmatprep.subr.mxu0 0.0
    %1379 = vmatpush1.msra.mxu0 0.0
    %1380 = vmatprep.subr.mxu0 0.0
    %1381 = vmatpush1.msra.mxu0 0.0
    %1382 = vmatprep.subr.mxu0 0.0
    %1383 = vmatpush1.msra.mxu0 0.0
    %1384 = vmatprep.subr.mxu0 0.0
    %1385 = vmatpush1.msra.mxu0 0.0
    %1386 = vmatprep.subr.mxu0 0.0
    %1387 = vmatpush1.msra.mxu0 0.0
    %1388 = vmatprep.subr.mxu0 0.0
    %1389 = vmatpush1.msra.mxu0 0.0
    %1390 = vmatprep.subr.mxu0 0.0
    %1391 = vmatpush1.msra.mxu0 0.0
    %1392 = vmatprep.subr.mxu0 0.0
    %1393 = vmatpush1.msra.mxu0 0.0
    %1394 = vmatprep.subr.mxu0 0.0
    %1395 = vmatpush1.msra.mxu0 0.0
    %1396 = vmatprep.subr.mxu0 0.0
    %1397 = vmatpush1.msra.mxu0 0.0
    %1398 = vmatprep.subr.mxu0 0.0
    %1399 = vmatpush1.msra.mxu0 0.0
    %1400 = vmatprep.subr.mxu0 0.0
    %1401 = vmatpush1.msra.mxu0 0.0
    %1402 = vmatprep.subr.mxu0 0.0
    %1403 = vmatpush1.msra.mxu0 0.0
    %1404 = vmatprep.subr.mxu0 0.0
    %1405 = vmatpush1.msra.mxu0 0.0
    %1406 = vmatprep.subr.mxu0 0.0
    %1407 = vmatpush1.msra.mxu0 0.0
    %1408 = vmatprep.subr.mxu0 0.0
    %1409 = vmatpush1.msra.mxu0 0.0
    %1410 = vmatprep.subr.mxu0 0.0
    %1411 = vmatpush1.msra.mxu0 0.0
    %1412 = vmatprep.subr.mxu0 0.0
    %1413 = vmatpush1.msra.mxu0 0.0
    %1414 = vmatprep.subr.mxu0 0.0
    %1415 = vmatpush1.msra.mxu0 0.0
    %1416 = vmatprep.subr.mxu0 0.0
    %1417 = vmatpush1.msra.mxu0 0.0
    %1418 = vmatprep.subr.mxu0 0.0
    %1419 = vmatpush1.msra.mxu0 0.0
    %1420 = vmatprep.mubr.f32.mxu0 0.0
    %1421 = vmatmul.mubr.f32.gmra.mrb[0].mxu0 %v1351
    %v1422 = vpop.f32.mrb[0].mxu0
    %v1423 = vadd.f32 %v1348, %v1422
    %v1424 = vpop.f32.mrb[0].mxu0
    %1425 = vdwg.mxu0
    %1427 = vset.pattern.permute.xlu0 0
    %1428 = vperm.xlu0 %1427, %v1337
    %v1429 = vpop.permute.xlu0 %1428
    %v1432 = vsel %vm374, %v1336, 0
    %1434 = vmatprep.subr.mxu0 0.0
    %1435 = vmatpush1.msra.mxu0 %v1354
    %1436 = vmatprep.subr.mxu0 0.0
    %1437 = vmatpush1.msra.mxu0 0.0
    %1438 = vmatprep.subr.mxu0 0.0
    %1439 = vmatpush1.msra.mxu0 0.0
    %1440 = vmatprep.subr.mxu0 0.0
    %1441 = vmatpush1.msra.mxu0 0.0
    %1442 = vmatprep.subr.mxu0 0.0
    %1443 = vmatpush1.msra.mxu0 0.0
    %1444 = vmatprep.subr.mxu0 0.0
    %1445 = vmatpush1.msra.mxu0 0.0
    %1446 = vmatprep.subr.mxu0 0.0
    %1447 = vmatpush1.msra.mxu0 0.0
    %1448 = vmatprep.subr.mxu0 0.0
    %1449 = vmatpush1.msra.mxu0 0.0
    %1450 = vmatprep.subr.mxu0 0.0
    %1451 = vmatpush1.msra.mxu0 0.0
    %1452 = vmatprep.subr.mxu0 0.0
    %1453 = vmatpush1.msra.mxu0 0.0
    %1454 = vmatprep.subr.mxu0 0.0
    %1455 = vmatpush1.msra.mxu0 0.0
    %1456 = vmatprep.subr.mxu0 0.0
    %1457 = vmatpush1.msra.mxu0 0.0
    %1458 = vmatprep.subr.mxu0 0.0
    %1459 = vmatpush1.msra.mxu0 0.0
    %1460 = vmatprep.subr.mxu0 0.0
    %1461 = vmatpush1.msra.mxu0 0.0
    %1462 = vmatprep.subr.mxu0 0.0
    %1463 = vmatpush1.msra.mxu0 0.0
    %1464 = vmatprep.subr.mxu0 0.0
    %1465 = vmatpush1.msra.mxu0 0.0
    %1466 = vmatprep.subr.mxu0 0.0
    %1467 = vmatpush1.msra.mxu0 0.0
    %1468 = vmatprep.subr.mxu0 0.0
    %1469 = vmatpush1.msra.mxu0 0.0
    %1470 = vmatprep.subr.mxu0 0.0
    %1471 = vmatpush1.msra.mxu0 0.0
    %1472 = vmatprep.subr.mxu0 0.0
    %1473 = vmatpush1.msra.mxu0 0.0
    %1474 = vmatprep.subr.mxu0 0.0
    %1475 = vmatpush1.msra.mxu0 0.0
    %1476 = vmatprep.subr.mxu0 0.0
    %1477 = vmatpush1.msra.mxu0 0.0
    %1478 = vmatprep.subr.mxu0 0.0
    %1479 = vmatpush1.msra.mxu0 0.0
    %1480 = vmatprep.subr.mxu0 0.0
    %1481 = vmatpush1.msra.mxu0 0.0
    %1482 = vmatprep.subr.mxu0 0.0
    %1483 = vmatpush1.msra.mxu0 0.0
    %1484 = vmatprep.subr.mxu0 0.0
    %1485 = vmatpush1.msra.mxu0 0.0
    %1486 = vmatprep.subr.mxu0 0.0
    %1487 = vmatpush1.msra.mxu0 0.0
    %1488 = vmatprep.subr.mxu0 0.0
    %1489 = vmatpush1.msra.mxu0 0.0
    %1490 = vmatprep.subr.mxu0 0.0
    %1491 = vmatpush1.msra.mxu0 0.0
    %1492 = vmatprep.subr.mxu0 0.0
    %1493 = vmatpush1.msra.mxu0 0.0
    %1494 = vmatprep.subr.mxu0 0.0
    %1495 = vmatpush1.msra.mxu0 0.0
    %1496 = vmatprep.subr.mxu0 0.0
    %1497 = vmatpush1.msra.mxu0 0.0
    %1498 = vmatprep.mubr.f32.mxu0 0.0
    %1499 = vmatmul.mubr.f32.gmra.mrb[0].mxu0 %v1432
    %v1500 = vpop.f32.mrb[0].mxu0
    %v1501 = vadd.f32 %v1429, %v1500
    %v1502 = vpop.f32.mrb[0].mxu0
    %1503 = vdwg.mxu0
    %1505 = vset.pattern.permute.xlu0 0
    %1506 = vperm.xlu0 %1505, %v1339
    %v1507 = vpop.permute.xlu0 %1506
    %v1510 = vsel %vm374, %v1338, 0
    %1512 = vmatprep.subr.mxu0 0.0
    %1513 = vmatpush1.msra.mxu0 %v1354
    %1514 = vmatprep.subr.mxu0 0.0
    %1515 = vmatpush1.msra.mxu0 0.0
    %1516 = vmatprep.subr.mxu0 0.0
    %1517 = vmatpush1.msra.mxu0 0.0
    %1518 = vmatprep.subr.mxu0 0.0
    %1519 = vmatpush1.msra.mxu0 0.0
    %1520 = vmatprep.subr.mxu0 0.0
    %1521 = vmatpush1.msra.mxu0 0.0
    %1522 = vmatprep.subr.mxu0 0.0
    %1523 = vmatpush1.msra.mxu0 0.0
    %1524 = vmatprep.subr.mxu0 0.0
    %1525 = vmatpush1.msra.mxu0 0.0
    %1526 = vmatprep.subr.mxu0 0.0
    %1527 = vmatpush1.msra.mxu0 0.0
    %1528 = vmatprep.subr.mxu0 0.0
    %1529 = vmatpush1.msra.mxu0 0.0
    %1530 = vmatprep.subr.mxu0 0.0
    %1531 = vmatpush1.msra.mxu0 0.0
    %1532 = vmatprep.subr.mxu0 0.0
    %1533 = vmatpush1.msra.mxu0 0.0
    %1534 = vmatprep.subr.mxu0 0.0
    %1535 = vmatpush1.msra.mxu0 0.0
    %1536 = vmatprep.subr.mxu0 0.0
    %1537 = vmatpush1.msra.mxu0 0.0
    %1538 = vmatprep.subr.mxu0 0.0
    %1539 = vmatpush1.msra.mxu0 0.0
    %1540 = vmatprep.subr.mxu0 0.0
    %1541 = vmatpush1.msra.mxu0 0.0
    %1542 = vmatprep.subr.mxu0 0.0
    %1543 = vmatpush1.msra.mxu0 0.0
    %1544 = vmatprep.subr.mxu0 0.0
    %1545 = vmatpush1.msra.mxu0 0.0
    %1546 = vmatprep.subr.mxu0 0.0
    %1547 = vmatpush1.msra.mxu0 0.0
    %1548 = vmatprep.subr.mxu0 0.0
    %1549 = vmatpush1.msra.mxu0 0.0
    %1550 = vmatprep.subr.mxu0 0.0
    %1551 = vmatpush1.msra.mxu0 0.0
    %1552 = vmatprep.subr.mxu0 0.0
    %1553 = vmatpush1.msra.mxu0 0.0
    %1554 = vmatprep.subr.mxu0 0.0
    %1555 = vmatpush1.msra.mxu0 0.0
    %1556 = vmatprep.subr.mxu0 0.0
    %1557 = vmatpush1.msra.mxu0 0.0
    %1558 = vmatprep.subr.mxu0 0.0
    %1559 = vmatpush1.msra.mxu0 0.0
    %1560 = vmatprep.subr.mxu0 0.0
    %1561 = vmatpush1.msra.mxu0 0.0
    %1562 = vmatprep.subr.mxu0 0.0
    %1563 = vmatpush1.msra.mxu0 0.0
    %1564 = vmatprep.subr.mxu0 0.0
    %1565 = vmatpush1.msra.mxu0 0.0
    %1566 = vmatprep.subr.mxu0 0.0
    %1567 = vmatpush1.msra.mxu0 0.0
    %1568 = vmatprep.subr.mxu0 0.0
    %1569 = vmatpush1.msra.mxu0 0.0
    %1570 = vmatprep.subr.mxu0 0.0
    %1571 = vmatpush1.msra.mxu0 0.0
    %1572 = vmatprep.subr.mxu0 0.0
    %1573 = vmatpush1.msra.mxu0 0.0
    %1574 = vmatprep.subr.mxu0 0.0
    %1575 = vmatpush1.msra.mxu0 0.0
    %1576 = vmatprep.mubr.f32.mxu0 0.0
    %1577 = vmatmul.mubr.f32.gmra.mrb[0].mxu0 %v1510
    %v1578 = vpop.f32.mrb[0].mxu0
    %v1579 = vadd.f32 %v1507, %v1578
    %v1580 = vpop.f32.mrb[0].mxu0
    %1581 = vdwg.mxu0
    %v1582 = vrot.slane %v1344, 4
    %v1583 = vsel %vm378, %v1582, 0
    %1585 = vmatprep.subr.mxu0 0.0
    %1586 = vmatpush1.msra.mxu0 %v1583
    %1587 = vmatprep.subr.mxu0 0.0
    %1588 = vmatpush1.msra.mxu0 0.0
    %1589 = vmatprep.subr.mxu0 0.0
    %1590 = vmatpush1.msra.mxu0 0.0
    %1591 = vmatprep.subr.mxu0 0.0
    %1592 = vmatpush1.msra.mxu0 0.0
    %1593 = vmatprep.subr.mxu0 0.0
    %1594 = vmatpush1.msra.mxu0 0.0
    %1595 = vmatprep.subr.mxu0 0.0
    %1596 = vmatpush1.msra.mxu0 0.0
    %1597 = vmatprep.subr.mxu0 0.0
    %1598 = vmatpush1.msra.mxu0 0.0
    %1599 = vmatprep.subr.mxu0 0.0
    %1600 = vmatpush1.msra.mxu0 0.0
    %1601 = vmatprep.subr.mxu0 0.0
    %1602 = vmatpush1.msra.mxu0 0.0
    %1603 = vmatprep.subr.mxu0 0.0
    %1604 = vmatpush1.msra.mxu0 0.0
    %1605 = vmatprep.subr.mxu0 0.0
    %1606 = vmatpush1.msra.mxu0 0.0
    %1607 = vmatprep.subr.mxu0 0.0
    %1608 = vmatpush1.msra.mxu0 0.0
    %1609 = vmatprep.subr.mxu0 0.0
    %1610 = vmatpush1.msra.mxu0 0.0
    %1611 = vmatprep.subr.mxu0 0.0
    %1612 = vmatpush1.msra.mxu0 0.0
    %1613 = vmatprep.subr.mxu0 0.0
    %1614 = vmatpush1.msra.mxu0 0.0
    %1615 = vmatprep.subr.mxu0 0.0
    %1616 = vmatpush1.msra.mxu0 0.0
    %1617 = vmatprep.subr.mxu0 0.0
    %1618 = vmatpush1.msra.mxu0 0.0
    %1619 = vmatprep.subr.mxu0 0.0
    %1620 = vmatpush1.msra.mxu0 0.0
    %1621 = vmatprep.subr.mxu0 0.0
    %1622 = vmatpush1.msra.mxu0 0.0
    %1623 = vmatprep.subr.mxu0 0.0
    %1624 = vmatpush1.msra.mxu0 0.0
    %1625 = vmatprep.subr.mxu0 0.0
    %1626 = vmatpush1.msra.mxu0 0.0
    %1627 = vmatprep.subr.mxu0 0.0
    %1628 = vmatpush1.msra.mxu0 0.0
    %1629 = vmatprep.subr.mxu0 0.0
    %1630 = vmatpush1.msra.mxu0 0.0
    %1631 = vmatprep.subr.mxu0 0.0
    %1632 = vmatpush1.msra.mxu0 0.0
    %1633 = vmatprep.subr.mxu0 0.0
    %1634 = vmatpush1.msra.mxu0 0.0
    %1635 = vmatprep.subr.mxu0 0.0
    %1636 = vmatpush1.msra.mxu0 0.0
    %1637 = vmatprep.subr.mxu0 0.0
    %1638 = vmatpush1.msra.mxu0 0.0
    %1639 = vmatprep.subr.mxu0 0.0
    %1640 = vmatpush1.msra.mxu0 0.0
    %1641 = vmatprep.subr.mxu0 0.0
    %1642 = vmatpush1.msra.mxu0 0.0
    %1643 = vmatprep.subr.mxu0 0.0
    %1644 = vmatpush1.msra.mxu0 0.0
    %1645 = vmatprep.subr.mxu0 0.0
    %1646 = vmatpush1.msra.mxu0 0.0
    %1647 = vmatprep.subr.mxu0 0.0
    %1648 = vmatpush1.msra.mxu0 0.0
    %1649 = vmatprep.mubr.f32.mxu0 0.0
    %1650 = vmatmul.mubr.f32.gmra.mrb[0].mxu0 %v1351
    %v1651 = vpop.f32.mrb[0].mxu0
    %v1652 = vadd.f32 %v1348, %v1651
    %v1653 = vpop.f32.mrb[0].mxu0
    %1654 = vdwg.mxu0
    %1655 = vmatprep.subr.mxu0 0.0
    %1656 = vmatpush1.msra.mxu0 %v1583
    %1657 = vmatprep.subr.mxu0 0.0
    %1658 = vmatpush1.msra.mxu0 0.0
    %1659 = vmatprep.subr.mxu0 0.0
    %1660 = vmatpush1.msra.mxu0 0.0
    %1661 = vmatprep.subr.mxu0 0.0
    %1662 = vmatpush1.msra.mxu0 0.0
    %1663 = vmatprep.subr.mxu0 0.0
    %1664 = vmatpush1.msra.mxu0 0.0
    %1665 = vmatprep.subr.mxu0 0.0
    %1666 = vmatpush1.msra.mxu0 0.0
    %1667 = vmatprep.subr.mxu0 0.0
    %1668 = vmatpush1.msra.mxu0 0.0
    %1669 = vmatprep.subr.mxu0 0.0
    %1670 = vmatpush1.msra.mxu0 0.0
    %1671 = vmatprep.subr.mxu0 0.0
    %1672 = vmatpush1.msra.mxu0 0.0
    %1673 = vmatprep.subr.mxu0 0.0
    %1674 = vmatpush1.msra.mxu0 0.0
    %1675 = vmatprep.subr.mxu0 0.0
    %1676 = vmatpush1.msra.mxu0 0.0
    %1677 = vmatprep.subr.mxu0 0.0
    %1678 = vmatpush1.msra.mxu0 0.0
    %1679 = vmatprep.subr.mxu0 0.0
    %1680 = vmatpush1.msra.mxu0 0.0
    %1681 = vmatprep.subr.mxu0 0.0
    %1682 = vmatpush1.msra.mxu0 0.0
    %1683 = vmatprep.subr.mxu0 0.0
    %1684 = vmatpush1.msra.mxu0 0.0
    %1685 = vmatprep.subr.mxu0 0.0
    %1686 = vmatpush1.msra.mxu0 0.0
    %1687 = vmatprep.subr.mxu0 0.0
    %1688 = vmatpush1.msra.mxu0 0.0
    %1689 = vmatprep.subr.mxu0 0.0
    %1690 = vmatpush1.msra.mxu0 0.0
    %1691 = vmatprep.subr.mxu0 0.0
    %1692 = vmatpush1.msra.mxu0 0.0
    %1693 = vmatprep.subr.mxu0 0.0
    %1694 = vmatpush1.msra.mxu0 0.0
    %1695 = vmatprep.subr.mxu0 0.0
    %1696 = vmatpush1.msra.mxu0 0.0
    %1697 = vmatprep.subr.mxu0 0.0
    %1698 = vmatpush1.msra.mxu0 0.0
    %1699 = vmatprep.subr.mxu0 0.0
    %1700 = vmatpush1.msra.mxu0 0.0
    %1701 = vmatprep.subr.mxu0 0.0
    %1702 = vmatpush1.msra.mxu0 0.0
    %1703 = vmatprep.subr.mxu0 0.0
    %1704 = vmatpush1.msra.mxu0 0.0
    %1705 = vmatprep.subr.mxu0 0.0
    %1706 = vmatpush1.msra.mxu0 0.0
    %1707 = vmatprep.subr.mxu0 0.0
    %1708 = vmatpush1.msra.mxu0 0.0
    %1709 = vmatprep.subr.mxu0 0.0
    %1710 = vmatpush1.msra.mxu0 0.0
    %1711 = vmatprep.subr.mxu0 0.0
    %1712 = vmatpush1.msra.mxu0 0.0
    %1713 = vmatprep.subr.mxu0 0.0
    %1714 = vmatpush1.msra.mxu0 0.0
    %1715 = vmatprep.subr.mxu0 0.0
    %1716 = vmatpush1.msra.mxu0 0.0
    %1717 = vmatprep.subr.mxu0 0.0
    %1718 = vmatpush1.msra.mxu0 0.0
    %1719 = vmatprep.mubr.f32.mxu0 0.0
    %1720 = vmatmul.mubr.f32.gmra.mrb[0].mxu0 %v1432
    %v1721 = vpop.f32.mrb[0].mxu0
    %v1722 = vadd.f32 %v1429, %v1721
    %v1723 = vpop.f32.mrb[0].mxu0
    %1724 = vdwg.mxu0
    %1725 = vmatprep.subr.mxu0 0.0
    %1726 = vmatpush1.msra.mxu0 %v1583
    %1727 = vmatprep.subr.mxu0 0.0
    %1728 = vmatpush1.msra.mxu0 0.0
    %1729 = vmatprep.subr.mxu0 0.0
    %1730 = vmatpush1.msra.mxu0 0.0
    %1731 = vmatprep.subr.mxu0 0.0
    %1732 = vmatpush1.msra.mxu0 0.0
    %1733 = vmatprep.subr.mxu0 0.0
    %1734 = vmatpush1.msra.mxu0 0.0
    %1735 = vmatprep.subr.mxu0 0.0
    %1736 = vmatpush1.msra.mxu0 0.0
    %1737 = vmatprep.subr.mxu0 0.0
    %1738 = vmatpush1.msra.mxu0 0.0
    %1739 = vmatprep.subr.mxu0 0.0
    %1740 = vmatpush1.msra.mxu0 0.0
    %1741 = vmatprep.subr.mxu0 0.0
    %1742 = vmatpush1.msra.mxu0 0.0
    %1743 = vmatprep.subr.mxu0 0.0
    %1744 = vmatpush1.msra.mxu0 0.0
    %1745 = vmatprep.subr.mxu0 0.0
    %1746 = vmatpush1.msra.mxu0 0.0
    %1747 = vmatprep.subr.mxu0 0.0
    %1748 = vmatpush1.msra.mxu0 0.0
    %1749 = vmatprep.subr.mxu0 0.0
    %1750 = vmatpush1.msra.mxu0 0.0
    %1751 = vmatprep.subr.mxu0 0.0
    %1752 = vmatpush1.msra.mxu0 0.0
    %1753 = vmatprep.subr.mxu0 0.0
    %1754 = vmatpush1.msra.mxu0 0.0
    %1755 = vmatprep.subr.mxu0 0.0
    %1756 = vmatpush1.msra.mxu0 0.0
    %1757 = vmatprep.subr.mxu0 0.0
    %1758 = vmatpush1.msra.mxu0 0.0
    %1759 = vmatprep.subr.mxu0 0.0
    %1760 = vmatpush1.msra.mxu0 0.0
    %1761 = vmatprep.subr.mxu0 0.0
    %1762 = vmatpush1.msra.mxu0 0.0
    %1763 = vmatprep.subr.mxu0 0.0
    %1764 = vmatpush1.msra.mxu0 0.0
    %1765 = vmatprep.subr.mxu0 0.0
    %1766 = vmatpush1.msra.mxu0 0.0
    %1767 = vmatprep.subr.mxu0 0.0
    %1768 = vmatpush1.msra.mxu0 0.0
    %1769 = vmatprep.subr.mxu0 0.0
    %1770 = vmatpush1.msra.mxu0 0.0
    %1771 = vmatprep.subr.mxu0 0.0
    %1772 = vmatpush1.msra.mxu0 0.0
    %1773 = vmatprep.subr.mxu0 0.0
    %1774 = vmatpush1.msra.mxu0 0.0
    %1775 = vmatprep.subr.mxu0 0.0
    %1776 = vmatpush1.msra.mxu0 0.0
    %1777 = vmatprep.subr.mxu0 0.0
    %1778 = vmatpush1.msra.mxu0 0.0
    %1779 = vmatprep.subr.mxu0 0.0
    %1780 = vmatpush1.msra.mxu0 0.0
    %1781 = vmatprep.subr.mxu0 0.0
    %1782 = vmatpush1.msra.mxu0 0.0
    %1783 = vmatprep.subr.mxu0 0.0
    %1784 = vmatpush1.msra.mxu0 0.0
    %1785 = vmatprep.subr.mxu0 0.0
    %1786 = vmatpush1.msra.mxu0 0.0
    %1787 = vmatprep.subr.mxu0 0.0
    %1788 = vmatpush1.msra.mxu0 0.0
    %1789 = vmatprep.mubr.f32.mxu0 0.0
    %1790 = vmatmul.mubr.f32.gmra.mrb[0].mxu0 %v1510
    %v1791 = vpop.f32.mrb[0].mxu0
    %v1792 = vadd.f32 %v1507, %v1791
    %v1793 = vpop.f32.mrb[0].mxu0
    %1794 = vdwg.mxu0
    %v1796 = vrot.slane %v1652, 4
    %v1798 = vsel %vm378, %v1423, %v1796
    %1799 = vxpose.xlu0.b32.start [1/16] %v1798, 128
    %1800 = vxpose.xlu0.b32.cont [2/16] 0.0, 128
    %1801 = vxpose.xlu0.b32.cont [3/16] 0.0, 128
    %1802 = vxpose.xlu0.b32.cont [4/16] 0.0, 128
    %1803 = vxpose.xlu0.b32.cont [5/16] 0.0, 128
    %1804 = vxpose.xlu0.b32.cont [6/16] 0.0, 128
    %1805 = vxpose.xlu0.b32.cont [7/16] 0.0, 128
    %1806 = vxpose.xlu0.b32.cont [8/16] 0.0, 128
    %1807 = vxpose.xlu0.b32.cont [9/16] 0.0, 128
    %1808 = vxpose.xlu0.b32.cont [10/16] 0.0, 128
    %1809 = vxpose.xlu0.b32.cont [11/16] 0.0, 128
    %1810 = vxpose.xlu0.b32.cont [12/16] 0.0, 128
    %1811 = vxpose.xlu0.b32.cont [13/16] 0.0, 128
    %1812 = vxpose.xlu0.b32.cont [14/16] 0.0, 128
    %1813 = vxpose.xlu0.b32.cont [15/16] 0.0, 128
    %1814 = vxpose.xlu0.b32.end [16/16] 0.0, 128
    %v1815 = vpop.trf.xlu0
    %v1816 = vpop.trf.xlu0
    %v1817 = vpop.trf.xlu0
    %v1818 = vpop.trf.xlu0
    %v1819 = vpop.trf.xlu0
    %v1820 = vpop.trf.xlu0
    %v1821 = vpop.trf.xlu0
    %v1822 = vpop.trf.xlu0
    %v1823 = vpop.trf.xlu0
    %v1824 = vpop.trf.xlu0
    %v1825 = vpop.trf.xlu0
    %v1826 = vpop.trf.xlu0
    %v1827 = vpop.trf.xlu0
    %v1828 = vpop.trf.xlu0
    %v1829 = vpop.trf.xlu0
    %v1830 = vpop.trf.xlu0
    %1832 = vrot.lane.b32.xlu0 %v1501, 64
    %v1833 = vpop.permute.xlu0 %1832
    %v1835 = vsel %vm374, %v1815, 0
    %v1838 = vsel %vm374, %v1816, 0
    %v1841 = vsel %vm374, %v1817, 0
    %v1844 = vsel %vm374, %v1818, 0
    %v1847 = vsel %vm374, %v1819, 0
    %v1850 = vsel %vm374, %v1820, 0
    %v1853 = vsel %vm374, %v1821, 0
    %v1856 = vsel %vm374, %v1822, 0
    %v1858 = vsel %vm378, %v1833, 0
    %1860 = vmatprep.subr.mxu0 0.0
    %1861 = vmatpush1.msra.mxu0 %v1858
    %1862 = vmatprep.subr.mxu0 0.0
    %1863 = vmatpush1.msra.mxu0 0.0
    %1864 = vmatprep.subr.mxu0 0.0
    %1865 = vmatpush1.msra.mxu0 0.0
    %1866 = vmatprep.subr.mxu0 0.0
    %1867 = vmatpush1.msra.mxu0 0.0
    %1868 = vmatprep.subr.mxu0 0.0
    %1869 = vmatpush1.msra.mxu0 0.0
    %1870 = vmatprep.subr.mxu0 0.0
    %1871 = vmatpush1.msra.mxu0 0.0
    %1872 = vmatprep.subr.mxu0 0.0
    %1873 = vmatpush1.msra.mxu0 0.0
    %1874 = vmatprep.subr.mxu0 0.0
    %1875 = vmatpush1.msra.mxu0 0.0
    %1876 = vmatprep.subr.mxu0 0.0
    %1877 = vmatpush1.msra.mxu0 0.0
    %1878 = vmatprep.subr.mxu0 0.0
    %1879 = vmatpush1.msra.mxu0 0.0
    %1880 = vmatprep.subr.mxu0 0.0
    %1881 = vmatpush1.msra.mxu0 0.0
    %1882 = vmatprep.subr.mxu0 0.0
    %1883 = vmatpush1.msra.mxu0 0.0
    %1884 = vmatprep.subr.mxu0 0.0
    %1885 = vmatpush1.msra.mxu0 0.0
    %1886 = vmatprep.subr.mxu0 0.0
    %1887 = vmatpush1.msra.mxu0 0.0
    %1888 = vmatprep.subr.mxu0 0.0
    %1889 = vmatpush1.msra.mxu0 0.0
    %1890 = vmatprep.subr.mxu0 0.0
    %1891 = vmatpush1.msra.mxu0 0.0
    %1892 = vmatprep.subr.mxu0 0.0
    %1893 = vmatpush1.msra.mxu0 0.0
    %1894 = vmatprep.subr.mxu0 0.0
    %1895 = vmatpush1.msra.mxu0 0.0
    %1896 = vmatprep.subr.mxu0 0.0
    %1897 = vmatpush1.msra.mxu0 0.0
    %1898 = vmatprep.subr.mxu0 0.0
    %1899 = vmatpush1.msra.mxu0 0.0
    %1900 = vmatprep.subr.mxu0 0.0
    %1901 = vmatpush1.msra.mxu0 0.0
    %1902 = vmatprep.subr.mxu0 0.0
    %1903 = vmatpush1.msra.mxu0 0.0
    %1904 = vmatprep.subr.mxu0 0.0
    %1905 = vmatpush1.msra.mxu0 0.0
    %1906 = vmatprep.subr.mxu0 0.0
    %1907 = vmatpush1.msra.mxu0 0.0
    %1908 = vmatprep.subr.mxu0 0.0
    %1909 = vmatpush1.msra.mxu0 0.0
    %1910 = vmatprep.subr.mxu0 0.0
    %1911 = vmatpush1.msra.mxu0 0.0
    %1912 = vmatprep.subr.mxu0 0.0
    %1913 = vmatpush1.msra.mxu0 0.0
    %1914 = vmatprep.subr.mxu0 0.0
    %1915 = vmatpush1.msra.mxu0 0.0
    %1916 = vmatprep.subr.mxu0 0.0
    %1917 = vmatpush1.msra.mxu0 0.0
    %1918 = vmatprep.subr.mxu0 0.0
    %1919 = vmatpush1.msra.mxu0 0.0
    %1920 = vmatprep.subr.mxu0 0.0
    %1921 = vmatpush1.msra.mxu0 0.0
    %1922 = vmatprep.subr.mxu0 0.0
    %1923 = vmatpush1.msra.mxu0 0.0
    %1924 = vmatprep.mubr.f32.mxu0 0.0
    %1925 = vmatmul.mubr.f32.gmra.mrb[0].mxu0 %v1835
    %v1926 = vpop.f32.mrb[0].mxu0
    %v1927 = vadd.f32 0.0, %v1926
    %v1928 = vpop.f32.mrb[0].mxu0
    %1929 = vmatprep.mubr.f32.mxu0 0.0
    %1930 = vmatmul.mubr.f32.gmra.mrb[0].mxu0 %v1838
    %v1931 = vpop.f32.mrb[0].mxu0
    %v1932 = vadd.f32 0.0, %v1931
    %v1933 = vpop.f32.mrb[0].mxu0
    %1934 = vmatprep.mubr.f32.mxu0 0.0
    %1935 = vmatmul.mubr.f32.gmra.mrb[0].mxu0 %v1841
    %v1936 = vpop.f32.mrb[0].mxu0
    %v1937 = vadd.f32 0.0, %v1936
    %v1938 = vpop.f32.mrb[0].mxu0
    %1939 = vmatprep.mubr.f32.mxu0 0.0
    %1940 = vmatmul.mubr.f32.gmra.mrb[0].mxu0 %v1844
    %v1941 = vpop.f32.mrb[0].mxu0
    %v1942 = vadd.f32 0.0, %v1941
    %v1943 = vpop.f32.mrb[0].mxu0
    %1944 = vmatprep.mubr.f32.mxu0 0.0
    %1945 = vmatmul.mubr.f32.gmra.mrb[0].mxu0 %v1847
    %v1946 = vpop.f32.mrb[0].mxu0
    %v1947 = vadd.f32 0.0, %v1946
    %v1948 = vpop.f32.mrb[0].mxu0
    %1949 = vmatprep.mubr.f32.mxu0 0.0
    %1950 = vmatmul.mubr.f32.gmra.mrb[0].mxu0 %v1850
    %v1951 = vpop.f32.mrb[0].mxu0
    %v1952 = vadd.f32 0.0, %v1951
    %v1953 = vpop.f32.mrb[0].mxu0
    %1954 = vmatprep.mubr.f32.mxu0 0.0
    %1955 = vmatmul.mubr.f32.gmra.mrb[0].mxu0 %v1853
    %v1956 = vpop.f32.mrb[0].mxu0
    %v1957 = vadd.f32 0.0, %v1956
    %v1958 = vpop.f32.mrb[0].mxu0
    %1959 = vmatprep.mubr.f32.mxu0 0.0
    %1960 = vmatmul.mubr.f32.gmra.mrb[0].mxu0 %v1856
    %v1961 = vpop.f32.mrb[0].mxu0
    %v1962 = vadd.f32 0.0, %v1961
    %v1963 = vpop.f32.mrb[0].mxu0
    %1964 = vdwg.mxu0
    %v1965 = vsel %vm360, %v1927, -inf
    %1966 = vmax.xlane.f32.xlu0 %v1965
    %v1967 = vpop.xlane.xlu0 %1966
    %v1968 = vsel %vm360, %v1932, -inf
    %1969 = vmax.xlane.f32.xlu0 %v1968
    %v1970 = vpop.xlane.xlu0 %1969
    %v1971 = vsel %vm360, %v1937, -inf
    %1972 = vmax.xlane.f32.xlu0 %v1971
    %v1973 = vpop.xlane.xlu0 %1972
    %v1974 = vsel %vm360, %v1942, -inf
    %1975 = vmax.xlane.f32.xlu0 %v1974
    %v1976 = vpop.xlane.xlu0 %1975
    %v1977 = vsel %vm360, %v1947, -inf
    %1978 = vmax.xlane.f32.xlu0 %v1977
    %v1979 = vpop.xlane.xlu0 %1978
    %v1980 = vsel %vm360, %v1952, -inf
    %1981 = vmax.xlane.f32.xlu0 %v1980
    %v1982 = vpop.xlane.xlu0 %1981
    %v1983 = vsel %vm360, %v1957, -inf
    %1984 = vmax.xlane.f32.xlu0 %v1983
    %v1985 = vpop.xlane.xlu0 %1984
    %v1986 = vsel %vm360, %v1962, -inf
    %1987 = vmax.xlane.f32.xlu0 %v1986
    %v1988 = vpop.xlane.xlu0 %1987
    %v1989 = vsub.f32 %v1927, %v1967
    %v1990 = vsub.f32 %v1932, %v1970
    %v1991 = vsub.f32 %v1937, %v1973
    %v1992 = vsub.f32 %v1942, %v1976
    %v1993 = vsub.f32 %v1947, %v1979
    %v1994 = vsub.f32 %v1952, %v1982
    %v1995 = vsub.f32 %v1957, %v1985
    %v1996 = vsub.f32 %v1962, %v1988
    %v1997 = vmul.f32 %v1989, 1.442695
    %v1998 = vpow.pop %v1997
    %v1999 = vmul.f32 %v1990, 1.442695
    %v2000 = vpow.pop %v1999
    %v2001 = vmul.f32 %v1991, 1.442695
    %v2002 = vpow.pop %v2001
    %v2003 = vmul.f32 %v1992, 1.442695
    %v2004 = vpow.pop %v2003
    %v2005 = vmul.f32 %v1993, 1.442695
    %v2006 = vpow.pop %v2005
    %v2007 = vmul.f32 %v1994, 1.442695
    %v2008 = vpow.pop %v2007
    %v2009 = vmul.f32 %v1995, 1.442695
    %v2010 = vpow.pop %v2009
    %v2011 = vmul.f32 %v1996, 1.442695
    %v2012 = vpow.pop %v2011
    %v2013 = vsel %vm360, %v1998, 0.0
    %2014 = vadd.xlane.f32.xlu0 %v2013
    %v2015 = vpop.xlane.xlu0 %2014
    %v2016 = vsel %vm360, %v2000, 0.0
    %2017 = vadd.xlane.f32.xlu0 %v2016
    %v2018 = vpop.xlane.xlu0 %2017
    %v2019 = vsel %vm360, %v2002, 0.0
    %2020 = vadd.xlane.f32.xlu0 %v2019
    %v2021 = vpop.xlane.xlu0 %2020
    %v2022 = vsel %vm360, %v2004, 0.0
    %2023 = vadd.xlane.f32.xlu0 %v2022
    %v2024 = vpop.xlane.xlu0 %2023
    %v2025 = vsel %vm360, %v2006, 0.0
    %2026 = vadd.xlane.f32.xlu0 %v2025
    %v2027 = vpop.xlane.xlu0 %2026
    %v2028 = vsel %vm360, %v2008, 0.0
    %2029 = vadd.xlane.f32.xlu0 %v2028
    %v2030 = vpop.xlane.xlu0 %2029
    %v2031 = vsel %vm360, %v2010, 0.0
    %2032 = vadd.xlane.f32.xlu0 %v2031
    %v2033 = vpop.xlane.xlu0 %2032
    %v2034 = vsel %vm360, %v2012, 0.0
    %2035 = vadd.xlane.f32.xlu0 %v2034
    %v2036 = vpop.xlane.xlu0 %2035
    %v2037 = vrcp.pop %v2015
    %v2038 = vrcp.pop %v2018
    %v2039 = vrcp.pop %v2021
    %v2040 = vrcp.pop %v2024
    %v2041 = vrcp.pop %v2027
    %v2042 = vrcp.pop %v2030
    %v2043 = vrcp.pop %v2033
    %v2044 = vrcp.pop %v2036
    %v2045 = vmul.f32 %v1998, %v2037
    %v2046 = vmul.f32 %v2000, %v2038
    %v2047 = vmul.f32 %v2002, %v2039
    %v2048 = vmul.f32 %v2004, %v2040
    %v2049 = vmul.f32 %v2006, %v2041
    %v2050 = vmul.f32 %v2008, %v2042
    %v2051 = vmul.f32 %v2010, %v2043
    %v2052 = vmul.f32 %v2012, %v2044
    %v2054 = vsel %vm374, %v1823, 0
    %v2057 = vsel %vm374, %v1824, 0
    %v2060 = vsel %vm374, %v1825, 0
    %v2063 = vsel %vm374, %v1826, 0
    %v2066 = vsel %vm374, %v1827, 0
    %v2069 = vsel %vm374, %v1828, 0
    %v2072 = vsel %vm374, %v1829, 0
    %v2075 = vsel %vm374, %v1830, 0
    %v2077 = vsel %vm378, %v1501, 0
    %2079 = vmatprep.subr.mxu0 0.0
    %2080 = vmatpush1.msra.mxu0 %v2077
    %2081 = vmatprep.subr.mxu0 0.0
    %2082 = vmatpush1.msra.mxu0 0.0
    %2083 = vmatprep.subr.mxu0 0.0
    %2084 = vmatpush1.msra.mxu0 0.0
    %2085 = vmatprep.subr.mxu0 0.0
    %2086 = vmatpush1.msra.mxu0 0.0
    %2087 = vmatprep.subr.mxu0 0.0
    %2088 = vmatpush1.msra.mxu0 0.0
    %2089 = vmatprep.subr.mxu0 0.0
    %2090 = vmatpush1.msra.mxu0 0.0
    %2091 = vmatprep.subr.mxu0 0.0
    %2092 = vmatpush1.msra.mxu0 0.0
    %2093 = vmatprep.subr.mxu0 0.0
    %2094 = vmatpush1.msra.mxu0 0.0
    %2095 = vmatprep.subr.mxu0 0.0
    %2096 = vmatpush1.msra.mxu0 0.0
    %2097 = vmatprep.subr.mxu0 0.0
    %2098 = vmatpush1.msra.mxu0 0.0
    %2099 = vmatprep.subr.mxu0 0.0
    %2100 = vmatpush1.msra.mxu0 0.0
    %2101 = vmatprep.subr.mxu0 0.0
    %2102 = vmatpush1.msra.mxu0 0.0
    %2103 = vmatprep.subr.mxu0 0.0
    %2104 = vmatpush1.msra.mxu0 0.0
    %2105 = vmatprep.subr.mxu0 0.0
    %2106 = vmatpush1.msra.mxu0 0.0
    %2107 = vmatprep.subr.mxu0 0.0
    %2108 = vmatpush1.msra.mxu0 0.0
    %2109 = vmatprep.subr.mxu0 0.0
    %2110 = vmatpush1.msra.mxu0 0.0
    %2111 = vmatprep.subr.mxu0 0.0
    %2112 = vmatpush1.msra.mxu0 0.0
    %2113 = vmatprep.subr.mxu0 0.0
    %2114 = vmatpush1.msra.mxu0 0.0
    %2115 = vmatprep.subr.mxu0 0.0
    %2116 = vmatpush1.msra.mxu0 0.0
    %2117 = vmatprep.subr.mxu0 0.0
    %2118 = vmatpush1.msra.mxu0 0.0
    %2119 = vmatprep.subr.mxu0 0.0
    %2120 = vmatpush1.msra.mxu0 0.0
    %2121 = vmatprep.subr.mxu0 0.0
    %2122 = vmatpush1.msra.mxu0 0.0
    %2123 = vmatprep.subr.mxu0 0.0
    %2124 = vmatpush1.msra.mxu0 0.0
    %2125 = vmatprep.subr.mxu0 0.0
    %2126 = vmatpush1.msra.mxu0 0.0
    %2127 = vmatprep.subr.mxu0 0.0
    %2128 = vmatpush1.msra.mxu0 0.0
    %2129 = vmatprep.subr.mxu0 0.0
    %2130 = vmatpush1.msra.mxu0 0.0
    %2131 = vmatprep.subr.mxu0 0.0
    %2132 = vmatpush1.msra.mxu0 0.0
    %2133 = vmatprep.subr.mxu0 0.0
    %2134 = vmatpush1.msra.mxu0 0.0
    %2135 = vmatprep.subr.mxu0 0.0
    %2136 = vmatpush1.msra.mxu0 0.0
    %2137 = vmatprep.subr.mxu0 0.0
    %2138 = vmatpush1.msra.mxu0 0.0
    %2139 = vmatprep.subr.mxu0 0.0
    %2140 = vmatpush1.msra.mxu0 0.0
    %2141 = vmatprep.subr.mxu0 0.0
    %2142 = vmatpush1.msra.mxu0 0.0
    %2143 = vmatprep.mubr.f32.mxu0 0.0
    %2144 = vmatmul.mubr.f32.gmra.mrb[0].mxu0 %v2054
    %v2145 = vpop.f32.mrb[0].mxu0
    %v2146 = vadd.f32 0.0, %v2145
    %v2147 = vpop.f32.mrb[0].mxu0
    %2148 = vmatprep.mubr.f32.mxu0 0.0
    %2149 = vmatmul.mubr.f32.gmra.mrb[0].mxu0 %v2057
    %v2150 = vpop.f32.mrb[0].mxu0
    %v2151 = vadd.f32 0.0, %v2150
    %v2152 = vpop.f32.mrb[0].mxu0
    %2153 = vmatprep.mubr.f32.mxu0 0.0
    %2154 = vmatmul.mubr.f32.gmra.mrb[0].mxu0 %v2060
    %v2155 = vpop.f32.mrb[0].mxu0
    %v2156 = vadd.f32 0.0, %v2155
    %v2157 = vpop.f32.mrb[0].mxu0
    %2158 = vmatprep.mubr.f32.mxu0 0.0
    %2159 = vmatmul.mubr.f32.gmra.mrb[0].mxu0 %v2063
    %v2160 = vpop.f32.mrb[0].mxu0
    %v2161 = vadd.f32 0.0, %v2160
    %v2162 = vpop.f32.mrb[0].mxu0
    %2163 = vmatprep.mubr.f32.mxu0 0.0
    %2164 = vmatmul.mubr.f32.gmra.mrb[0].mxu0 %v2066
    %v2165 = vpop.f32.mrb[0].mxu0
    %v2166 = vadd.f32 0.0, %v2165
    %v2167 = vpop.f32.mrb[0].mxu0
    %2168 = vmatprep.mubr.f32.mxu0 0.0
    %2169 = vmatmul.mubr.f32.gmra.mrb[0].mxu0 %v2069
    %v2170 = vpop.f32.mrb[0].mxu0
    %v2171 = vadd.f32 0.0, %v2170
    %v2172 = vpop.f32.mrb[0].mxu0
    %2173 = vmatprep.mubr.f32.mxu0 0.0
    %2174 = vmatmul.mubr.f32.gmra.mrb[0].mxu0 %v2072
    %v2175 = vpop.f32.mrb[0].mxu0
    %v2176 = vadd.f32 0.0, %v2175
    %v2177 = vpop.f32.mrb[0].mxu0
    %2178 = vmatprep.mubr.f32.mxu0 0.0
    %2179 = vmatmul.mubr.f32.gmra.mrb[0].mxu0 %v2075
    %v2180 = vpop.f32.mrb[0].mxu0
    %v2181 = vadd.f32 0.0, %v2180
    %v2182 = vpop.f32.mrb[0].mxu0
    %2183 = vdwg.mxu0
    %v2184 = vsel %vm360, %v2146, -inf
    %2185 = vmax.xlane.f32.xlu0 %v2184
    %v2186 = vpop.xlane.xlu0 %2185
    %v2187 = vsel %vm360, %v2151, -inf
    %2188 = vmax.xlane.f32.xlu0 %v2187
    %v2189 = vpop.xlane.xlu0 %2188
    %v2190 = vsel %vm360, %v2156, -inf
    %2191 = vmax.xlane.f32.xlu0 %v2190
    %v2192 = vpop.xlane.xlu0 %2191
    %v2193 = vsel %vm360, %v2161, -inf
    %2194 = vmax.xlane.f32.xlu0 %v2193
    %v2195 = vpop.xlane.xlu0 %2194
    %v2196 = vsel %vm360, %v2166, -inf
    %2197 = vmax.xlane.f32.xlu0 %v2196
    %v2198 = vpop.xlane.xlu0 %2197
    %v2199 = vsel %vm360, %v2171, -inf
    %2200 = vmax.xlane.f32.xlu0 %v2199
    %v2201 = vpop.xlane.xlu0 %2200
    %v2202 = vsel %vm360, %v2176, -inf
    %2203 = vmax.xlane.f32.xlu0 %v2202
    %v2204 = vpop.xlane.xlu0 %2203
    %v2205 = vsel %vm360, %v2181, -inf
    %2206 = vmax.xlane.f32.xlu0 %v2205
    %v2207 = vpop.xlane.xlu0 %2206
    %v2208 = vsub.f32 %v2146, %v2186
    %v2209 = vsub.f32 %v2151, %v2189
    %v2210 = vsub.f32 %v2156, %v2192
    %v2211 = vsub.f32 %v2161, %v2195
    %v2212 = vsub.f32 %v2166, %v2198
    %v2213 = vsub.f32 %v2171, %v2201
    %v2214 = vsub.f32 %v2176, %v2204
    %v2215 = vsub.f32 %v2181, %v2207
    %v2216 = vmul.f32 %v2208, 1.442695
    %v2217 = vpow.pop %v2216
    %v2218 = vmul.f32 %v2209, 1.442695
    %v2219 = vpow.pop %v2218
    %v2220 = vmul.f32 %v2210, 1.442695
    %v2221 = vpow.pop %v2220
    %v2222 = vmul.f32 %v2211, 1.442695
    %v2223 = vpow.pop %v2222
    %v2224 = vmul.f32 %v2212, 1.442695
    %v2225 = vpow.pop %v2224
    %v2226 = vmul.f32 %v2213, 1.442695
    %v2227 = vpow.pop %v2226
    %v2228 = vmul.f32 %v2214, 1.442695
    %v2229 = vpow.pop %v2228
    %v2230 = vmul.f32 %v2215, 1.442695
    %v2231 = vpow.pop %v2230
    %v2232 = vsel %vm360, %v2217, 0.0
    %2233 = vadd.xlane.f32.xlu0 %v2232
    %v2234 = vpop.xlane.xlu0 %2233
    %v2235 = vsel %vm360, %v2219, 0.0
    %2236 = vadd.xlane.f32.xlu0 %v2235
    %v2237 = vpop.xlane.xlu0 %2236
    %v2238 = vsel %vm360, %v2221, 0.0
    %2239 = vadd.xlane.f32.xlu0 %v2238
    %v2240 = vpop.xlane.xlu0 %2239
    %v2241 = vsel %vm360, %v2223, 0.0
    %2242 = vadd.xlane.f32.xlu0 %v2241
    %v2243 = vpop.xlane.xlu0 %2242
    %v2244 = vsel %vm360, %v2225, 0.0
    %2245 = vadd.xlane.f32.xlu0 %v2244
    %v2246 = vpop.xlane.xlu0 %2245
    %v2247 = vsel %vm360, %v2227, 0.0
    %2248 = vadd.xlane.f32.xlu0 %v2247
    %v2249 = vpop.xlane.xlu0 %2248
    %v2250 = vsel %vm360, %v2229, 0.0
    %2251 = vadd.xlane.f32.xlu0 %v2250
    %v2252 = vpop.xlane.xlu0 %2251
    %v2253 = vsel %vm360, %v2231, 0.0
    %2254 = vadd.xlane.f32.xlu0 %v2253
    %v2255 = vpop.xlane.xlu0 %2254
    %v2256 = vrcp.pop %v2234
    %v2257 = vrcp.pop %v2237
    %v2258 = vrcp.pop %v2240
    %v2259 = vrcp.pop %v2243
    %v2260 = vrcp.pop %v2246
    %v2261 = vrcp.pop %v2249
    %v2262 = vrcp.pop %v2252
    %v2263 = vrcp.pop %v2255
    %v2264 = vmul.f32 %v2217, %v2256
    %v2265 = vmul.f32 %v2219, %v2257
    %v2266 = vmul.f32 %v2221, %v2258
    %v2267 = vmul.f32 %v2223, %v2259
    %v2268 = vmul.f32 %v2225, %v2260
    %v2269 = vmul.f32 %v2227, %v2261
    %v2270 = vmul.f32 %v2229, %v2262
    %v2271 = vmul.f32 %v2231, %v2263
    %v2273 = vsel %vm360, %v1579, 0
    %v2276 = vsel %vm360, %v2264, 0
    %v2279 = vsel %vm360, %v2265, 0
    %v2282 = vsel %vm360, %v2266, 0
    %v2285 = vsel %vm360, %v2267, 0
    %v2288 = vsel %vm360, %v2268, 0
    %v2291 = vsel %vm360, %v2269, 0
    %v2294 = vsel %vm360, %v2270, 0
    %v2297 = vsel %vm360, %v2271, 0
    %2299 = vmatprep.subr.mxu0 0.0
    %2300 = vmatpush1.xpose.msra.mxu0 %v2276
    %2301 = vmatprep.subr.mxu0 0.0
    %2302 = vmatpush1.xpose.msra.mxu0 %v2279
    %2303 = vmatprep.subr.mxu0 0.0
    %2304 = vmatpush1.xpose.msra.mxu0 %v2282
    %2305 = vmatprep.subr.mxu0 0.0
    %2306 = vmatpush1.xpose.msra.mxu0 %v2285
    %2307 = vmatprep.subr.mxu0 0.0
    %2308 = vmatpush1.xpose.msra.mxu0 %v2288
    %2309 = vmatprep.subr.mxu0 0.0
    %2310 = vmatpush1.xpose.msra.mxu0 %v2291
    %2311 = vmatprep.subr.mxu0 0.0
    %2312 = vmatpush1.xpose.msra.mxu0 %v2294
    %2313 = vmatprep.subr.mxu0 0.0
    %2314 = vmatpush1.xpose.msra.mxu0 %v2297
    %2315 = vmatprep.subr.mxu0 0.0
    %2316 = vmatpush1.xpose.msra.mxu0 0.0
    %2317 = vmatprep.subr.mxu0 0.0
    %2318 = vmatpush1.xpose.msra.mxu0 0.0
    %2319 = vmatprep.subr.mxu0 0.0
    %2320 = vmatpush1.xpose.msra.mxu0 0.0
    %2321 = vmatprep.subr.mxu0 0.0
    %2322 = vmatpush1.xpose.msra.mxu0 0.0
    %2323 = vmatprep.subr.mxu0 0.0
    %2324 = vmatpush1.xpose.msra.mxu0 0.0
    %2325 = vmatprep.subr.mxu0 0.0
    %2326 = vmatpush1.xpose.msra.mxu0 0.0
    %2327 = vmatprep.subr.mxu0 0.0
    %2328 = vmatpush1.xpose.msra.mxu0 0.0
    %2329 = vmatprep.subr.mxu0 0.0
    %2330 = vmatpush1.xpose.msra.mxu0 0.0
    %2331 = vmatprep.subr.mxu0 0.0
    %2332 = vmatpush1.xpose.msra.mxu0 0.0
    %2333 = vmatprep.subr.mxu0 0.0
    %2334 = vmatpush1.xpose.msra.mxu0 0.0
    %2335 = vmatprep.subr.mxu0 0.0
    %2336 = vmatpush1.xpose.msra.mxu0 0.0
    %2337 = vmatprep.subr.mxu0 0.0
    %2338 = vmatpush1.xpose.msra.mxu0 0.0
    %2339 = vmatprep.subr.mxu0 0.0
    %2340 = vmatpush1.xpose.msra.mxu0 0.0
    %2341 = vmatprep.subr.mxu0 0.0
    %2342 = vmatpush1.xpose.msra.mxu0 0.0
    %2343 = vmatprep.subr.mxu0 0.0
    %2344 = vmatpush1.xpose.msra.mxu0 0.0
    %2345 = vmatprep.subr.mxu0 0.0
    %2346 = vmatpush1.xpose.msra.mxu0 0.0
    %2347 = vmatprep.subr.mxu0 0.0
    %2348 = vmatpush1.xpose.msra.mxu0 0.0
    %2349 = vmatprep.subr.mxu0 0.0
    %2350 = vmatpush1.xpose.msra.mxu0 0.0
    %2351 = vmatprep.subr.mxu0 0.0
    %2352 = vmatpush1.xpose.msra.mxu0 0.0
    %2353 = vmatprep.subr.mxu0 0.0
    %2354 = vmatpush1.xpose.msra.mxu0 0.0
    %2355 = vmatprep.subr.mxu0 0.0
    %2356 = vmatpush1.xpose.msra.mxu0 0.0
    %2357 = vmatprep.subr.mxu0 0.0
    %2358 = vmatpush1.xpose.msra.mxu0 0.0
    %2359 = vmatprep.subr.mxu0 0.0
    %2360 = vmatpush1.xpose.msra.mxu0 0.0
    %2361 = vmatprep.subr.mxu0 0.0
    %2362 = vmatpush1.xpose.msra.mxu0 0.0
    %2363 = vmatprep.mubr.f32.mxu0 0.0
    %2364 = vmatmul.mubr.f32.gmra.mrb[0].mxu0 %v2273
    %v2365 = vpop.f32.mrb[0].mxu0
    %v2366 = vadd.f32 0.0, %v2365
    %v2367 = vpop.f32.mrb[0].mxu0
    %2368 = vdwg.mxu0
    %2369 = vrot.lane.b32.xlu0 %v1579, 64
    %v2370 = vpop.permute.xlu0 %2369
    %v2371 = vsel %vm360, %v2370, 0
    %v2374 = vsel %vm360, %v2045, 0
    %v2377 = vsel %vm360, %v2046, 0
    %v2380 = vsel %vm360, %v2047, 0
    %v2383 = vsel %vm360, %v2048, 0
    %v2386 = vsel %vm360, %v2049, 0
    %v2389 = vsel %vm360, %v2050, 0
    %v2392 = vsel %vm360, %v2051, 0
    %v2395 = vsel %vm360, %v2052, 0
    %2397 = vmatprep.subr.mxu0 0.0
    %2398 = vmatpush1.xpose.msra.mxu0 %v2374
    %2399 = vmatprep.subr.mxu0 0.0
    %2400 = vmatpush1.xpose.msra.mxu0 %v2377
    %2401 = vmatprep.subr.mxu0 0.0
    %2402 = vmatpush1.xpose.msra.mxu0 %v2380
    %2403 = vmatprep.subr.mxu0 0.0
    %2404 = vmatpush1.xpose.msra.mxu0 %v2383
    %2405 = vmatprep.subr.mxu0 0.0
    %2406 = vmatpush1.xpose.msra.mxu0 %v2386
    %2407 = vmatprep.subr.mxu0 0.0
    %2408 = vmatpush1.xpose.msra.mxu0 %v2389
    %2409 = vmatprep.subr.mxu0 0.0
    %2410 = vmatpush1.xpose.msra.mxu0 %v2392
    %2411 = vmatprep.subr.mxu0 0.0
    %2412 = vmatpush1.xpose.msra.mxu0 %v2395
    %2413 = vmatprep.subr.mxu0 0.0
    %2414 = vmatpush1.xpose.msra.mxu0 0.0
    %2415 = vmatprep.subr.mxu0 0.0
    %2416 = vmatpush1.xpose.msra.mxu0 0.0
    %2417 = vmatprep.subr.mxu0 0.0
    %2418 = vmatpush1.xpose.msra.mxu0 0.0
    %2419 = vmatprep.subr.mxu0 0.0
    %2420 = vmatpush1.xpose.msra.mxu0 0.0
    %2421 = vmatprep.subr.mxu0 0.0
    %2422 = vmatpush1.xpose.msra.mxu0 0.0
    %2423 = vmatprep.subr.mxu0 0.0
    %2424 = vmatpush1.xpose.msra.mxu0 0.0
    %2425 = vmatprep.subr.mxu0 0.0
    %2426 = vmatpush1.xpose.msra.mxu0 0.0
    %2427 = vmatprep.subr.mxu0 0.0
    %2428 = vmatpush1.xpose.msra.mxu0 0.0
    %2429 = vmatprep.subr.mxu0 0.0
    %2430 = vmatpush1.xpose.msra.mxu0 0.0
    %2431 = vmatprep.subr.mxu0 0.0
    %2432 = vmatpush1.xpose.msra.mxu0 0.0
    %2433 = vmatprep.subr.mxu0 0.0
    %2434 = vmatpush1.xpose.msra.mxu0 0.0
    %2435 = vmatprep.subr.mxu0 0.0
    %2436 = vmatpush1.xpose.msra.mxu0 0.0
    %2437 = vmatprep.subr.mxu0 0.0
    %2438 = vmatpush1.xpose.msra.mxu0 0.0
    %2439 = vmatprep.subr.mxu0 0.0
    %2440 = vmatpush1.xpose.msra.mxu0 0.0
    %2441 = vmatprep.subr.mxu0 0.0
    %2442 = vmatpush1.xpose.msra.mxu0 0.0
    %2443 = vmatprep.subr.mxu0 0.0
    %2444 = vmatpush1.xpose.msra.mxu0 0.0
    %2445 = vmatprep.subr.mxu0 0.0
    %2446 = vmatpush1.xpose.msra.mxu0 0.0
    %2447 = vmatprep.subr.mxu0 0.0
    %2448 = vmatpush1.xpose.msra.mxu0 0.0
    %2449 = vmatprep.subr.mxu0 0.0
    %2450 = vmatpush1.xpose.msra.mxu0 0.0
    %2451 = vmatprep.subr.mxu0 0.0
    %2452 = vmatpush1.xpose.msra.mxu0 0.0
    %2453 = vmatprep.subr.mxu0 0.0
    %2454 = vmatpush1.xpose.msra.mxu0 0.0
    %2455 = vmatprep.subr.mxu0 0.0
    %2456 = vmatpush1.xpose.msra.mxu0 0.0
    %2457 = vmatprep.subr.mxu0 0.0
    %2458 = vmatpush1.xpose.msra.mxu0 0.0
    %2459 = vmatprep.subr.mxu0 0.0
    %2460 = vmatpush1.xpose.msra.mxu0 0.0
    %2461 = vmatprep.mubr.f32.mxu0 0.0
    %2462 = vmatmul.mubr.f32.gmra.mrb[0].mxu0 %v2371
    %v2463 = vpop.f32.mrb[0].mxu0
    %v2464 = vadd.f32 %v2366, %v2463
    %v2465 = vpop.f32.mrb[0].mxu0
    %2466 = vdwg.mxu0
    %2467 = vrot.lane.b32.xlu0 %v1815, 124
    %v2468 = vpop.permute.xlu0 %2467
    %2469 = vrot.lane.b32.xlu0 %v1816, 124
    %v2470 = vpop.permute.xlu0 %2469
    %2471 = vrot.lane.b32.xlu0 %v1817, 124
    %v2472 = vpop.permute.xlu0 %2471
    %2473 = vrot.lane.b32.xlu0 %v1818, 124
    %v2474 = vpop.permute.xlu0 %2473
    %2475 = vrot.lane.b32.xlu0 %v1819, 124
    %v2476 = vpop.permute.xlu0 %2475
    %2477 = vrot.lane.b32.xlu0 %v1820, 124
    %v2478 = vpop.permute.xlu0 %2477
    %2479 = vrot.lane.b32.xlu0 %v1821, 124
    %v2480 = vpop.permute.xlu0 %2479
    %2481 = vrot.lane.b32.xlu0 %v1822, 124
    %v2482 = vpop.permute.xlu0 %2481
    %2484 = vrot.lane.b32.xlu0 %v1722, 64
    %v2485 = vpop.permute.xlu0 %2484
    %v2486 = vsel %vm374, %v2468, 0
    %v2488 = vsel %vm374, %v2470, 0
    %v2490 = vsel %vm374, %v2472, 0
    %v2492 = vsel %vm374, %v2474, 0
    %v2494 = vsel %vm374, %v2476, 0
    %v2496 = vsel %vm374, %v2478, 0
    %v2498 = vsel %vm374, %v2480, 0
    %v2500 = vsel %vm374, %v2482, 0
    %v2502 = vsel %vm378, %v2485, 0
    %2504 = vmatprep.subr.mxu0 0.0
    %2505 = vmatpush1.msra.mxu0 %v2502
    %2506 = vmatprep.subr.mxu0 0.0
    %2507 = vmatpush1.msra.mxu0 0.0
    %2508 = vmatprep.subr.mxu0 0.0
    %2509 = vmatpush1.msra.mxu0 0.0
    %2510 = vmatprep.subr.mxu0 0.0
    %2511 = vmatpush1.msra.mxu0 0.0
    %2512 = vmatprep.subr.mxu0 0.0
    %2513 = vmatpush1.msra.mxu0 0.0
    %2514 = vmatprep.subr.mxu0 0.0
    %2515 = vmatpush1.msra.mxu0 0.0
    %2516 = vmatprep.subr.mxu0 0.0
    %2517 = vmatpush1.msra.mxu0 0.0
    %2518 = vmatprep.subr.mxu0 0.0
    %2519 = vmatpush1.msra.mxu0 0.0
    %2520 = vmatprep.subr.mxu0 0.0
    %2521 = vmatpush1.msra.mxu0 0.0
    %2522 = vmatprep.subr.mxu0 0.0
    %2523 = vmatpush1.msra.mxu0 0.0
    %2524 = vmatprep.subr.mxu0 0.0
    %2525 = vmatpush1.msra.mxu0 0.0
    %2526 = vmatprep.subr.mxu0 0.0
    %2527 = vmatpush1.msra.mxu0 0.0
    %2528 = vmatprep.subr.mxu0 0.0
    %2529 = vmatpush1.msra.mxu0 0.0
    %2530 = vmatprep.subr.mxu0 0.0
    %2531 = vmatpush1.msra.mxu0 0.0
    %2532 = vmatprep.subr.mxu0 0.0
    %2533 = vmatpush1.msra.mxu0 0.0
    %2534 = vmatprep.subr.mxu0 0.0
    %2535 = vmatpush1.msra.mxu0 0.0
    %2536 = vmatprep.subr.mxu0 0.0
    %2537 = vmatpush1.msra.mxu0 0.0
    %2538 = vmatprep.subr.mxu0 0.0
    %2539 = vmatpush1.msra.mxu0 0.0
    %2540 = vmatprep.subr.mxu0 0.0
    %2541 = vmatpush1.msra.mxu0 0.0
    %2542 = vmatprep.subr.mxu0 0.0
    %2543 = vmatpush1.msra.mxu0 0.0
    %2544 = vmatprep.subr.mxu0 0.0
    %2545 = vmatpush1.msra.mxu0 0.0
    %2546 = vmatprep.subr.mxu0 0.0
    %2547 = vmatpush1.msra.mxu0 0.0
    %2548 = vmatprep.subr.mxu0 0.0
    %2549 = vmatpush1.msra.mxu0 0.0
    %2550 = vmatprep.subr.mxu0 0.0
    %2551 = vmatpush1.msra.mxu0 0.0
    %2552 = vmatprep.subr.mxu0 0.0
    %2553 = vmatpush1.msra.mxu0 0.0
    %2554 = vmatprep.subr.mxu0 0.0
    %2555 = vmatpush1.msra.mxu0 0.0
    %2556 = vmatprep.subr.mxu0 0.0
    %2557 = vmatpush1.msra.mxu0 0.0
    %2558 = vmatprep.subr.mxu0 0.0
    %2559 = vmatpush1.msra.mxu0 0.0
    %2560 = vmatprep.subr.mxu0 0.0
    %2561 = vmatpush1.msra.mxu0 0.0
    %2562 = vmatprep.subr.mxu0 0.0
    %2563 = vmatpush1.msra.mxu0 0.0
    %2564 = vmatprep.subr.mxu0 0.0
    %2565 = vmatpush1.msra.mxu0 0.0
    %2566 = vmatprep.subr.mxu0 0.0
    %2567 = vmatpush1.msra.mxu0 0.0
    %2568 = vmatprep.mubr.f32.mxu0 0.0
    %2569 = vmatmul.mubr.f32.gmra.mrb[0].mxu0 %v2486
    %v2570 = vpop.f32.mrb[0].mxu0
    %v2571 = vadd.f32 0.0, %v2570
    %v2572 = vpop.f32.mrb[0].mxu0
    %2573 = vmatprep.mubr.f32.mxu0 0.0
    %2574 = vmatmul.mubr.f32.gmra.mrb[0].mxu0 %v2488
    %v2575 = vpop.f32.mrb[0].mxu0
    %v2576 = vadd.f32 0.0, %v2575
    %v2577 = vpop.f32.mrb[0].mxu0
    %2578 = vmatprep.mubr.f32.mxu0 0.0
    %2579 = vmatmul.mubr.f32.gmra.mrb[0].mxu0 %v2490
    %v2580 = vpop.f32.mrb[0].mxu0
    %v2581 = vadd.f32 0.0, %v2580
    %v2582 = vpop.f32.mrb[0].mxu0
    %2583 = vmatprep.mubr.f32.mxu0 0.0
    %2584 = vmatmul.mubr.f32.gmra.mrb[0].mxu0 %v2492
    %v2585 = vpop.f32.mrb[0].mxu0
    %v2586 = vadd.f32 0.0, %v2585
    %v2587 = vpop.f32.mrb[0].mxu0
    %2588 = vmatprep.mubr.f32.mxu0 0.0
    %2589 = vmatmul.mubr.f32.gmra.mrb[0].mxu0 %v2494
    %v2590 = vpop.f32.mrb[0].mxu0
    %v2591 = vadd.f32 0.0, %v2590
    %v2592 = vpop.f32.mrb[0].mxu0
    %2593 = vmatprep.mubr.f32.mxu0 0.0
    %2594 = vmatmul.mubr.f32.gmra.mrb[0].mxu0 %v2496
    %v2595 = vpop.f32.mrb[0].mxu0
    %v2596 = vadd.f32 0.0, %v2595
    %v2597 = vpop.f32.mrb[0].mxu0
    %2598 = vmatprep.mubr.f32.mxu0 0.0
    %2599 = vmatmul.mubr.f32.gmra.mrb[0].mxu0 %v2498
    %v2600 = vpop.f32.mrb[0].mxu0
    %v2601 = vadd.f32 0.0, %v2600
    %v2602 = vpop.f32.mrb[0].mxu0
    %2603 = vmatprep.mubr.f32.mxu0 0.0
    %2604 = vmatmul.mubr.f32.gmra.mrb[0].mxu0 %v2500
    %v2605 = vpop.f32.mrb[0].mxu0
    %v2606 = vadd.f32 0.0, %v2605
    %v2607 = vpop.f32.mrb[0].mxu0
    %2608 = vdwg.mxu0
    %v2609 = vsel %vm360, %v2571, -inf
    %2610 = vmax.xlane.f32.xlu0 %v2609
    %v2611 = vpop.xlane.xlu0 %2610
    %v2612 = vsel %vm360, %v2576, -inf
    %2613 = vmax.xlane.f32.xlu0 %v2612
    %v2614 = vpop.xlane.xlu0 %2613
    %v2615 = vsel %vm360, %v2581, -inf
    %2616 = vmax.xlane.f32.xlu0 %v2615
    %v2617 = vpop.xlane.xlu0 %2616
    %v2618 = vsel %vm360, %v2586, -inf
    %2619 = vmax.xlane.f32.xlu0 %v2618
    %v2620 = vpop.xlane.xlu0 %2619
    %v2621 = vsel %vm360, %v2591, -inf
    %2622 = vmax.xlane.f32.xlu0 %v2621
    %v2623 = vpop.xlane.xlu0 %2622
    %v2624 = vsel %vm360, %v2596, -inf
    %2625 = vmax.xlane.f32.xlu0 %v2624
    %v2626 = vpop.xlane.xlu0 %2625
    %v2627 = vsel %vm360, %v2601, -inf
    %2628 = vmax.xlane.f32.xlu0 %v2627
    %v2629 = vpop.xlane.xlu0 %2628
    %v2630 = vsel %vm360, %v2606, -inf
    %2631 = vmax.xlane.f32.xlu0 %v2630
    %v2632 = vpop.xlane.xlu0 %2631
    %v2633 = vsub.f32 %v2571, %v2611
    %v2634 = vsub.f32 %v2576, %v2614
    %v2635 = vsub.f32 %v2581, %v2617
    %v2636 = vsub.f32 %v2586, %v2620
    %v2637 = vsub.f32 %v2591, %v2623
    %v2638 = vsub.f32 %v2596, %v2626
    %v2639 = vsub.f32 %v2601, %v2629
    %v2640 = vsub.f32 %v2606, %v2632
    %v2641 = vmul.f32 %v2633, 1.442695
    %v2642 = vpow.pop %v2641
    %v2643 = vmul.f32 %v2634, 1.442695
    %v2644 = vpow.pop %v2643
    %v2645 = vmul.f32 %v2635, 1.442695
    %v2646 = vpow.pop %v2645
    %v2647 = vmul.f32 %v2636, 1.442695
    %v2648 = vpow.pop %v2647
    %v2649 = vmul.f32 %v2637, 1.442695
    %v2650 = vpow.pop %v2649
    %v2651 = vmul.f32 %v2638, 1.442695
    %v2652 = vpow.pop %v2651
    %v2653 = vmul.f32 %v2639, 1.442695
    %v2654 = vpow.pop %v2653
    %v2655 = vmul.f32 %v2640, 1.442695
    %v2656 = vpow.pop %v2655
    %v2657 = vsel %vm360, %v2642, 0.0
    %2658 = vadd.xlane.f32.xlu0 %v2657
    %v2659 = vpop.xlane.xlu0 %2658
    %v2660 = vsel %vm360, %v2644, 0.0
    %2661 = vadd.xlane.f32.xlu0 %v2660
    %v2662 = vpop.xlane.xlu0 %2661
    %v2663 = vsel %vm360, %v2646, 0.0
    %2664 = vadd.xlane.f32.xlu0 %v2663
    %v2665 = vpop.xlane.xlu0 %2664
    %v2666 = vsel %vm360, %v2648, 0.0
    %2667 = vadd.xlane.f32.xlu0 %v2666
    %v2668 = vpop.xlane.xlu0 %2667
    %v2669 = vsel %vm360, %v2650, 0.0
    %2670 = vadd.xlane.f32.xlu0 %v2669
    %v2671 = vpop.xlane.xlu0 %2670
    %v2672 = vsel %vm360, %v2652, 0.0
    %2673 = vadd.xlane.f32.xlu0 %v2672
    %v2674 = vpop.xlane.xlu0 %2673
    %v2675 = vsel %vm360, %v2654, 0.0
    %2676 = vadd.xlane.f32.xlu0 %v2675
    %v2677 = vpop.xlane.xlu0 %2676
    %v2678 = vsel %vm360, %v2656, 0.0
    %2679 = vadd.xlane.f32.xlu0 %v2678
    %v2680 = vpop.xlane.xlu0 %2679
    %v2681 = vrcp.pop %v2659
    %v2682 = vrcp.pop %v2662
    %v2683 = vrcp.pop %v2665
    %v2684 = vrcp.pop %v2668
    %v2685 = vrcp.pop %v2671
    %v2686 = vrcp.pop %v2674
    %v2687 = vrcp.pop %v2677
    %v2688 = vrcp.pop %v2680
    %v2689 = vmul.f32 %v2642, %v2681
    %v2690 = vmul.f32 %v2644, %v2682
    %v2691 = vmul.f32 %v2646, %v2683
    %v2692 = vmul.f32 %v2648, %v2684
    %v2693 = vmul.f32 %v2650, %v2685
    %v2694 = vmul.f32 %v2652, %v2686
    %v2695 = vmul.f32 %v2654, %v2687
    %v2696 = vmul.f32 %v2656, %v2688
    %2697 = vrot.lane.b32.xlu0 %v1823, 124
    %v2698 = vpop.permute.xlu0 %2697
    %2699 = vrot.lane.b32.xlu0 %v1824, 124
    %v2700 = vpop.permute.xlu0 %2699
    %2701 = vrot.lane.b32.xlu0 %v1825, 124
    %v2702 = vpop.permute.xlu0 %2701
    %2703 = vrot.lane.b32.xlu0 %v1826, 124
    %v2704 = vpop.permute.xlu0 %2703
    %2705 = vrot.lane.b32.xlu0 %v1827, 124
    %v2706 = vpop.permute.xlu0 %2705
    %2707 = vrot.lane.b32.xlu0 %v1828, 124
    %v2708 = vpop.permute.xlu0 %2707
    %2709 = vrot.lane.b32.xlu0 %v1829, 124
    %v2710 = vpop.permute.xlu0 %2709
    %2711 = vrot.lane.b32.xlu0 %v1830, 124
    %v2712 = vpop.permute.xlu0 %2711
    %v2713 = vsel %vm374, %v2698, 0
    %v2715 = vsel %vm374, %v2700, 0
    %v2717 = vsel %vm374, %v2702, 0
    %v2719 = vsel %vm374, %v2704, 0
    %v2721 = vsel %vm374, %v2706, 0
    %v2723 = vsel %vm374, %v2708, 0
    %v2725 = vsel %vm374, %v2710, 0
    %v2727 = vsel %vm374, %v2712, 0
    %v2729 = vsel %vm378, %v1722, 0
    %2731 = vmatprep.subr.mxu0 0.0
    %2732 = vmatpush1.msra.mxu0 %v2729
    %2733 = vmatprep.subr.mxu0 0.0
    %2734 = vmatpush1.msra.mxu0 0.0
    %2735 = vmatprep.subr.mxu0 0.0
    %2736 = vmatpush1.msra.mxu0 0.0
    %2737 = vmatprep.subr.mxu0 0.0
    %2738 = vmatpush1.msra.mxu0 0.0
    %2739 = vmatprep.subr.mxu0 0.0
    %2740 = vmatpush1.msra.mxu0 0.0
    %2741 = vmatprep.subr.mxu0 0.0
    %2742 = vmatpush1.msra.mxu0 0.0
    %2743 = vmatprep.subr.mxu0 0.0
    %2744 = vmatpush1.msra.mxu0 0.0
    %2745 = vmatprep.subr.mxu0 0.0
    %2746 = vmatpush1.msra.mxu0 0.0
    %2747 = vmatprep.subr.mxu0 0.0
    %2748 = vmatpush1.msra.mxu0 0.0
    %2749 = vmatprep.subr.mxu0 0.0
    %2750 = vmatpush1.msra.mxu0 0.0
    %2751 = vmatprep.subr.mxu0 0.0
    %2752 = vmatpush1.msra.mxu0 0.0
    %2753 = vmatprep.subr.mxu0 0.0
    %2754 = vmatpush1.msra.mxu0 0.0
    %2755 = vmatprep.subr.mxu0 0.0
    %2756 = vmatpush1.msra.mxu0 0.0
    %2757 = vmatprep.subr.mxu0 0.0
    %2758 = vmatpush1.msra.mxu0 0.0
    %2759 = vmatprep.subr.mxu0 0.0
    %2760 = vmatpush1.msra.mxu0 0.0
    %2761 = vmatprep.subr.mxu0 0.0
    %2762 = vmatpush1.msra.mxu0 0.0
    %2763 = vmatprep.subr.mxu0 0.0
    %2764 = vmatpush1.msra.mxu0 0.0
    %2765 = vmatprep.subr.mxu0 0.0
    %2766 = vmatpush1.msra.mxu0 0.0
    %2767 = vmatprep.subr.mxu0 0.0
    %2768 = vmatpush1.msra.mxu0 0.0
    %2769 = vmatprep.subr.mxu0 0.0
    %2770 = vmatpush1.msra.mxu0 0.0
    %2771 = vmatprep.subr.mxu0 0.0
    %2772 = vmatpush1.msra.mxu0 0.0
    %2773 = vmatprep.subr.mxu0 0.0
    %2774 = vmatpush1.msra.mxu0 0.0
    %2775 = vmatprep.subr.mxu0 0.0
    %2776 = vmatpush1.msra.mxu0 0.0
    %2777 = vmatprep.subr.mxu0 0.0
    %2778 = vmatpush1.msra.mxu0 0.0
    %2779 = vmatprep.subr.mxu0 0.0
    %2780 = vmatpush1.msra.mxu0 0.0
    %2781 = vmatprep.subr.mxu0 0.0
    %2782 = vmatpush1.msra.mxu0 0.0
    %2783 = vmatprep.subr.mxu0 0.0
    %2784 = vmatpush1.msra.mxu0 0.0
    %2785 = vmatprep.subr.mxu0 0.0
    %2786 = vmatpush1.msra.mxu0 0.0
    %2787 = vmatprep.subr.mxu0 0.0
    %2788 = vmatpush1.msra.mxu0 0.0
    %2789 = vmatprep.subr.mxu0 0.0
    %2790 = vmatpush1.msra.mxu0 0.0
    %2791 = vmatprep.subr.mxu0 0.0
    %2792 = vmatpush1.msra.mxu0 0.0
    %2793 = vmatprep.subr.mxu0 0.0
    %2794 = vmatpush1.msra.mxu0 0.0
    %2795 = vmatprep.mubr.f32.mxu0 0.0
    %2796 = vmatmul.mubr.f32.gmra.mrb[0].mxu0 %v2713
    %v2797 = vpop.f32.mrb[0].mxu0
    %v2798 = vadd.f32 0.0, %v2797
    %v2799 = vpop.f32.mrb[0].mxu0
    %2800 = vmatprep.mubr.f32.mxu0 0.0
    %2801 = vmatmul.mubr.f32.gmra.mrb[0].mxu0 %v2715
    %v2802 = vpop.f32.mrb[0].mxu0
    %v2803 = vadd.f32 0.0, %v2802
    %v2804 = vpop.f32.mrb[0].mxu0
    %2805 = vmatprep.mubr.f32.mxu0 0.0
    %2806 = vmatmul.mubr.f32.gmra.mrb[0].mxu0 %v2717
    %v2807 = vpop.f32.mrb[0].mxu0
    %v2808 = vadd.f32 0.0, %v2807
    %v2809 = vpop.f32.mrb[0].mxu0
    %2810 = vmatprep.mubr.f32.mxu0 0.0
    %2811 = vmatmul.mubr.f32.gmra.mrb[0].mxu0 %v2719
    %v2812 = vpop.f32.mrb[0].mxu0
    %v2813 = vadd.f32 0.0, %v2812
    %v2814 = vpop.f32.mrb[0].mxu0
    %2815 = vmatprep.mubr.f32.mxu0 0.0
    %2816 = vmatmul.mubr.f32.gmra.mrb[0].mxu0 %v2721
    %v2817 = vpop.f32.mrb[0].mxu0
    %v2818 = vadd.f32 0.0, %v2817
    %v2819 = vpop.f32.mrb[0].mxu0
    %2820 = vmatprep.mubr.f32.mxu0 0.0
    %2821 = vmatmul.mubr.f32.gmra.mrb[0].mxu0 %v2723
    %v2822 = vpop.f32.mrb[0].mxu0
    %v2823 = vadd.f32 0.0, %v2822
    %v2824 = vpop.f32.mrb[0].mxu0
    %2825 = vmatprep.mubr.f32.mxu0 0.0
    %2826 = vmatmul.mubr.f32.gmra.mrb[0].mxu0 %v2725
    %v2827 = vpop.f32.mrb[0].mxu0
    %v2828 = vadd.f32 0.0, %v2827
    %v2829 = vpop.f32.mrb[0].mxu0
    %2830 = vmatprep.mubr.f32.mxu0 0.0
    %2831 = vmatmul.mubr.f32.gmra.mrb[0].mxu0 %v2727
    %v2832 = vpop.f32.mrb[0].mxu0
    %v2833 = vadd.f32 0.0, %v2832
    %v2834 = vpop.f32.mrb[0].mxu0
    %2835 = vdwg.mxu0
    %v2836 = vsel %vm360, %v2798, -inf
    %2837 = vmax.xlane.f32.xlu0 %v2836
    %v2838 = vpop.xlane.xlu0 %2837
    %v2839 = vsel %vm360, %v2803, -inf
    %2840 = vmax.xlane.f32.xlu0 %v2839
    %v2841 = vpop.xlane.xlu0 %2840
    %v2842 = vsel %vm360, %v2808, -inf
    %2843 = vmax.xlane.f32.xlu0 %v2842
    %v2844 = vpop.xlane.xlu0 %2843
    %v2845 = vsel %vm360, %v2813, -inf
    %2846 = vmax.xlane.f32.xlu0 %v2845
    %v2847 = vpop.xlane.xlu0 %2846
    %v2848 = vsel %vm360, %v2818, -inf
    %2849 = vmax.xlane.f32.xlu0 %v2848
    %v2850 = vpop.xlane.xlu0 %2849
    %v2851 = vsel %vm360, %v2823, -inf
    %2852 = vmax.xlane.f32.xlu0 %v2851
    %v2853 = vpop.xlane.xlu0 %2852
    %v2854 = vsel %vm360, %v2828, -inf
    %2855 = vmax.xlane.f32.xlu0 %v2854
    %v2856 = vpop.xlane.xlu0 %2855
    %v2857 = vsel %vm360, %v2833, -inf
    %2858 = vmax.xlane.f32.xlu0 %v2857
    %v2859 = vpop.xlane.xlu0 %2858
    %v2860 = vsub.f32 %v2798, %v2838
    %v2861 = vsub.f32 %v2803, %v2841
    %v2862 = vsub.f32 %v2808, %v2844
    %v2863 = vsub.f32 %v2813, %v2847
    %v2864 = vsub.f32 %v2818, %v2850
    %v2865 = vsub.f32 %v2823, %v2853
    %v2866 = vsub.f32 %v2828, %v2856
    %v2867 = vsub.f32 %v2833, %v2859
    %v2868 = vmul.f32 %v2860, 1.442695
    %v2869 = vpow.pop %v2868
    %v2870 = vmul.f32 %v2861, 1.442695
    %v2871 = vpow.pop %v2870
    %v2872 = vmul.f32 %v2862, 1.442695
    %v2873 = vpow.pop %v2872
    %v2874 = vmul.f32 %v2863, 1.442695
    %v2875 = vpow.pop %v2874
    %v2876 = vmul.f32 %v2864, 1.442695
    %v2877 = vpow.pop %v2876
    %v2878 = vmul.f32 %v2865, 1.442695
    %v2879 = vpow.pop %v2878
    %v2880 = vmul.f32 %v2866, 1.442695
    %v2881 = vpow.pop %v2880
    %v2882 = vmul.f32 %v2867, 1.442695
    %v2883 = vpow.pop %v2882
    %v2884 = vsel %vm360, %v2869, 0.0
    %2885 = vadd.xlane.f32.xlu0 %v2884
    %v2886 = vpop.xlane.xlu0 %2885
    %v2887 = vsel %vm360, %v2871, 0.0
    %2888 = vadd.xlane.f32.xlu0 %v2887
    %v2889 = vpop.xlane.xlu0 %2888
    %v2890 = vsel %vm360, %v2873, 0.0
    %2891 = vadd.xlane.f32.xlu0 %v2890
    %v2892 = vpop.xlane.xlu0 %2891
    %v2893 = vsel %vm360, %v2875, 0.0
    %2894 = vadd.xlane.f32.xlu0 %v2893
    %v2895 = vpop.xlane.xlu0 %2894
    %v2896 = vsel %vm360, %v2877, 0.0
    %2897 = vadd.xlane.f32.xlu0 %v2896
    %v2898 = vpop.xlane.xlu0 %2897
    %v2899 = vsel %vm360, %v2879, 0.0
    %2900 = vadd.xlane.f32.xlu0 %v2899
    %v2901 = vpop.xlane.xlu0 %2900
    %v2902 = vsel %vm360, %v2881, 0.0
    %2903 = vadd.xlane.f32.xlu0 %v2902
    %v2904 = vpop.xlane.xlu0 %2903
    %v2905 = vsel %vm360, %v2883, 0.0
    %2906 = vadd.xlane.f32.xlu0 %v2905
    %v2907 = vpop.xlane.xlu0 %2906
    %v2908 = vrcp.pop %v2886
    %v2909 = vrcp.pop %v2889
    %v2910 = vrcp.pop %v2892
    %v2911 = vrcp.pop %v2895
    %v2912 = vrcp.pop %v2898
    %v2913 = vrcp.pop %v2901
    %v2914 = vrcp.pop %v2904
    %v2915 = vrcp.pop %v2907
    %v2916 = vmul.f32 %v2869, %v2908
    %v2917 = vmul.f32 %v2871, %v2909
    %v2918 = vmul.f32 %v2873, %v2910
    %v2919 = vmul.f32 %v2875, %v2911
    %v2920 = vmul.f32 %v2877, %v2912
    %v2921 = vmul.f32 %v2879, %v2913
    %v2922 = vmul.f32 %v2881, %v2914
    %v2923 = vmul.f32 %v2883, %v2915
    %v2925 = vsel %vm360, %v1792, 0
    %v2928 = vsel %vm360, %v2916, 0
    %v2931 = vsel %vm360, %v2917, 0
    %v2934 = vsel %vm360, %v2918, 0
    %v2937 = vsel %vm360, %v2919, 0
    %v2940 = vsel %vm360, %v2920, 0
    %v2943 = vsel %vm360, %v2921, 0
    %v2946 = vsel %vm360, %v2922, 0
    %v2949 = vsel %vm360, %v2923, 0
    %2951 = vmatprep.subr.mxu0 0.0
    %2952 = vmatpush1.xpose.msra.mxu0 %v2928
    %2953 = vmatprep.subr.mxu0 0.0
    %2954 = vmatpush1.xpose.msra.mxu0 %v2931
    %2955 = vmatprep.subr.mxu0 0.0
    %2956 = vmatpush1.xpose.msra.mxu0 %v2934
    %2957 = vmatprep.subr.mxu0 0.0
    %2958 = vmatpush1.xpose.msra.mxu0 %v2937
    %2959 = vmatprep.subr.mxu0 0.0
    %2960 = vmatpush1.xpose.msra.mxu0 %v2940
    %2961 = vmatprep.subr.mxu0 0.0
    %2962 = vmatpush1.xpose.msra.mxu0 %v2943
    %2963 = vmatprep.subr.mxu0 0.0
    %2964 = vmatpush1.xpose.msra.mxu0 %v2946
    %2965 = vmatprep.subr.mxu0 0.0
    %2966 = vmatpush1.xpose.msra.mxu0 %v2949
    %2967 = vmatprep.subr.mxu0 0.0
    %2968 = vmatpush1.xpose.msra.mxu0 0.0
    %2969 = vmatprep.subr.mxu0 0.0
    %2970 = vmatpush1.xpose.msra.mxu0 0.0
    %2971 = vmatprep.subr.mxu0 0.0
    %2972 = vmatpush1.xpose.msra.mxu0 0.0
    %2973 = vmatprep.subr.mxu0 0.0
    %2974 = vmatpush1.xpose.msra.mxu0 0.0
    %2975 = vmatprep.subr.mxu0 0.0
    %2976 = vmatpush1.xpose.msra.mxu0 0.0
    %2977 = vmatprep.subr.mxu0 0.0
    %2978 = vmatpush1.xpose.msra.mxu0 0.0
    %2979 = vmatprep.subr.mxu0 0.0
    %2980 = vmatpush1.xpose.msra.mxu0 0.0
    %2981 = vmatprep.subr.mxu0 0.0
    %2982 = vmatpush1.xpose.msra.mxu0 0.0
    %2983 = vmatprep.subr.mxu0 0.0
    %2984 = vmatpush1.xpose.msra.mxu0 0.0
    %2985 = vmatprep.subr.mxu0 0.0
    %2986 = vmatpush1.xpose.msra.mxu0 0.0
    %2987 = vmatprep.subr.mxu0 0.0
    %2988 = vmatpush1.xpose.msra.mxu0 0.0
    %2989 = vmatprep.subr.mxu0 0.0
    %2990 = vmatpush1.xpose.msra.mxu0 0.0
    %2991 = vmatprep.subr.mxu0 0.0
    %2992 = vmatpush1.xpose.msra.mxu0 0.0
    %2993 = vmatprep.subr.mxu0 0.0
    %2994 = vmatpush1.xpose.msra.mxu0 0.0
    %2995 = vmatprep.subr.mxu0 0.0
    %2996 = vmatpush1.xpose.msra.mxu0 0.0
    %2997 = vmatprep.subr.mxu0 0.0
    %2998 = vmatpush1.xpose.msra.mxu0 0.0
    %2999 = vmatprep.subr.mxu0 0.0
    %3000 = vmatpush1.xpose.msra.mxu0 0.0
    %3001 = vmatprep.subr.mxu0 0.0
    %3002 = vmatpush1.xpose.msra.mxu0 0.0
    %3003 = vmatprep.subr.mxu0 0.0
    %3004 = vmatpush1.xpose.msra.mxu0 0.0
    %3005 = vmatprep.subr.mxu0 0.0
    %3006 = vmatpush1.xpose.msra.mxu0 0.0
    %3007 = vmatprep.subr.mxu0 0.0
    %3008 = vmatpush1.xpose.msra.mxu0 0.0
    %3009 = vmatprep.subr.mxu0 0.0
    %3010 = vmatpush1.xpose.msra.mxu0 0.0
    %3011 = vmatprep.subr.mxu0 0.0
    %3012 = vmatpush1.xpose.msra.mxu0 0.0
    %3013 = vmatprep.subr.mxu0 0.0
    %3014 = vmatpush1.xpose.msra.mxu0 0.0
    %3015 = vmatprep.mubr.f32.mxu0 0.0
    %3016 = vmatmul.mubr.f32.gmra.mrb[0].mxu0 %v2925
    %v3017 = vpop.f32.mrb[0].mxu0
    %v3018 = vadd.f32 0.0, %v3017
    %v3019 = vpop.f32.mrb[0].mxu0
    %3020 = vdwg.mxu0
    %3021 = vrot.lane.b32.xlu0 %v1792, 64
    %v3022 = vpop.permute.xlu0 %3021
    %v3023 = vsel %vm360, %v3022, 0
    %v3026 = vsel %vm360, %v2689, 0
    %v3029 = vsel %vm360, %v2690, 0
    %v3032 = vsel %vm360, %v2691, 0
    %v3035 = vsel %vm360, %v2692, 0
    %v3038 = vsel %vm360, %v2693, 0
    %v3041 = vsel %vm360, %v2694, 0
    %v3044 = vsel %vm360, %v2695, 0
    %v3047 = vsel %vm360, %v2696, 0
    %3049 = vmatprep.subr.mxu0 0.0
    %3050 = vmatpush1.xpose.msra.mxu0 %v3026
    %3051 = vmatprep.subr.mxu0 0.0
    %3052 = vmatpush1.xpose.msra.mxu0 %v3029
    %3053 = vmatprep.subr.mxu0 0.0
    %3054 = vmatpush1.xpose.msra.mxu0 %v3032
    %3055 = vmatprep.subr.mxu0 0.0
    %3056 = vmatpush1.xpose.msra.mxu0 %v3035
    %3057 = vmatprep.subr.mxu0 0.0
    %3058 = vmatpush1.xpose.msra.mxu0 %v3038
    %3059 = vmatprep.subr.mxu0 0.0
    %3060 = vmatpush1.xpose.msra.mxu0 %v3041
    %3061 = vmatprep.subr.mxu0 0.0
    %3062 = vmatpush1.xpose.msra.mxu0 %v3044
    %3063 = vmatprep.subr.mxu0 0.0
    %3064 = vmatpush1.xpose.msra.mxu0 %v3047
    %3065 = vmatprep.subr.mxu0 0.0
    %3066 = vmatpush1.xpose.msra.mxu0 0.0
    %3067 = vmatprep.subr.mxu0 0.0
    %3068 = vmatpush1.xpose.msra.mxu0 0.0
    %3069 = vmatprep.subr.mxu0 0.0
    %3070 = vmatpush1.xpose.msra.mxu0 0.0
    %3071 = vmatprep.subr.mxu0 0.0
    %3072 = vmatpush1.xpose.msra.mxu0 0.0
    %3073 = vmatprep.subr.mxu0 0.0
    %3074 = vmatpush1.xpose.msra.mxu0 0.0
    %3075 = vmatprep.subr.mxu0 0.0
    %3076 = vmatpush1.xpose.msra.mxu0 0.0
    %3077 = vmatprep.subr.mxu0 0.0
    %3078 = vmatpush1.xpose.msra.mxu0 0.0
    %3079 = vmatprep.subr.mxu0 0.0
    %3080 = vmatpush1.xpose.msra.mxu0 0.0
    %3081 = vmatprep.subr.mxu0 0.0
    %3082 = vmatpush1.xpose.msra.mxu0 0.0
    %3083 = vmatprep.subr.mxu0 0.0
    %3084 = vmatpush1.xpose.msra.mxu0 0.0
    %3085 = vmatprep.subr.mxu0 0.0
    %3086 = vmatpush1.xpose.msra.mxu0 0.0
    %3087 = vmatprep.subr.mxu0 0.0
    %3088 = vmatpush1.xpose.msra.mxu0 0.0
    %3089 = vmatprep.subr.mxu0 0.0
    %3090 = vmatpush1.xpose.msra.mxu0 0.0
    %3091 = vmatprep.subr.mxu0 0.0
    %3092 = vmatpush1.xpose.msra.mxu0 0.0
    %3093 = vmatprep.subr.mxu0 0.0
    %3094 = vmatpush1.xpose.msra.mxu0 0.0
    %3095 = vmatprep.subr.mxu0 0.0
    %3096 = vmatpush1.xpose.msra.mxu0 0.0
    %3097 = vmatprep.subr.mxu0 0.0
    %3098 = vmatpush1.xpose.msra.mxu0 0.0
    %3099 = vmatprep.subr.mxu0 0.0
    %3100 = vmatpush1.xpose.msra.mxu0 0.0
    %3101 = vmatprep.subr.mxu0 0.0
    %3102 = vmatpush1.xpose.msra.mxu0 0.0
    %3103 = vmatprep.subr.mxu0 0.0
    %3104 = vmatpush1.xpose.msra.mxu0 0.0
    %3105 = vmatprep.subr.mxu0 0.0
    %3106 = vmatpush1.xpose.msra.mxu0 0.0
    %3107 = vmatprep.subr.mxu0 0.0
    %3108 = vmatpush1.xpose.msra.mxu0 0.0
    %3109 = vmatprep.subr.mxu0 0.0
    %3110 = vmatpush1.xpose.msra.mxu0 0.0
    %3111 = vmatprep.subr.mxu0 0.0
    %3112 = vmatpush1.xpose.msra.mxu0 0.0
    %3113 = vmatprep.mubr.f32.mxu0 0.0
    %3114 = vmatmul.mubr.f32.gmra.mrb[0].mxu0 %v3023
    %v3115 = vpop.f32.mrb[0].mxu0
    %v3116 = vadd.f32 %v3018, %v3115
    %v3117 = vpop.f32.mrb[0].mxu0
    %3118 = vdwg.mxu0
    %v3120 = vrot.slane %v3116, 4
    %v3122 = vsel %vm378, %v2464, %v3120
    %v3123 = vld [vmem:[#allocation14] sm:$0xff]
    %v3124 = vld [vmem:[#allocation14 + $0x8] sm:$0xff]
    %v3125 = vld [vmem:[#allocation14 + $0x10] sm:$0xff]
    %v3126 = vld [vmem:[#allocation14 + $0x18] sm:$0xff]
    %v3127 = vld [vmem:[#allocation14 + $0x20] sm:$0xff]
    %v3128 = vld [vmem:[#allocation14 + $0x28] sm:$0xff]
    %v3129 = vld [vmem:[#allocation14 + $0x30] sm:$0xff]
    %v3130 = vld [vmem:[#allocation14 + $0x38] sm:$0xff]
    %v3132 = vsel %vm360, %v3122, 0
    %3134 = vmatprep.subr.mxu0 0.0
    %3135 = vmatpush1.msra.mxu0 %v3123
    %3136 = vmatprep.subr.mxu0 0.0
    %3137 = vmatpush1.msra.mxu0 %v3124
    %3138 = vmatprep.subr.mxu0 0.0
    %3139 = vmatpush1.msra.mxu0 %v3125
    %3140 = vmatprep.subr.mxu0 0.0
    %3141 = vmatpush1.msra.mxu0 %v3126
    %3142 = vmatprep.subr.mxu0 0.0
    %3143 = vmatpush1.msra.mxu0 %v3127
    %3144 = vmatprep.subr.mxu0 0.0
    %3145 = vmatpush1.msra.mxu0 %v3128
    %3146 = vmatprep.subr.mxu0 0.0
    %3147 = vmatpush1.msra.mxu0 %v3129
    %3148 = vmatprep.subr.mxu0 0.0
    %3149 = vmatpush1.msra.mxu0 %v3130
    %3150 = vmatprep.subr.mxu0 0.0
    %3151 = vmatpush1.msra.mxu0 0.0
    %3152 = vmatprep.subr.mxu0 0.0
    %3153 = vmatpush1.msra.mxu0 0.0
    %3154 = vmatprep.subr.mxu0 0.0
    %3155 = vmatpush1.msra.mxu0 0.0
    %3156 = vmatprep.subr.mxu0 0.0
    %3157 = vmatpush1.msra.mxu0 0.0
    %3158 = vmatprep.subr.mxu0 0.0
    %3159 = vmatpush1.msra.mxu0 0.0
    %3160 = vmatprep.subr.mxu0 0.0
    %3161 = vmatpush1.msra.mxu0 0.0
    %3162 = vmatprep.subr.mxu0 0.0
    %3163 = vmatpush1.msra.mxu0 0.0
    %3164 = vmatprep.subr.mxu0 0.0
    %3165 = vmatpush1.msra.mxu0 0.0
    %3166 = vmatprep.subr.mxu0 0.0
    %3167 = vmatpush1.msra.mxu0 0.0
    %3168 = vmatprep.subr.mxu0 0.0
    %3169 = vmatpush1.msra.mxu0 0.0
    %3170 = vmatprep.subr.mxu0 0.0
    %3171 = vmatpush1.msra.mxu0 0.0
    %3172 = vmatprep.subr.mxu0 0.0
    %3173 = vmatpush1.msra.mxu0 0.0
    %3174 = vmatprep.subr.mxu0 0.0
    %3175 = vmatpush1.msra.mxu0 0.0
    %3176 = vmatprep.subr.mxu0 0.0
    %3177 = vmatpush1.msra.mxu0 0.0
    %3178 = vmatprep.subr.mxu0 0.0
    %3179 = vmatpush1.msra.mxu0 0.0
    %3180 = vmatprep.subr.mxu0 0.0
    %3181 = vmatpush1.msra.mxu0 0.0
    %3182 = vmatprep.subr.mxu0 0.0
    %3183 = vmatpush1.msra.mxu0 0.0
    %3184 = vmatprep.subr.mxu0 0.0
    %3185 = vmatpush1.msra.mxu0 0.0
    %3186 = vmatprep.subr.mxu0 0.0
    %3187 = vmatpush1.msra.mxu0 0.0
    %3188 = vmatprep.subr.mxu0 0.0
    %3189 = vmatpush1.msra.mxu0 0.0
    %3190 = vmatprep.subr.mxu0 0.0
    %3191 = vmatpush1.msra.mxu0 0.0
    %3192 = vmatprep.subr.mxu0 0.0
    %3193 = vmatpush1.msra.mxu0 0.0
    %3194 = vmatprep.subr.mxu0 0.0
    %3195 = vmatpush1.msra.mxu0 0.0
    %3196 = vmatprep.subr.mxu0 0.0
    %3197 = vmatpush1.msra.mxu0 0.0
    %3198 = vmatprep.mubr.f32.mxu0 0.0
    %3199 = vmatmul.mubr.f32.gmra.mrb[0].mxu0 %v3132
    %v3200 = vpop.f32.mrb[0].mxu0
    %v3201 = vadd.f32 0.0, %v3200
    %v3202 = vpop.f32.mrb[0].mxu0
    %3203 = vdwg.mxu0
    %v3204 = vmul.f32 %v3122, %v3122
    %v3206 = vsel %vm360, %v3204, 0
    %3208 = vmatprep.subr.mxu0 0.0
    %3209 = vmatpush1.msra.mxu0 %v3123
    %3210 = vmatprep.subr.mxu0 0.0
    %3211 = vmatpush1.msra.mxu0 %v3124
    %3212 = vmatprep.subr.mxu0 0.0
    %3213 = vmatpush1.msra.mxu0 %v3125
    %3214 = vmatprep.subr.mxu0 0.0
    %3215 = vmatpush1.msra.mxu0 %v3126
    %3216 = vmatprep.subr.mxu0 0.0
    %3217 = vmatpush1.msra.mxu0 %v3127
    %3218 = vmatprep.subr.mxu0 0.0
    %3219 = vmatpush1.msra.mxu0 %v3128
    %3220 = vmatprep.subr.mxu0 0.0
    %3221 = vmatpush1.msra.mxu0 %v3129
    %3222 = vmatprep.subr.mxu0 0.0
    %3223 = vmatpush1.msra.mxu0 %v3130
    %3224 = vmatprep.subr.mxu0 0.0
    %3225 = vmatpush1.msra.mxu0 0.0
    %3226 = vmatprep.subr.mxu0 0.0
    %3227 = vmatpush1.msra.mxu0 0.0
    %3228 = vmatprep.subr.mxu0 0.0
    %3229 = vmatpush1.msra.mxu0 0.0
    %3230 = vmatprep.subr.mxu0 0.0
    %3231 = vmatpush1.msra.mxu0 0.0
    %3232 = vmatprep.subr.mxu0 0.0
    %3233 = vmatpush1.msra.mxu0 0.0
    %3234 = vmatprep.subr.mxu0 0.0
    %3235 = vmatpush1.msra.mxu0 0.0
    %3236 = vmatprep.subr.mxu0 0.0
    %3237 = vmatpush1.msra.mxu0 0.0
    %3238 = vmatprep.subr.mxu0 0.0
    %3239 = vmatpush1.msra.mxu0 0.0
    %3240 = vmatprep.subr.mxu0 0.0
    %3241 = vmatpush1.msra.mxu0 0.0
    %3242 = vmatprep.subr.mxu0 0.0
    %3243 = vmatpush1.msra.mxu0 0.0
    %3244 = vmatprep.subr.mxu0 0.0
    %3245 = vmatpush1.msra.mxu0 0.0
    %3246 = vmatprep.subr.mxu0 0.0
    %3247 = vmatpush1.msra.mxu0 0.0
    %3248 = vmatprep.subr.mxu0 0.0
    %3249 = vmatpush1.msra.mxu0 0.0
    %3250 = vmatprep.subr.mxu0 0.0
    %3251 = vmatpush1.msra.mxu0 0.0
    %3252 = vmatprep.subr.mxu0 0.0
    %3253 = vmatpush1.msra.mxu0 0.0
    %3254 = vmatprep.subr.mxu0 0.0
    %3255 = vmatpush1.msra.mxu0 0.0
    %3256 = vmatprep.subr.mxu0 0.0
    %3257 = vmatpush1.msra.mxu0 0.0
    %3258 = vmatprep.subr.mxu0 0.0
    %3259 = vmatpush1.msra.mxu0 0.0
    %3260 = vmatprep.subr.mxu0 0.0
    %3261 = vmatpush1.msra.mxu0 0.0
    %3262 = vmatprep.subr.mxu0 0.0
    %3263 = vmatpush1.msra.mxu0 0.0
    %3264 = vmatprep.subr.mxu0 0.0
    %3265 = vmatpush1.msra.mxu0 0.0
    %3266 = vmatprep.subr.mxu0 0.0
    %3267 = vmatpush1.msra.mxu0 0.0
    %3268 = vmatprep.subr.mxu0 0.0
    %3269 = vmatpush1.msra.mxu0 0.0
    %3270 = vmatprep.subr.mxu0 0.0
    %3271 = vmatpush1.msra.mxu0 0.0
    %3272 = vmatprep.mubr.f32.mxu0 0.0
    %3273 = vmatmul.mubr.f32.gmra.mrb[0].mxu0 %v3206
    %v3274 = vpop.f32.mrb[0].mxu0
    %v3275 = vadd.f32 0.0, %v3274
    %v3276 = vpop.f32.mrb[0].mxu0
    %3277 = vdwg.mxu0
    %v3278 = vmul.f32 %v3201, %v3201
    %v3279 = vsub.f32 %v3275, %v3278
    %v3280 = vmax.f32 %v3279, 0.0
    %v3281 = vsub.f32 %v3122, %v3201
    %v3282 = vadd.f32 %v3280, 1e-05
    %v3283 = vrsqrt.pop %v3282
    %v3284 = vmul.f32 %v3281, %v3283
    %v3285 = vld [vmem:[%s49] sm:$0x1]
    %v3287 = vlaneseq
    %v3288 = vshrl.u32 %v3287, 7
    %v3289 = vsub.s32 0, %v3288
    %v3290 = vrot.slane %v3285, %v3289
    %v3292 = vmul.f32 %v3284, %v3290
    %v3293 = vld [vmem:[%s51] sm:$0x1]
    %v3295 = vlaneseq
    %v3296 = vshrl.u32 %v3295, 7
    %v3297 = vsub.s32 0, %v3296
    %v3298 = vrot.slane %v3293, %v3297
    %v3300 = vadd.f32 %v3292, %v3298
    %v3301 = vld [vmem:[%s55] sm:$0xff]
    %v3302 = vld [vmem:[%s55 + $0x8] sm:$0xff]
    %v3303 = vld [vmem:[%s55 + $0x10] sm:$0xff]
    %v3304 = vld [vmem:[%s55 + $0x18] sm:$0xff]
    %v3305 = vld [vmem:[%s55 + $0x20] sm:$0xff]
    %v3306 = vld [vmem:[%s55 + $0x28] sm:$0xff]
    %v3307 = vld [vmem:[%s55 + $0x30] sm:$0xff]
    %v3308 = vld [vmem:[%s55 + $0x38] sm:$0xff]
    %v3309 = vld [vmem:[%s55 + $0x40] sm:$0xff]
    %v3310 = vld [vmem:[%s55 + $0x48] sm:$0xff]
    %v3311 = vld [vmem:[%s55 + $0x50] sm:$0xff]
    %v3312 = vld [vmem:[%s55 + $0x58] sm:$0xff]
    %v3313 = vld [vmem:[%s55 + $0x60] sm:$0xff]
    %v3314 = vld [vmem:[%s55 + $0x68] sm:$0xff]
    %v3315 = vld [vmem:[%s55 + $0x70] sm:$0xff]
    %v3316 = vld [vmem:[%s55 + $0x78] sm:$0xff]
    %v3318 = vsel %vm360, %v3300, 0
    %3320 = vmatprep.subr.mxu0 %v3302
    %3321 = vmatpush1.msra.mxu0 %v3301
    %3322 = vmatprep.subr.mxu0 %v3304
    %3323 = vmatpush1.msra.mxu0 %v3303
    %3324 = vmatprep.subr.mxu0 %v3306
    %3325 = vmatpush1.msra.mxu0 %v3305
    %3326 = vmatprep.subr.mxu0 %v3308
    %3327 = vmatpush1.msra.mxu0 %v3307
    %3328 = vmatprep.subr.mxu0 %v3310
    %3329 = vmatpush1.msra.mxu0 %v3309
    %3330 = vmatprep.subr.mxu0 %v3312
    %3331 = vmatpush1.msra.mxu0 %v3311
    %3332 = vmatprep.subr.mxu0 %v3314
    %3333 = vmatpush1.msra.mxu0 %v3313
    %3334 = vmatprep.subr.mxu0 %v3316
    %3335 = vmatpush1.msra.mxu0 %v3315
    %3336 = vmatprep.subr.mxu0 0.0
    %3337 = vmatpush1.msra.mxu0 0.0
    %3338 = vmatprep.subr.mxu0 0.0
    %3339 = vmatpush1.msra.mxu0 0.0
    %3340 = vmatprep.subr.mxu0 0.0
    %3341 = vmatpush1.msra.mxu0 0.0
    %3342 = vmatprep.subr.mxu0 0.0
    %3343 = vmatpush1.msra.mxu0 0.0
    %3344 = vmatprep.subr.mxu0 0.0
    %3345 = vmatpush1.msra.mxu0 0.0
    %3346 = vmatprep.subr.mxu0 0.0
    %3347 = vmatpush1.msra.mxu0 0.0
    %3348 = vmatprep.subr.mxu0 0.0
    %3349 = vmatpush1.msra.mxu0 0.0
    %3350 = vmatprep.subr.mxu0 0.0
    %3351 = vmatpush1.msra.mxu0 0.0
    %3352 = vmatprep.subr.mxu0 0.0
    %3353 = vmatpush1.msra.mxu0 0.0
    %3354 = vmatprep.subr.mxu0 0.0
    %3355 = vmatpush1.msra.mxu0 0.0
    %3356 = vmatprep.subr.mxu0 0.0
    %3357 = vmatpush1.msra.mxu0 0.0
    %3358 = vmatprep.subr.mxu0 0.0
    %3359 = vmatpush1.msra.mxu0 0.0
    %3360 = vmatprep.subr.mxu0 0.0
    %3361 = vmatpush1.msra.mxu0 0.0
    %3362 = vmatprep.subr.mxu0 0.0
    %3363 = vmatpush1.msra.mxu0 0.0
    %3364 = vmatprep.subr.mxu0 0.0
    %3365 = vmatpush1.msra.mxu0 0.0
    %3366 = vmatprep.subr.mxu0 0.0
    %3367 = vmatpush1.msra.mxu0 0.0
    %3368 = vmatprep.subr.mxu0 0.0
    %3369 = vmatpush1.msra.mxu0 0.0
    %3370 = vmatprep.subr.mxu0 0.0
    %3371 = vmatpush1.msra.mxu0 0.0
    %3372 = vmatprep.subr.mxu0 0.0
    %3373 = vmatpush1.msra.mxu0 0.0
    %3374 = vmatprep.subr.mxu0 0.0
    %3375 = vmatpush1.msra.mxu0 0.0
    %3376 = vmatprep.subr.mxu0 0.0
    %3377 = vmatpush1.msra.mxu0 0.0
    %3378 = vmatprep.subr.mxu0 0.0
    %3379 = vmatpush1.msra.mxu0 0.0
    %3380 = vmatprep.subr.mxu0 0.0
    %3381 = vmatpush1.msra.mxu0 0.0
    %3382 = vmatprep.subr.mxu0 0.0
    %3383 = vmatpush1.msra.mxu0 0.0
    %3384 = vmatprep.mubr.f32.mxu0 0.0
    %3385 = vmatmul.mubr.f32.gmra.mrb[0].mxu0 %v3318
    %v3386 = vpop.f32.mrb[0].mxu0
    %v3387 = vadd.f32 0.0, %v3386
    %v3388 = vpop.f32.mrb[0].mxu0
    %v3389 = vadd.f32 0.0, %v3388
    %3390 = vdwg.mxu0
    %3391 = vst [vmem:[#allocation3] sm:$0xff] 0.0
    %3392 = vst [vmem:[#allocation3 + $0x8] sm:$0xff] 0.0
    %vm3393 = vcmask 277504
    %3394 = vst.msk [vmem:[#allocation3 + $0x10] sm:$0xff] %vm3393, 0.0
    %3397 = vrot.lane.b32.xlu0 %v3387, 17
    %v3398 = vpop.permute.xlu0 %3397
    %3399 = vrot.lane.b32.xlu0 %v3389, 17
    %v3400 = vpop.permute.xlu0 %3399
    %vm3401 = vcmask 138240
    %v3402 = vsel %vm3401, %v3398, %v3400
    %vm3406 = vcmask 1047688
    %3407 = vst.msk [vmem:[#allocation3] sm:$0xff] %vm3406, %v3398
    %3408 = vst [vmem:[#allocation3 + $0x8] sm:$0xff] %v3402
    %3409 = vst.msk [vmem:[#allocation3 + $0x10] sm:$0xff] %vm3401, %v3400
    %v3410 = vld [vmem:[#allocation15] sm:$0xf]
    %v3412 = vrot.slane %v3410, 4
    %v3414 = vsel %vm378, %v3410, %v3412
    %v3415 = vld [vmem:[%s71] sm:$0x77]
    %v3416 = vld [vmem:[#allocation3] sm:$0xff]
    %v3417 = vld [vmem:[#allocation3 + $0x8] sm:$0xff]
    %v3419 = vlaneseq
    %v3420 = vshrl.u32 %v3419, 7
    %v3421 = vsub.s32 0, %v3420
    %v3422 = vrot.slane %v3415, %v3421
    %v3423 = vlaneseq
    %v3424 = vshrl.u32 %v3423, 7
    %v3425 = vsub.s32 4, %v3424
    %v3426 = vrot.slane %v3415, %v3425
    %v3429 = vlaneseq
    %v3430 = vshrl.u32 %v3429, 7
    %v3431 = vsub.s32 0, %v3430
    %v3432 = vrot.slane %v3422, %v3431
    %v3433 = vlaneseq
    %v3434 = vshrl.u32 %v3433, 7
    %v3435 = vsub.s32 0, %v3434
    %v3436 = vrot.slane %v3426, %v3435
    %v3437 = vmul.f32 %v3416, %v3432
    %v3438 = vmul.f32 %v3417, %v3436
    %3440 = vset.pattern.permute.xlu0 0
    %3441 = vperm.xlu0 %3440, %v3414
    %v3442 = vpop.permute.xlu0 %3441
    %v3444 = vmul.f32 %v3442, %v3437
    %v3445 = vmul.f32 %v3442, %v3438
    %v3446 = vadd.f32 %v3444, 0.0
    %v3447 = vadd.f32 %v3445, 0.0
    %v3448 = vld [vmem:[#allocation3] sm:$0xff]
    %v3449 = vld [vmem:[#allocation3 + $0x8] sm:$0xff]
    %v3450 = vld [vmem:[#allocation3 + $0x10] sm:$0xff]
    %3451 = vset.pattern.permute.xlu0 1
    %3452 = vperm.xlu0 %3451, %v3414
    %v3453 = vpop.permute.xlu0 %3452
    %v3455 = vmul.f32 %v3453, %v3448
    %v3456 = vmul.f32 %v3453, %v3449
    %v3457 = vmul.f32 %v3453, %v3450
    %3461 = vrot.lane.b32.xlu0 %v3455, 127
    %v3462 = vpop.permute.xlu0 %3461
    %3463 = vrot.lane.b32.xlu0 %v3456, 127
    %v3464 = vpop.permute.xlu0 %3463
    %3465 = vrot.lane.b32.xlu0 %v3457, 127
    %v3466 = vpop.permute.xlu0 %3465
    %vm3467 = vcmask 1039360
    %v3468 = vsel %vm3467, %v3462, %v3464
    %v3469 = vsel %vm3467, %v3464, %v3466
    %v3472 = vadd.f32 %v3446, %v3468
    %v3473 = vadd.f32 %v3447, %v3469
    %v3474 = vlaneseq
    %v3475 = vshrl.u32 %v3474, 7
    %v3476 = vsub.s32 2, %v3475
    %v3477 = vrot.slane %v3415, %v3476
    %v3478 = vlaneseq
    %v3479 = vshrl.u32 %v3478, 7
    %v3480 = vsub.s32 6, %v3479
    %v3481 = vrot.slane %v3415, %v3480
    %v3484 = vlaneseq
    %v3485 = vshrl.u32 %v3484, 7
    %v3486 = vsub.s32 2, %v3485
    %v3487 = vrot.slane %v3477, %v3486
    %v3488 = vlaneseq
    %v3489 = vshrl.u32 %v3488, 7
    %v3490 = vsub.s32 2, %v3489
    %v3491 = vrot.slane %v3481, %v3490
    %3494 = vrot.lane.b32.xlu0 %v3487, 2
    %v3495 = vpop.permute.xlu0 %3494
    %3496 = vrot.lane.b32.xlu0 %v3491, 2
    %v3497 = vpop.permute.xlu0 %3496
    %vm3498 = vcmask 15360
    %v3499 = vsel %vm3498, %v3495, %v3497
    %v3503 = vmul.f32 %v3448, %v3495
    %v3504 = vmul.f32 %v3449, %v3499
    %v3505 = vmul.f32 %v3450, %v3497
    %3506 = vset.pattern.permute.xlu0 2
    %3507 = vperm.xlu0 %3506, %v3414
    %v3508 = vpop.permute.xlu0 %3507
    %v3510 = vmul.f32 %v3508, %v3503
    %v3511 = vmul.f32 %v3508, %v3504
    %v3512 = vmul.f32 %v3508, %v3505
    %3516 = vrot.lane.b32.xlu0 %v3510, 126
    %v3517 = vpop.permute.xlu0 %3516
    %3518 = vrot.lane.b32.xlu0 %v3511, 126
    %v3519 = vpop.permute.xlu0 %3518
    %3520 = vrot.lane.b32.xlu0 %v3512, 126
    %v3521 = vpop.permute.xlu0 %3520
    %vm3522 = vcmask 1031168
    %v3523 = vsel %vm3522, %v3517, %v3519
    %v3524 = vsel %vm3522, %v3519, %v3521
    %v3527 = vadd.f32 %v3472, %v3523
    %v3528 = vadd.f32 %v3473, %v3524
    %3531 = vrot.lane.b32.xlu0 %v3432, 16
    %v3532 = vpop.permute.xlu0 %3531
    %3533 = vrot.lane.b32.xlu0 %v3436, 16
    %v3534 = vpop.permute.xlu0 %3533
    %vm3535 = vcmask 130048
    %v3536 = vsel %vm3535, %v3532, %v3534
    %v3540 = vmul.f32 %v3448, %v3532
    %v3541 = vmul.f32 %v3449, %v3536
    %v3542 = vmul.f32 %v3450, %v3534
    %3543 = vset.pattern.permute.xlu0 3
    %3544 = vperm.xlu0 %3543, %v3414
    %v3545 = vpop.permute.xlu0 %3544
    %v3547 = vmul.f32 %v3545, %v3540
    %v3548 = vmul.f32 %v3545, %v3541
    %v3549 = vmul.f32 %v3545, %v3542
    %3553 = vrot.lane.b32.xlu0 %v3547, 112
    %v3554 = vpop.permute.xlu0 %3553
    %3555 = vrot.lane.b32.xlu0 %v3548, 112
    %v3556 = vpop.permute.xlu0 %3555
    %3557 = vrot.lane.b32.xlu0 %v3549, 112
    %v3558 = vpop.permute.xlu0 %3557
    %vm3559 = vcmask 916480
    %v3560 = vsel %vm3559, %v3554, %v3556
    %v3561 = vsel %vm3559, %v3556, %v3558
    %v3564 = vadd.f32 %v3527, %v3560
    %v3565 = vadd.f32 %v3528, %v3561
    %3566 = vset.pattern.permute.xlu0 4
    %3567 = vperm.xlu0 %3566, %v3414
    %v3568 = vpop.permute.xlu0 %3567
    %v3570 = vmul.f32 %v3568, %v3448
    %v3571 = vmul.f32 %v3568, %v3449
    %v3572 = vmul.f32 %v3568, %v3450
    %3576 = vrot.lane.b32.xlu0 %v3570, 111
    %v3577 = vpop.permute.xlu0 %3576
    %3578 = vrot.lane.b32.xlu0 %v3571, 111
    %v3579 = vpop.permute.xlu0 %3578
    %3580 = vrot.lane.b32.xlu0 %v3572, 111
    %v3581 = vpop.permute.xlu0 %3580
    %vm3582 = vcmask 908288
    %v3583 = vsel %vm3582, %v3577, %v3579
    %v3584 = vsel %vm3582, %v3579, %v3581
    %v3587 = vadd.f32 %v3564, %v3583
    %v3588 = vadd.f32 %v3565, %v3584
    %3589 = vrot.lane.b32.xlu0 %v3487, 18
    %v3590 = vpop.permute.xlu0 %3589
    %3591 = vrot.lane.b32.xlu0 %v3491, 18
    %v3592 = vpop.permute.xlu0 %3591
    %vm3593 = vcmask 146432
    %v3594 = vsel %vm3593, %v3590, %v3592
    %v3598 = vmul.f32 %v3448, %v3590
    %v3599 = vmul.f32 %v3449, %v3594
    %v3600 = vmul.f32 %v3450, %v3592
    %3601 = vset.pattern.permute.xlu0 5
    %3602 = vperm.xlu0 %3601, %v3414
    %v3603 = vpop.permute.xlu0 %3602
    %v3605 = vmul.f32 %v3603, %v3598
    %v3606 = vmul.f32 %v3603, %v3599
    %v3607 = vmul.f32 %v3603, %v3600
    %3611 = vrot.lane.b32.xlu0 %v3605, 110
    %v3612 = vpop.permute.xlu0 %3611
    %3613 = vrot.lane.b32.xlu0 %v3606, 110
    %v3614 = vpop.permute.xlu0 %3613
    %3615 = vrot.lane.b32.xlu0 %v3607, 110
    %v3616 = vpop.permute.xlu0 %3615
    %vm3617 = vcmask 900096
    %v3618 = vsel %vm3617, %v3612, %v3614
    %v3619 = vsel %vm3617, %v3614, %v3616
    %v3622 = vadd.f32 %v3587, %v3618
    %v3623 = vadd.f32 %v3588, %v3619
    %3624 = vrot.lane.b32.xlu0 %v3432, 32
    %v3625 = vpop.permute.xlu0 %3624
    %3626 = vrot.lane.b32.xlu0 %v3436, 32
    %v3627 = vpop.permute.xlu0 %3626
    %vm3628 = vcmask 261120
    %v3629 = vsel %vm3628, %v3625, %v3627
    %v3633 = vmul.f32 %v3448, %v3625
    %v3634 = vmul.f32 %v3449, %v3629
    %v3635 = vmul.f32 %v3450, %v3627
    %3636 = vset.pattern.permute.xlu0 6
    %3637 = vperm.xlu0 %3636, %v3414
    %v3638 = vpop.permute.xlu0 %3637
    %v3640 = vmul.f32 %v3638, %v3633
    %v3641 = vmul.f32 %v3638, %v3634
    %v3642 = vmul.f32 %v3638, %v3635
    %3646 = vrot.lane.b32.xlu0 %v3640, 96
    %v3647 = vpop.permute.xlu0 %3646
    %3648 = vrot.lane.b32.xlu0 %v3641, 96
    %v3649 = vpop.permute.xlu0 %3648
    %3650 = vrot.lane.b32.xlu0 %v3642, 96
    %v3651 = vpop.permute.xlu0 %3650
    %v3652 = vsel %vm529, %v3647, %v3649
    %v3653 = vsel %vm529, %v3649, %v3651
    %v3656 = vadd.f32 %v3622, %v3652
    %v3657 = vadd.f32 %v3623, %v3653
    %3658 = vset.pattern.permute.xlu0 7
    %3659 = vperm.xlu0 %3658, %v3414
    %v3660 = vpop.permute.xlu0 %3659
    %v3662 = vmul.f32 %v3660, %v3448
    %v3663 = vmul.f32 %v3660, %v3449
    %v3664 = vmul.f32 %v3660, %v3450
    %3668 = vrot.lane.b32.xlu0 %v3662, 95
    %v3669 = vpop.permute.xlu0 %3668
    %3670 = vrot.lane.b32.xlu0 %v3663, 95
    %v3671 = vpop.permute.xlu0 %3670
    %3672 = vrot.lane.b32.xlu0 %v3664, 95
    %v3673 = vpop.permute.xlu0 %3672
    %vm3674 = vcmask 777216
    %v3675 = vsel %vm3674, %v3669, %v3671
    %v3676 = vsel %vm3674, %v3671, %v3673
    %v3679 = vadd.f32 %v3656, %v3675
    %v3680 = vadd.f32 %v3657, %v3676
    %3681 = vrot.lane.b32.xlu0 %v3487, 34
    %v3682 = vpop.permute.xlu0 %3681
    %3683 = vrot.lane.b32.xlu0 %v3491, 34
    %v3684 = vpop.permute.xlu0 %3683
    %v3685 = vsel %vm3393, %v3682, %v3684
    %v3689 = vmul.f32 %v3448, %v3682
    %v3690 = vmul.f32 %v3449, %v3685
    %v3691 = vmul.f32 %v3450, %v3684
    %3692 = vset.pattern.permute.xlu0 8
    %3693 = vperm.xlu0 %3692, %v3414
    %v3694 = vpop.permute.xlu0 %3693
    %v3696 = vmul.f32 %v3694, %v3689
    %v3697 = vmul.f32 %v3694, %v3690
    %v3698 = vmul.f32 %v3694, %v3691
    %3702 = vrot.lane.b32.xlu0 %v3696, 94
    %v3703 = vpop.permute.xlu0 %3702
    %3704 = vrot.lane.b32.xlu0 %v3697, 94
    %v3705 = vpop.permute.xlu0 %3704
    %3706 = vrot.lane.b32.xlu0 %v3698, 94
    %v3707 = vpop.permute.xlu0 %3706
    %vm3708 = vcmask 769024
    %v3709 = vsel %vm3708, %v3703, %v3705
    %v3710 = vsel %vm3708, %v3705, %v3707
    %v3713 = vadd.f32 %v3679, %v3709
    %v3714 = vadd.f32 %v3680, %v3710
    %v3715 = vld [vmem:[%s61] sm:$0xf]
    %v3717 = vrot.slane %v3715, 4
    %v3719 = vsel %vm378, %v3715, %v3717
    %3721 = vset.pattern.permute.xlu0 0
    %3722 = vperm.xlu0 %3721, %v3719
    %v3723 = vpop.permute.xlu0 %3722
    %v3725 = vadd.f32 %v3713, %v3723
    %v3726 = vadd.f32 %v3714, %v3723
    %v3727 = vmul.f32 %v3725, 0.5
    %v3728 = vmul.f32 %v3726, 0.5
    %v3729 = vmul.f32 %v3725, 0.70710677
    %v3730 = vmul.f32 %v3726, 0.70710677
    %vm3731 = vcmp.ge.f32.partialorder %v3729, 0.0
    %vm3732 = vcmp.ge.f32.partialorder %v3730, 0.0
    %v3733 = vsel %vm3731, 1.0, -1.0
    %v3734 = vsel %vm3732, 1.0, -1.0
    %v3735 = vmul.f32 %v3729, %v3733
    %v3736 = vmul.f32 %v3730, %v3734
    %v3737 = vmul.f32 %v3735, 0.3275911
    %v3738 = vmul.f32 %v3736, 0.3275911
    %v3739 = vadd.f32 %v3737, 1.0
    %v3740 = vadd.f32 %v3738, 1.0
    %v3741 = vrcp.pop %v3739
    %v3742 = vmul.f32 1.0, %v3741
    %v3743 = vrcp.pop %v3740
    %v3744 = vmul.f32 1.0, %v3743
    %v3745 = vmul.f32 %v3742, 1.0614054
    %v3746 = vmul.f32 %v3744, 1.0614054
    %v3747 = vadd.f32 %v3745, -1.4531521
    %v3748 = vadd.f32 %v3746, -1.4531521
    %v3749 = vmul.f32 %v3747, %v3742
    %v3750 = vmul.f32 %v3748, %v3744
    %v3751 = vadd.f32 %v3749, 1.4214138
    %v3752 = vadd.f32 %v3750, 1.4214138
    %v3753 = vmul.f32 %v3751, %v3742
    %v3754 = vmul.f32 %v3752, %v3744
    %v3755 = vadd.f32 %v3753, -0.28449672
    %v3756 = vadd.f32 %v3754, -0.28449672
    %v3757 = vmul.f32 %v3755, %v3742
    %v3758 = vmul.f32 %v3756, %v3744
    %v3759 = vadd.f32 %v3757, 0.2548296
    %v3760 = vadd.f32 %v3758, 0.2548296
    %v3761 = vmul.f32 %v3759, %v3742
    %v3762 = vmul.f32 %v3760, %v3744
    %v3763 = vsub.f32 0.0, %v3735
    %v3764 = vsub.f32 0.0, %v3736
    %v3765 = vmul.f32 %v3763, %v3735
    %v3766 = vmul.f32 %v3764, %v3736
    %v3767 = vmul.f32 %v3765, 1.442695
    %v3768 = vpow.pop %v3767
    %v3769 = vmul.f32 %v3766, 1.442695
    %v3770 = vpow.pop %v3769
    %v3771 = vmul.f32 %v3761, %v3768
    %v3772 = vmul.f32 %v3762, %v3770
    %v3773 = vsub.f32 1.0, %v3771
    %v3774 = vsub.f32 1.0, %v3772
    %v3775 = vmul.f32 %v3733, %v3773
    %v3776 = vmul.f32 %v3734, %v3774
    %v3777 = vadd.f32 %v3775, 1.0
    %v3778 = vadd.f32 %v3776, 1.0
    %v3779 = vmul.f32 %v3727, %v3777
    %v3780 = vmul.f32 %v3728, %v3778
    %v3781 = vld [vmem:[#allocation17] sm:$0xf]
    %v3782 = vld [vmem:[%s65] sm:$0xf]
    %3784 = vset.pattern.permute.xlu0 0
    %3785 = vperm.xlu0 %3784, %v3782
    %v3786 = vpop.permute.xlu0 %3785
    %v3789 = vsel %vm374, %v3781, 0
    %v3792 = vsel %vm378, %v3779, 0
    %v3795 = vsel %vm378, %v3780, 0
    %3797 = vmatprep.subr.mxu0 %v3795
    %3798 = vmatpush1.msra.mxu0 %v3792
    %3799 = vmatprep.subr.mxu0 0.0
    %3800 = vmatpush1.msra.mxu0 0.0
    %3801 = vmatprep.subr.mxu0 0.0
    %3802 = vmatpush1.msra.mxu0 0.0
    %3803 = vmatprep.subr.mxu0 0.0
    %3804 = vmatpush1.msra.mxu0 0.0
    %3805 = vmatprep.subr.mxu0 0.0
    %3806 = vmatpush1.msra.mxu0 0.0
    %3807 = vmatprep.subr.mxu0 0.0
    %3808 = vmatpush1.msra.mxu0 0.0
    %3809 = vmatprep.subr.mxu0 0.0
    %3810 = vmatpush1.msra.mxu0 0.0
    %3811 = vmatprep.subr.mxu0 0.0
    %3812 = vmatpush1.msra.mxu0 0.0
    %3813 = vmatprep.subr.mxu0 0.0
    %3814 = vmatpush1.msra.mxu0 0.0
    %3815 = vmatprep.subr.mxu0 0.0
    %3816 = vmatpush1.msra.mxu0 0.0
    %3817 = vmatprep.subr.mxu0 0.0
    %3818 = vmatpush1.msra.mxu0 0.0
    %3819 = vmatprep.subr.mxu0 0.0
    %3820 = vmatpush1.msra.mxu0 0.0
    %3821 = vmatprep.subr.mxu0 0.0
    %3822 = vmatpush1.msra.mxu0 0.0
    %3823 = vmatprep.subr.mxu0 0.0
    %3824 = vmatpush1.msra.mxu0 0.0
    %3825 = vmatprep.subr.mxu0 0.0
    %3826 = vmatpush1.msra.mxu0 0.0
    %3827 = vmatprep.subr.mxu0 0.0
    %3828 = vmatpush1.msra.mxu0 0.0
    %3829 = vmatprep.subr.mxu0 0.0
    %3830 = vmatpush1.msra.mxu0 0.0
    %3831 = vmatprep.subr.mxu0 0.0
    %3832 = vmatpush1.msra.mxu0 0.0
    %3833 = vmatprep.subr.mxu0 0.0
    %3834 = vmatpush1.msra.mxu0 0.0
    %3835 = vmatprep.subr.mxu0 0.0
    %3836 = vmatpush1.msra.mxu0 0.0
    %3837 = vmatprep.subr.mxu0 0.0
    %3838 = vmatpush1.msra.mxu0 0.0
    %3839 = vmatprep.subr.mxu0 0.0
    %3840 = vmatpush1.msra.mxu0 0.0
    %3841 = vmatprep.subr.mxu0 0.0
    %3842 = vmatpush1.msra.mxu0 0.0
    %3843 = vmatprep.subr.mxu0 0.0
    %3844 = vmatpush1.msra.mxu0 0.0
    %3845 = vmatprep.subr.mxu0 0.0
    %3846 = vmatpush1.msra.mxu0 0.0
    %3847 = vmatprep.subr.mxu0 0.0
    %3848 = vmatpush1.msra.mxu0 0.0
    %3849 = vmatprep.subr.mxu0 0.0
    %3850 = vmatpush1.msra.mxu0 0.0
    %3851 = vmatprep.subr.mxu0 0.0
    %3852 = vmatpush1.msra.mxu0 0.0
    %3853 = vmatprep.subr.mxu0 0.0
    %3854 = vmatpush1.msra.mxu0 0.0
    %3855 = vmatprep.subr.mxu0 0.0
    %3856 = vmatpush1.msra.mxu0 0.0
    %3857 = vmatprep.subr.mxu0 0.0
    %3858 = vmatpush1.msra.mxu0 0.0
    %3859 = vmatprep.subr.mxu0 0.0
    %3860 = vmatpush1.msra.mxu0 0.0
    %3861 = vmatprep.mubr.f32.mxu0 0.0
    %3862 = vmatmul.mubr.f32.gmra.mrb[0].mxu0 %v3789
    %v3863 = vpop.f32.mrb[0].mxu0
    %v3864 = vadd.f32 %v3786, %v3863
    %v3865 = vpop.f32.mrb[0].mxu0
    %v3866 = vadd.f32 %v3786, %v3865
    %3867 = vdwg.mxu0
    %v3868 = vrot.slane %v3779, 4
    %v3869 = vrot.slane %v3780, 4
    %v3870 = vsel %vm378, %v3868, 0
    %v3872 = vsel %vm378, %v3869, 0
    %3874 = vmatprep.subr.mxu0 %v3872
    %3875 = vmatpush1.msra.mxu0 %v3870
    %3876 = vmatprep.subr.mxu0 0.0
    %3877 = vmatpush1.msra.mxu0 0.0
    %3878 = vmatprep.subr.mxu0 0.0
    %3879 = vmatpush1.msra.mxu0 0.0
    %3880 = vmatprep.subr.mxu0 0.0
    %3881 = vmatpush1.msra.mxu0 0.0
    %3882 = vmatprep.subr.mxu0 0.0
    %3883 = vmatpush1.msra.mxu0 0.0
    %3884 = vmatprep.subr.mxu0 0.0
    %3885 = vmatpush1.msra.mxu0 0.0
    %3886 = vmatprep.subr.mxu0 0.0
    %3887 = vmatpush1.msra.mxu0 0.0
    %3888 = vmatprep.subr.mxu0 0.0
    %3889 = vmatpush1.msra.mxu0 0.0
    %3890 = vmatprep.subr.mxu0 0.0
    %3891 = vmatpush1.msra.mxu0 0.0
    %3892 = vmatprep.subr.mxu0 0.0
    %3893 = vmatpush1.msra.mxu0 0.0
    %3894 = vmatprep.subr.mxu0 0.0
    %3895 = vmatpush1.msra.mxu0 0.0
    %3896 = vmatprep.subr.mxu0 0.0
    %3897 = vmatpush1.msra.mxu0 0.0
    %3898 = vmatprep.subr.mxu0 0.0
    %3899 = vmatpush1.msra.mxu0 0.0
    %3900 = vmatprep.subr.mxu0 0.0
    %3901 = vmatpush1.msra.mxu0 0.0
    %3902 = vmatprep.subr.mxu0 0.0
    %3903 = vmatpush1.msra.mxu0 0.0
    %3904 = vmatprep.subr.mxu0 0.0
    %3905 = vmatpush1.msra.mxu0 0.0
    %3906 = vmatprep.subr.mxu0 0.0
    %3907 = vmatpush1.msra.mxu0 0.0
    %3908 = vmatprep.subr.mxu0 0.0
    %3909 = vmatpush1.msra.mxu0 0.0
    %3910 = vmatprep.subr.mxu0 0.0
    %3911 = vmatpush1.msra.mxu0 0.0
    %3912 = vmatprep.subr.mxu0 0.0
    %3913 = vmatpush1.msra.mxu0 0.0
    %3914 = vmatprep.subr.mxu0 0.0
    %3915 = vmatpush1.msra.mxu0 0.0
    %3916 = vmatprep.subr.mxu0 0.0
    %3917 = vmatpush1.msra.mxu0 0.0
    %3918 = vmatprep.subr.mxu0 0.0
    %3919 = vmatpush1.msra.mxu0 0.0
    %3920 = vmatprep.subr.mxu0 0.0
    %3921 = vmatpush1.msra.mxu0 0.0
    %3922 = vmatprep.subr.mxu0 0.0
    %3923 = vmatpush1.msra.mxu0 0.0
    %3924 = vmatprep.subr.mxu0 0.0
    %3925 = vmatpush1.msra.mxu0 0.0
    %3926 = vmatprep.subr.mxu0 0.0
    %3927 = vmatpush1.msra.mxu0 0.0
    %3928 = vmatprep.subr.mxu0 0.0
    %3929 = vmatpush1.msra.mxu0 0.0
    %3930 = vmatprep.subr.mxu0 0.0
    %3931 = vmatpush1.msra.mxu0 0.0
    %3932 = vmatprep.subr.mxu0 0.0
    %3933 = vmatpush1.msra.mxu0 0.0
    %3934 = vmatprep.subr.mxu0 0.0
    %3935 = vmatpush1.msra.mxu0 0.0
    %3936 = vmatprep.subr.mxu0 0.0
    %3937 = vmatpush1.msra.mxu0 0.0
    %3938 = vmatprep.mubr.f32.mxu0 0.0
    %3939 = vmatmul.mubr.f32.gmra.mrb[0].mxu0 %v3789
    %v3940 = vpop.f32.mrb[0].mxu0
    %v3941 = vadd.f32 %v3786, %v3940
    %v3942 = vpop.f32.mrb[0].mxu0
    %v3943 = vadd.f32 %v3786, %v3942
    %3944 = vdwg.mxu0
    %v3947 = vrot.slane %v3941, 4
    %v3948 = vrot.slane %v3943, 4
    %v3951 = vsel %vm378, %v3864, %v3947
    %v3952 = vsel %vm378, %v3866, %v3948
    %v3953 = vld [vmem:[%s67] sm:$0xf]
    %v3954 = vld [vmem:[%s69] sm:$0xf]
    %v3955 = vadd.f32 %v3951, %v3952
    %3956 = vadd.xlane.f32.xlu0 %v3955
    %v3957 = vpop.xlane.xlu0 %3956
    %v3958 = vmul.f32 %v3951, %v3951
    %v3959 = vmul.f32 %v3952, %v3952
    %v3960 = vadd.f32 %v3958, %v3959
    %3961 = vadd.xlane.f32.xlu0 %v3960
    %v3962 = vpop.xlane.xlu0 %3961
    %v3964 = vrot.slane %v3957, 4
    %v3966 = vadd.f32 %v3957, %v3964
    %v3968 = vrot.slane %v3962, 4
    %v3970 = vadd.f32 %v3962, %v3968
    %v3971 = vmul.f32 %v3966, 0.001953125
    %v3972 = vmul.f32 %v3970, 0.001953125
    %v3973 = vmul.f32 %v3971, %v3971
    %v3974 = vsub.f32 %v3972, %v3973
    %v3975 = vmax.f32 %v3974, 0.0
    %v3976 = vadd.f32 %v3975, 1e-05
    %v3977 = vrsqrt.pop %v3976
    %v3978 = vmul.f32 %v3953, %v3977
    %v3979 = vmul.f32 %v3971, %v3978
    %v3980 = vsub.f32 %v3954, %v3979
    %v3982 = vrot.slane %v3978, 4
    %v3984 = vsel %vm378, %v3978, %v3982
    %3986 = vset.pattern.permute.xlu0 0
    %3987 = vperm.xlu0 %3986, %v3984
    %v3988 = vpop.permute.xlu0 %3987
    %v3990 = vmul.f32 %v3951, %v3988
    %v3991 = vmul.f32 %v3952, %v3988
    %v3993 = vrot.slane %v3980, 4
    %v3995 = vsel %vm378, %v3980, %v3993
    %3997 = vset.pattern.permute.xlu0 0
    %3998 = vperm.xlu0 %3997, %v3995
    %v3999 = vpop.permute.xlu0 %3998
    %v4001 = vadd.f32 %v3990, %v3999
    %v4002 = vadd.f32 %v3991, %v3999
    %v4003 = vadd.f32 %v4001, %v3387
    %v4004 = vadd.f32 %v4002, %v3389
    %4005 = vst [vmem:[%s73] sm:$0xff] %v4003
    %4006 = vst [vmem:[%s73 + $0x8] sm:$0xff] %v4004
    // Predicated region
    $region182: #{een_forward.1} parent=1 // pred_check
      _
    $region183: #{een_forward.1} parent=1 // pred_check_branch
      %4008 = sbr.rel (0) target = $region185
    $region184: #{een_forward.1} parent=1 // pred_region
      _
    $region185: #{een_forward.1} parent=1 // pred_fallthru
      _
    // Predicated region
    $region186: #{een_forward.1} parent=1 // pred_check
      _
    $region187: #{een_forward.1} parent=1 // pred_check_branch
      %4010 = sbr.rel (0) target = $region189
    $region188: #{een_forward.1} parent=1 // pred_region
      _
    $region189: #{een_forward.1} parent=1 // pred_fallthru
      _
    %4011 = vsyncpa [#allocation5], 1
    %4012 = vsyncpa [#allocation7], 1
    %4013 = vsyncpa [#allocation10], 1
    %4014 = vsyncpa [#allocation13], 1
    %4015 = vsyncpa [#allocation16], 1

</llo_original>
